<compile_context>
chip_gen: v7x
topology: tpu7x:2x2x1
jax: 0.10.0
libtpu: 0.0.40
codegen_flags: <defaults>
</compile_context>

<pallas_src>
import jax
import jax.numpy as jnp
import numpy as np
from jax.experimental import pallas as pl
from jax.experimental.pallas import tpu as pltpu


# ---------------------------------------------------------------------------
# Kernel
# ---------------------------------------------------------------------------
def _seq2seq_kernel(src_ref,                       # (S, Bb, in_p)
                    w1_ref, b1_ref,                # ((in_p+H_p), H_p), (Bb, H_p)
                    w2_ref, b2_ref,                # (2*H_p, H_p),      (Bb, H_p)
                    wed_ref, wd1h_ref, bc0_ref,    # step-0 decoder_rnn1 (folded enc2dec)
                    wc_ref, bcr_ref,               # steady-state decoder_rnn1 (folded feedback)
                    wd2_ref, bd2_ref,              # decoder_rnn2 (zero hidden -> input path only)
                    wf_ref, bf_ref,                # folded fc1∘fc2 head
                    out_ref):                      # (T, Bb, out_p)
    S = src_ref.shape[0]
    T = out_ref.shape[0]
    Bb = src_ref.shape[1]
    Hp = wd1h_ref.shape[0]
    f32 = jnp.float32

    # ---- Encoder: two stacked tanh-RNN cells, one fused matmul per cell ----
    h1 = jnp.zeros((Bb, Hp), f32)
    h2 = jnp.zeros((Bb, Hp), f32)
    for t in range(S):                              # S static -> fully unrolled
        x_t = src_ref[t]                            # (Bb, in_p)
        h1 = jnp.tanh(
            jnp.dot(jnp.concatenate([x_t, h1], axis=-1), w1_ref[...],
                    preferred_element_type=f32) + b1_ref[...])
        h2 = jnp.tanh(
            jnp.dot(jnp.concatenate([h1, h2], axis=-1), w2_ref[...],
                    preferred_element_type=f32) + b2_ref[...])

    # ---- Decoder step 0: enc2dec(h2) folded into decoder_rnn1's input matmul ----
    hd1 = jnp.tanh(
        jnp.dot(h2, wed_ref[...], preferred_element_type=f32)
        + jnp.dot(h1, wd1h_ref[...], preferred_element_type=f32)
        + bc0_ref[...])
    hd2 = jnp.tanh(jnp.dot(hd1, wd2_ref[...], preferred_element_type=f32)
                   + bd2_ref[...])
    out_ref[0] = jnp.dot(hd2, wf_ref[...], preferred_element_type=f32) + bf_ref[...]

    # ---- Decoder steps 1..T-1: y-feedback folded, critical path = 2 matmuls ----
    for t in range(1, T):                           # T static -> fully unrolled
        hd1 = jnp.tanh(jnp.dot(hd2, wc_ref[...], preferred_element_type=f32)
                       + bcr_ref[...])
        hd2 = jnp.tanh(jnp.dot(hd1, wd2_ref[...], preferred_element_type=f32)
                       + bd2_ref[...])
        out_ref[t] = (jnp.dot(hd2, wf_ref[...], preferred_element_type=f32)
                      + bf_ref[...])


# ---------------------------------------------------------------------------
# Wrapper: padding, weight fusion/folding, pallas_call
# ---------------------------------------------------------------------------
def _round_up(x, m):
    return (x + m - 1) // m * m


def _pad2(a, rows, cols):
    a = jnp.asarray(a, jnp.float32)
    return jnp.zeros((rows, cols), jnp.float32).at[:a.shape[0], :a.shape[1]].set(a)


def _bias_block(v, rows, cols):
    v = jnp.asarray(v, jnp.float32)
    row = jnp.zeros((cols,), jnp.float32).at[:v.shape[0]].set(v)
    return jnp.tile(row[None, :], (rows, 1))


def deep_seq2seq_rnn(source, target_len, p):
    """source: (B, S, input_dim) float32, batch_first (PyTorch convention)."""
    B, S, input_dim = source.shape
    H = p["w_hh1"].shape[0]
    out_dim = p["w_e2d"].shape[0]

    LANE, SUB = 128, 8
    in_p = _round_up(input_dim, LANE)
    H_p = _round_up(H, LANE)
    out_p = _round_up(out_dim, LANE)
    B_blk = SUB
    B_p = _round_up(B, B_blk)
    f32 = jnp.float32

    # source -> time-major, zero-padded to lane/sublane-dense shape.
    src = jnp.transpose(source.astype(f32), (1, 0, 2))           # (S, B, in)
    src = jnp.zeros((S, B_p, in_p), f32).at[:, :B, :input_dim].set(src)

    # -- Encoder cells: stacked [W_ih^T ; W_hh^T], biases folded & pre-broadcast --
    w1 = (jnp.zeros((in_p + H_p, H_p), f32)
          .at[:input_dim, :H].set(p["w_ih1"].T)
          .at[in_p:in_p + H, :H].set(p["w_hh1"].T))
    b1 = _bias_block(p["b_ih1"] + p["b_hh1"], B_blk, H_p)
    w2 = (jnp.zeros((2 * H_p, H_p), f32)
          .at[:H, :H].set(p["w_ih2"].T)
          .at[H_p:H_p + H, :H].set(p["w_hh2"].T))
    b2 = _bias_block(p["b_ih2"] + p["b_hh2"], B_blk, H_p)

    # -- Decoder algebraic folds (unpadded math, then pad) --
    wd1x = p["wd1_ih"].T                                   # (out, H)
    wd1h = p["wd1_hh"].T                                   # (H, H)
    bd1 = p["bd1_ih"] + p["bd1_hh"]
    wd2x = p["wd2_ih"].T                                   # (H, H); wd2_hh unused (zero hidden)
    bd2 = p["bd2_ih"] + p["bd2_hh"]

    wf = p["wf1"].T @ p["wf2"].T                           # (H, out): fc1∘fc2 folded
    bf = p["bf1"] @ p["wf2"].T + p["bf2"]                  # (out,)

    wed = p["w_e2d"].T @ wd1x                              # enc2dec folded into rnn1 input (t=0)
    bc0 = bd1 + p["b_e2d"] @ wd1x
    wc = wf @ wd1x + wd1h                                  # y-feedback + hidden path (both carry hd2)
    bcr = bd1 + bf @ wd1x

    args = (
        src,
        w1, b1,
        w2, b2,
        _pad2(wed, H_p, H_p), _pad2(wd1h, H_p, H_p), _bias_block(bc0, B_blk, H_p),
        _pad2(wc, H_p, H_p), _bias_block(bcr, B_blk, H_p),
        _pad2(wd2x, H_p, H_p), _bias_block(bd2, B_blk, H_p),
        _pad2(wf, H_p, out_p), _bias_block(bf, B_blk, out_p),
    )

    grid = (B_p // B_blk,)
    full = lambda b: (0, 0)
    in_specs = [pl.BlockSpec((S, B_blk, in_p), lambda b: (0, b, 0))]
    in_specs += [pl.BlockSpec(a.shape, full) for a in args[1:]]
    out_specs = pl.BlockSpec((target_len, B_blk, out_p), lambda b: (0, b, 0))

    resident_bytes = (sum(int(a.size) for a in args) + target_len * B_blk * out_p) * 4
    vmem_bytes = int(min(64 * 1024 * 1024, max(8 * 1024 * 1024, 4 * resident_bytes)))

    out_tm = pl.pallas_call(
        _seq2seq_kernel,
        out_shape=jax.ShapeDtypeStruct((target_len, B_p, out_p), f32),
        grid=grid,
        in_specs=in_specs,
        out_specs=out_specs,
        compiler_params=pltpu.CompilerParams(
            dimension_semantics=("parallel",),
            vmem_limit_bytes=vmem_bytes,
        ),
    )(*args)

    # (T, B_p, out_p) -> (B, T, out_dim), padding sliced off.
    return jnp.transpose(out_tm, (1, 0, 2))[:B, :, :out_dim]


# ---------------------------------------------------------------------------
# Parameter init + pure-JAX reference (mirrors the PyTorch forward exactly)
# ---------------------------------------------------------------------------
def init_params(key, input_dim, output_dim, hidden_dim):
    k = 1.0 / np.sqrt(hidden_dim)
    names_shapes = [
        ("w_ih1", (hidden_dim, input_dim)), ("w_hh1", (hidden_dim, hidden_dim)),
        ("b_ih1", (hidden_dim,)), ("b_hh1", (hidden_dim,)),
        ("w_ih2", (hidden_dim, hidden_dim)), ("w_hh2", (hidden_dim, hidden_dim)),
        ("b_ih2", (hidden_dim,)), ("b_hh2", (hidden_dim,)),
        ("w_e2d", (output_dim, hidden_dim)), ("b_e2d", (output_dim,)),
        ("wd1_ih", (hidden_dim, output_dim)), ("wd1_hh", (hidden_dim, hidden_dim)),
        ("bd1_ih", (hidden_dim,)), ("bd1_hh", (hidden_dim,)),
        ("wd2_ih", (hidden_dim, hidden_dim)), ("wd2_hh", (hidden_dim, hidden_dim)),
        ("bd2_ih", (hidden_dim,)), ("bd2_hh", (hidden_dim,)),
        ("wf1", (hidden_dim, hidden_dim)), ("bf1", (hidden_dim,)),
        ("wf2", (output_dim, hidden_dim)), ("bf2", (output_dim,)),
    ]
    keys = jax.random.split(key, len(names_shapes))
    return {n: jax.random.uniform(kk, s, jnp.float32, -k, k)
            for (n, s), kk in zip(names_shapes, keys)}


def reference(source, target_len, p):
    B, S, _ = source.shape
    H = p["w_hh1"].shape[0]

    def cell(x, h, w_ih, b_ih, w_hh, b_hh):
        return jnp.tanh(x @ w_ih.T + b_ih + h @ w_hh.T + b_hh)

    h1 = jnp.zeros((B, H), jnp.float32)
    h2 = jnp.zeros((B, H), jnp.float32)
    for t in range(S):
        h1 = cell(source[:, t], h1, p["w_ih1"], p["b_ih1"], p["w_hh1"], p["b_hh1"])
        h2 = cell(h1, h2, p["w_ih2"], p["b_ih2"], p["w_hh2"], p["b_hh2"])
    dec_in = h2 @ p["w_e2d"].T + p["b_e2d"]
    hidden = h1
    outs = []
    for t in range(target_len):
        hd1 = cell(dec_in, hidden, p["wd1_ih"], p["bd1_ih"], p["wd1_hh"], p["bd1_hh"])
        hd2 = cell(hd1, jnp.zeros((B, H), jnp.float32),
                   p["wd2_ih"], p["bd2_ih"], p["wd2_hh"], p["bd2_hh"])
        y = (hd2 @ p["wf1"].T + p["bf1"]) @ p["wf2"].T + p["bf2"]
        outs.append(y[:, None, :])
        dec_in = y
        hidden = hd2
    return jnp.concatenate(outs, axis=1)


if __name__ == "__main__":
    B, S, input_dim, hidden_dim, output_dim = 2, 8, 4, 32, 8
    target_len = 6

    root = jax.random.PRNGKey(0)
    k_src, k_par = jax.random.split(root)
    source = jax.random.normal(k_src, (B, S, input_dim), jnp.float32)
    params = init_params(k_par, input_dim, output_dim, hidden_dim)

    out = deep_seq2seq_rnn(source, target_len, params)
    out = jax.block_until_ready(out)

    ref = reference(source, target_len, params)
    # Algebraic folds (fc1∘fc2, enc2dec/feedback into decoder_rnn1) reassociate
    # float32 ops slightly; 1e-4 comfortably covers that.
    np.testing.assert_allclose(np.asarray(out), np.asarray(ref), rtol=1e-4, atol=1e-4)
    assert out.shape == (B, target_len, output_dim)
    print("KERNEL_OK")
</pallas_src>

<mosaic_0001>
module attributes {stable_mosaic.version = 11 : i64} {
  func.func @_seq2seq_kernel(%arg0: i32, %arg1: memref<8x8x128xf32, #tpu.memory_space<vmem>>, %arg2: memref<256x128xf32, #tpu.memory_space<vmem>>, %arg3: memref<8x128xf32, #tpu.memory_space<vmem>>, %arg4: memref<256x128xf32, #tpu.memory_space<vmem>>, %arg5: memref<8x128xf32, #tpu.memory_space<vmem>>, %arg6: memref<128x128xf32, #tpu.memory_space<vmem>>, %arg7: memref<128x128xf32, #tpu.memory_space<vmem>>, %arg8: memref<8x128xf32, #tpu.memory_space<vmem>>, %arg9: memref<128x128xf32, #tpu.memory_space<vmem>>, %arg10: memref<8x128xf32, #tpu.memory_space<vmem>>, %arg11: memref<128x128xf32, #tpu.memory_space<vmem>>, %arg12: memref<8x128xf32, #tpu.memory_space<vmem>>, %arg13: memref<128x128xf32, #tpu.memory_space<vmem>>, %arg14: memref<8x128xf32, #tpu.memory_space<vmem>>, %arg15: memref<6x8x128xf32, #tpu.memory_space<vmem>>) attributes {dimension_semantics = [#tpu.dimension_semantics<parallel>], iteration_bounds = array<i64: 1>, scalar_prefetch = 0 : i64, scratch_operands = 0 : i64, tpu.core_type = #tpu.core_type<tc>, window_params = [{transform_indices = @transform_0, window_bounds = array<i64: 8, 8, 128>}, {pipeline_mode = #tpu.pipeline_mode<synchronous>, transform_indices = @transform_1, window_bounds = array<i64: 256, 128>}, {pipeline_mode = #tpu.pipeline_mode<synchronous>, transform_indices = @transform_2, window_bounds = array<i64: 8, 128>}, {pipeline_mode = #tpu.pipeline_mode<synchronous>, transform_indices = @transform_3, window_bounds = array<i64: 256, 128>}, {pipeline_mode = #tpu.pipeline_mode<synchronous>, transform_indices = @transform_4, window_bounds = array<i64: 8, 128>}, {pipeline_mode = #tpu.pipeline_mode<synchronous>, transform_indices = @transform_5, window_bounds = array<i64: 128, 128>}, {pipeline_mode = #tpu.pipeline_mode<synchronous>, transform_indices = @transform_6, window_bounds = array<i64: 128, 128>}, {pipeline_mode = #tpu.pipeline_mode<synchronous>, transform_indices = @transform_7, window_bounds = array<i64: 8, 128>}, {pipeline_mode = #tpu.pipeline_mode<synchronous>, transform_indices = @transform_8, window_bounds = array<i64: 128, 128>}, {pipeline_mode = #tpu.pipeline_mode<synchronous>, transform_indices = @transform_9, window_bounds = array<i64: 8, 128>}, {pipeline_mode = #tpu.pipeline_mode<synchronous>, transform_indices = @transform_10, window_bounds = array<i64: 128, 128>}, {pipeline_mode = #tpu.pipeline_mode<synchronous>, transform_indices = @transform_11, window_bounds = array<i64: 8, 128>}, {pipeline_mode = #tpu.pipeline_mode<synchronous>, transform_indices = @transform_12, window_bounds = array<i64: 128, 128>}, {pipeline_mode = #tpu.pipeline_mode<synchronous>, transform_indices = @transform_13, window_bounds = array<i64: 8, 128>}, {transform_indices = @transform_14, window_bounds = array<i64: 6, 8, 128>}]} {
    %cst = arith.constant 0.000000e+00 : f32
    %0 = vector.broadcast %cst : f32 to vector<8x128xf32>
    %cst_0 = arith.constant 0.000000e+00 : f32
    %1 = vector.broadcast %cst_0 : f32 to vector<8x128xf32>
    %c0 = arith.constant 0 : index
    %c0_1 = arith.constant 0 : index
    %c0_2 = arith.constant 0 : index
    %2 = vector.load %arg1[%c0, %c0_1, %c0_2] : memref<8x8x128xf32, #tpu.memory_space<vmem>>, vector<1x8x128xf32>
    %3 = vector.shape_cast %2 : vector<1x8x128xf32> to vector<8x128xf32>
    %4 = tpu.concatenate %3, %0 in 1 : vector<8x128xf32>, vector<8x128xf32> -> vector<8x256xf32>
    %c0_3 = arith.constant 0 : index
    %c0_4 = arith.constant 0 : index
    %5 = vector.load %arg2[%c0_3, %c0_4] : memref<256x128xf32, #tpu.memory_space<vmem>>, vector<256x128xf32>
    %cst_5 = arith.constant dense<0.000000e+00> : vector<8x128xf32>
    %6 = tpu.matmul %4, %5, %cst_5 {dimension_numbers = #tpu.dot_dimension_numbers<[1], [0], [0], [1], [0, 0, 1, 1], [], []>} : vector<8x256xf32>, vector<256x128xf32>, vector<8x128xf32> -> vector<8x128xf32>
    %c0_6 = arith.constant 0 : index
    %c0_7 = arith.constant 0 : index
    %7 = vector.load %arg3[%c0_6, %c0_7] : memref<8x128xf32, #tpu.memory_space<vmem>>, vector<8x128xf32>
    %8 = arith.addf %6, %7 : vector<8x128xf32>
    %9 = math.tanh %8 : vector<8x128xf32>
    %10 = tpu.concatenate %9, %1 in 1 : vector<8x128xf32>, vector<8x128xf32> -> vector<8x256xf32>
    %c0_8 = arith.constant 0 : index
    %c0_9 = arith.constant 0 : index
    %11 = vector.load %arg4[%c0_8, %c0_9] : memref<256x128xf32, #tpu.memory_space<vmem>>, vector<256x128xf32>
    %cst_10 = arith.constant dense<0.000000e+00> : vector<8x128xf32>
    %12 = tpu.matmul %10, %11, %cst_10 {dimension_numbers = #tpu.dot_dimension_numbers<[1], [0], [0], [1], [0, 0, 1, 1], [], []>} : vector<8x256xf32>, vector<256x128xf32>, vector<8x128xf32> -> vector<8x128xf32>
    %c0_11 = arith.constant 0 : index
    %c0_12 = arith.constant 0 : index
    %13 = vector.load %arg5[%c0_11, %c0_12] : memref<8x128xf32, #tpu.memory_space<vmem>>, vector<8x128xf32>
    %14 = arith.addf %12, %13 : vector<8x128xf32>
    %15 = math.tanh %14 : vector<8x128xf32>
    %c1 = arith.constant 1 : index
    %c0_13 = arith.constant 0 : index
    %c0_14 = arith.constant 0 : index
    %16 = vector.load %arg1[%c1, %c0_13, %c0_14] : memref<8x8x128xf32, #tpu.memory_space<vmem>>, vector<1x8x128xf32>
    %17 = vector.shape_cast %16 : vector<1x8x128xf32> to vector<8x128xf32>
    %18 = tpu.concatenate %17, %9 in 1 : vector<8x128xf32>, vector<8x128xf32> -> vector<8x256xf32>
    %c0_15 = arith.constant 0 : index
    %c0_16 = arith.constant 0 : index
    %19 = vector.load %arg2[%c0_15, %c0_16] : memref<256x128xf32, #tpu.memory_space<vmem>>, vector<256x128xf32>
    %cst_17 = arith.constant dense<0.000000e+00> : vector<8x128xf32>
    %20 = tpu.matmul %18, %19, %cst_17 {dimension_numbers = #tpu.dot_dimension_numbers<[1], [0], [0], [1], [0, 0, 1, 1], [], []>} : vector<8x256xf32>, vector<256x128xf32>, vector<8x128xf32> -> vector<8x128xf32>
    %c0_18 = arith.constant 0 : index
    %c0_19 = arith.constant 0 : index
    %21 = vector.load %arg3[%c0_18, %c0_19] : memref<8x128xf32, #tpu.memory_space<vmem>>, vector<8x128xf32>
    %22 = arith.addf %20, %21 : vector<8x128xf32>
    %23 = math.tanh %22 : vector<8x128xf32>
    %24 = tpu.concatenate %23, %15 in 1 : vector<8x128xf32>, vector<8x128xf32> -> vector<8x256xf32>
    %c0_20 = arith.constant 0 : index
    %c0_21 = arith.constant 0 : index
    %25 = vector.load %arg4[%c0_20, %c0_21] : memref<256x128xf32, #tpu.memory_space<vmem>>, vector<256x128xf32>
    %cst_22 = arith.constant dense<0.000000e+00> : vector<8x128xf32>
    %26 = tpu.matmul %24, %25, %cst_22 {dimension_numbers = #tpu.dot_dimension_numbers<[1], [0], [0], [1], [0, 0, 1, 1], [], []>} : vector<8x256xf32>, vector<256x128xf32>, vector<8x128xf32> -> vector<8x128xf32>
    %c0_23 = arith.constant 0 : index
    %c0_24 = arith.constant 0 : index
    %27 = vector.load %arg5[%c0_23, %c0_24] : memref<8x128xf32, #tpu.memory_space<vmem>>, vector<8x128xf32>
    %28 = arith.addf %26, %27 : vector<8x128xf32>
    %29 = math.tanh %28 : vector<8x128xf32>
    %c2 = arith.constant 2 : index
    %c0_25 = arith.constant 0 : index
    %c0_26 = arith.constant 0 : index
    %30 = vector.load %arg1[%c2, %c0_25, %c0_26] : memref<8x8x128xf32, #tpu.memory_space<vmem>>, vector<1x8x128xf32>
    %31 = vector.shape_cast %30 : vector<1x8x128xf32> to vector<8x128xf32>
    %32 = tpu.concatenate %31, %23 in 1 : vector<8x128xf32>, vector<8x128xf32> -> vector<8x256xf32>
    %c0_27 = arith.constant 0 : index
    %c0_28 = arith.constant 0 : index
    %33 = vector.load %arg2[%c0_27, %c0_28] : memref<256x128xf32, #tpu.memory_space<vmem>>, vector<256x128xf32>
    %cst_29 = arith.constant dense<0.000000e+00> : vector<8x128xf32>
    %34 = tpu.matmul %32, %33, %cst_29 {dimension_numbers = #tpu.dot_dimension_numbers<[1], [0], [0], [1], [0, 0, 1, 1], [], []>} : vector<8x256xf32>, vector<256x128xf32>, vector<8x128xf32> -> vector<8x128xf32>
    %c0_30 = arith.constant 0 : index
    %c0_31 = arith.constant 0 : index
    %35 = vector.load %arg3[%c0_30, %c0_31] : memref<8x128xf32, #tpu.memory_space<vmem>>, vector<8x128xf32>
    %36 = arith.addf %34, %35 : vector<8x128xf32>
    %37 = math.tanh %36 : vector<8x128xf32>
    %38 = tpu.concatenate %37, %29 in 1 : vector<8x128xf32>, vector<8x128xf32> -> vector<8x256xf32>
    %c0_32 = arith.constant 0 : index
    %c0_33 = arith.constant 0 : index
    %39 = vector.load %arg4[%c0_32, %c0_33] : memref<256x128xf32, #tpu.memory_space<vmem>>, vector<256x128xf32>
    %cst_34 = arith.constant dense<0.000000e+00> : vector<8x128xf32>
    %40 = tpu.matmul %38, %39, %cst_34 {dimension_numbers = #tpu.dot_dimension_numbers<[1], [0], [0], [1], [0, 0, 1, 1], [], []>} : vector<8x256xf32>, vector<256x128xf32>, vector<8x128xf32> -> vector<8x128xf32>
    %c0_35 = arith.constant 0 : index
    %c0_36 = arith.constant 0 : index
    %41 = vector.load %arg5[%c0_35, %c0_36] : memref<8x128xf32, #tpu.memory_space<vmem>>, vector<8x128xf32>
    %42 = arith.addf %40, %41 : vector<8x128xf32>
    %43 = math.tanh %42 : vector<8x128xf32>
    %c3 = arith.constant 3 : index
    %c0_37 = arith.constant 0 : index
    %c0_38 = arith.constant 0 : index
    %44 = vector.load %arg1[%c3, %c0_37, %c0_38] : memref<8x8x128xf32, #tpu.memory_space<vmem>>, vector<1x8x128xf32>
    %45 = vector.shape_cast %44 : vector<1x8x128xf32> to vector<8x128xf32>
    %46 = tpu.concatenate %45, %37 in 1 : vector<8x128xf32>, vector<8x128xf32> -> vector<8x256xf32>
    %c0_39 = arith.constant 0 : index
    %c0_40 = arith.constant 0 : index
    %47 = vector.load %arg2[%c0_39, %c0_40] : memref<256x128xf32, #tpu.memory_space<vmem>>, vector<256x128xf32>
    %cst_41 = arith.constant dense<0.000000e+00> : vector<8x128xf32>
    %48 = tpu.matmul %46, %47, %cst_41 {dimension_numbers = #tpu.dot_dimension_numbers<[1], [0], [0], [1], [0, 0, 1, 1], [], []>} : vector<8x256xf32>, vector<256x128xf32>, vector<8x128xf32> -> vector<8x128xf32>
    %c0_42 = arith.constant 0 : index
    %c0_43 = arith.constant 0 : index
    %49 = vector.load %arg3[%c0_42, %c0_43] : memref<8x128xf32, #tpu.memory_space<vmem>>, vector<8x128xf32>
    %50 = arith.addf %48, %49 : vector<8x128xf32>
    %51 = math.tanh %50 : vector<8x128xf32>
    %52 = tpu.concatenate %51, %43 in 1 : vector<8x128xf32>, vector<8x128xf32> -> vector<8x256xf32>
    %c0_44 = arith.constant 0 : index
    %c0_45 = arith.constant 0 : index
    %53 = vector.load %arg4[%c0_44, %c0_45] : memref<256x128xf32, #tpu.memory_space<vmem>>, vector<256x128xf32>
    %cst_46 = arith.constant dense<0.000000e+00> : vector<8x128xf32>
    %54 = tpu.matmul %52, %53, %cst_46 {dimension_numbers = #tpu.dot_dimension_numbers<[1], [0], [0], [1], [0, 0, 1, 1], [], []>} : vector<8x256xf32>, vector<256x128xf32>, vector<8x128xf32> -> vector<8x128xf32>
    %c0_47 = arith.constant 0 : index
    %c0_48 = arith.constant 0 : index
    %55 = vector.load %arg5[%c0_47, %c0_48] : memref<8x128xf32, #tpu.memory_space<vmem>>, vector<8x128xf32>
    %56 = arith.addf %54, %55 : vector<8x128xf32>
    %57 = math.tanh %56 : vector<8x128xf32>
    %c4 = arith.constant 4 : index
    %c0_49 = arith.constant 0 : index
    %c0_50 = arith.constant 0 : index
    %58 = vector.load %arg1[%c4, %c0_49, %c0_50] : memref<8x8x128xf32, #tpu.memory_space<vmem>>, vector<1x8x128xf32>
    %59 = vector.shape_cast %58 : vector<1x8x128xf32> to vector<8x128xf32>
    %60 = tpu.concatenate %59, %51 in 1 : vector<8x128xf32>, vector<8x128xf32> -> vector<8x256xf32>
    %c0_51 = arith.constant 0 : index
    %c0_52 = arith.constant 0 : index
    %61 = vector.load %arg2[%c0_51, %c0_52] : memref<256x128xf32, #tpu.memory_space<vmem>>, vector<256x128xf32>
    %cst_53 = arith.constant dense<0.000000e+00> : vector<8x128xf32>
    %62 = tpu.matmul %60, %61, %cst_53 {dimension_numbers = #tpu.dot_dimension_numbers<[1], [0], [0], [1], [0, 0, 1, 1], [], []>} : vector<8x256xf32>, vector<256x128xf32>, vector<8x128xf32> -> vector<8x128xf32>
    %c0_54 = arith.constant 0 : index
    %c0_55 = arith.constant 0 : index
    %63 = vector.load %arg3[%c0_54, %c0_55] : memref<8x128xf32, #tpu.memory_space<vmem>>, vector<8x128xf32>
    %64 = arith.addf %62, %63 : vector<8x128xf32>
    %65 = math.tanh %64 : vector<8x128xf32>
    %66 = tpu.concatenate %65, %57 in 1 : vector<8x128xf32>, vector<8x128xf32> -> vector<8x256xf32>
    %c0_56 = arith.constant 0 : index
    %c0_57 = arith.constant 0 : index
    %67 = vector.load %arg4[%c0_56, %c0_57] : memref<256x128xf32, #tpu.memory_space<vmem>>, vector<256x128xf32>
    %cst_58 = arith.constant dense<0.000000e+00> : vector<8x128xf32>
    %68 = tpu.matmul %66, %67, %cst_58 {dimension_numbers = #tpu.dot_dimension_numbers<[1], [0], [0], [1], [0, 0, 1, 1], [], []>} : vector<8x256xf32>, vector<256x128xf32>, vector<8x128xf32> -> vector<8x128xf32>
    %c0_59 = arith.constant 0 : index
    %c0_60 = arith.constant 0 : index
    %69 = vector.load %arg5[%c0_59, %c0_60] : memref<8x128xf32, #tpu.memory_space<vmem>>, vector<8x128xf32>
    %70 = arith.addf %68, %69 : vector<8x128xf32>
    %71 = math.tanh %70 : vector<8x128xf32>
    %c5 = arith.constant 5 : index
    %c0_61 = arith.constant 0 : index
    %c0_62 = arith.constant 0 : index
    %72 = vector.load %arg1[%c5, %c0_61, %c0_62] : memref<8x8x128xf32, #tpu.memory_space<vmem>>, vector<1x8x128xf32>
    %73 = vector.shape_cast %72 : vector<1x8x128xf32> to vector<8x128xf32>
    %74 = tpu.concatenate %73, %65 in 1 : vector<8x128xf32>, vector<8x128xf32> -> vector<8x256xf32>
    %c0_63 = arith.constant 0 : index
    %c0_64 = arith.constant 0 : index
    %75 = vector.load %arg2[%c0_63, %c0_64] : memref<256x128xf32, #tpu.memory_space<vmem>>, vector<256x128xf32>
    %cst_65 = arith.constant dense<0.000000e+00> : vector<8x128xf32>
    %76 = tpu.matmul %74, %75, %cst_65 {dimension_numbers = #tpu.dot_dimension_numbers<[1], [0], [0], [1], [0, 0, 1, 1], [], []>} : vector<8x256xf32>, vector<256x128xf32>, vector<8x128xf32> -> vector<8x128xf32>
    %c0_66 = arith.constant 0 : index
    %c0_67 = arith.constant 0 : index
    %77 = vector.load %arg3[%c0_66, %c0_67] : memref<8x128xf32, #tpu.memory_space<vmem>>, vector<8x128xf32>
    %78 = arith.addf %76, %77 : vector<8x128xf32>
    %79 = math.tanh %78 : vector<8x128xf32>
    %80 = tpu.concatenate %79, %71 in 1 : vector<8x128xf32>, vector<8x128xf32> -> vector<8x256xf32>
    %c0_68 = arith.constant 0 : index
    %c0_69 = arith.constant 0 : index
    %81 = vector.load %arg4[%c0_68, %c0_69] : memref<256x128xf32, #tpu.memory_space<vmem>>, vector<256x128xf32>
    %cst_70 = arith.constant dense<0.000000e+00> : vector<8x128xf32>
    %82 = tpu.matmul %80, %81, %cst_70 {dimension_numbers = #tpu.dot_dimension_numbers<[1], [0], [0], [1], [0, 0, 1, 1], [], []>} : vector<8x256xf32>, vector<256x128xf32>, vector<8x128xf32> -> vector<8x128xf32>
    %c0_71 = arith.constant 0 : index
    %c0_72 = arith.constant 0 : index
    %83 = vector.load %arg5[%c0_71, %c0_72] : memref<8x128xf32, #tpu.memory_space<vmem>>, vector<8x128xf32>
    %84 = arith.addf %82, %83 : vector<8x128xf32>
    %85 = math.tanh %84 : vector<8x128xf32>
    %c6 = arith.constant 6 : index
    %c0_73 = arith.constant 0 : index
    %c0_74 = arith.constant 0 : index
    %86 = vector.load %arg1[%c6, %c0_73, %c0_74] : memref<8x8x128xf32, #tpu.memory_space<vmem>>, vector<1x8x128xf32>
    %87 = vector.shape_cast %86 : vector<1x8x128xf32> to vector<8x128xf32>
    %88 = tpu.concatenate %87, %79 in 1 : vector<8x128xf32>, vector<8x128xf32> -> vector<8x256xf32>
    %c0_75 = arith.constant 0 : index
    %c0_76 = arith.constant 0 : index
    %89 = vector.load %arg2[%c0_75, %c0_76] : memref<256x128xf32, #tpu.memory_space<vmem>>, vector<256x128xf32>
    %cst_77 = arith.constant dense<0.000000e+00> : vector<8x128xf32>
    %90 = tpu.matmul %88, %89, %cst_77 {dimension_numbers = #tpu.dot_dimension_numbers<[1], [0], [0], [1], [0, 0, 1, 1], [], []>} : vector<8x256xf32>, vector<256x128xf32>, vector<8x128xf32> -> vector<8x128xf32>
    %c0_78 = arith.constant 0 : index
    %c0_79 = arith.constant 0 : index
    %91 = vector.load %arg3[%c0_78, %c0_79] : memref<8x128xf32, #tpu.memory_space<vmem>>, vector<8x128xf32>
    %92 = arith.addf %90, %91 : vector<8x128xf32>
    %93 = math.tanh %92 : vector<8x128xf32>
    %94 = tpu.concatenate %93, %85 in 1 : vector<8x128xf32>, vector<8x128xf32> -> vector<8x256xf32>
    %c0_80 = arith.constant 0 : index
    %c0_81 = arith.constant 0 : index
    %95 = vector.load %arg4[%c0_80, %c0_81] : memref<256x128xf32, #tpu.memory_space<vmem>>, vector<256x128xf32>
    %cst_82 = arith.constant dense<0.000000e+00> : vector<8x128xf32>
    %96 = tpu.matmul %94, %95, %cst_82 {dimension_numbers = #tpu.dot_dimension_numbers<[1], [0], [0], [1], [0, 0, 1, 1], [], []>} : vector<8x256xf32>, vector<256x128xf32>, vector<8x128xf32> -> vector<8x128xf32>
    %c0_83 = arith.constant 0 : index
    %c0_84 = arith.constant 0 : index
    %97 = vector.load %arg5[%c0_83, %c0_84] : memref<8x128xf32, #tpu.memory_space<vmem>>, vector<8x128xf32>
    %98 = arith.addf %96, %97 : vector<8x128xf32>
    %99 = math.tanh %98 : vector<8x128xf32>
    %c7 = arith.constant 7 : index
    %c0_85 = arith.constant 0 : index
    %c0_86 = arith.constant 0 : index
    %100 = vector.load %arg1[%c7, %c0_85, %c0_86] : memref<8x8x128xf32, #tpu.memory_space<vmem>>, vector<1x8x128xf32>
    %101 = vector.shape_cast %100 : vector<1x8x128xf32> to vector<8x128xf32>
    %102 = tpu.concatenate %101, %93 in 1 : vector<8x128xf32>, vector<8x128xf32> -> vector<8x256xf32>
    %c0_87 = arith.constant 0 : index
    %c0_88 = arith.constant 0 : index
    %103 = vector.load %arg2[%c0_87, %c0_88] : memref<256x128xf32, #tpu.memory_space<vmem>>, vector<256x128xf32>
    %cst_89 = arith.constant dense<0.000000e+00> : vector<8x128xf32>
    %104 = tpu.matmul %102, %103, %cst_89 {dimension_numbers = #tpu.dot_dimension_numbers<[1], [0], [0], [1], [0, 0, 1, 1], [], []>} : vector<8x256xf32>, vector<256x128xf32>, vector<8x128xf32> -> vector<8x128xf32>
    %c0_90 = arith.constant 0 : index
    %c0_91 = arith.constant 0 : index
    %105 = vector.load %arg3[%c0_90, %c0_91] : memref<8x128xf32, #tpu.memory_space<vmem>>, vector<8x128xf32>
    %106 = arith.addf %104, %105 : vector<8x128xf32>
    %107 = math.tanh %106 : vector<8x128xf32>
    %108 = tpu.concatenate %107, %99 in 1 : vector<8x128xf32>, vector<8x128xf32> -> vector<8x256xf32>
    %c0_92 = arith.constant 0 : index
    %c0_93 = arith.constant 0 : index
    %109 = vector.load %arg4[%c0_92, %c0_93] : memref<256x128xf32, #tpu.memory_space<vmem>>, vector<256x128xf32>
    %cst_94 = arith.constant dense<0.000000e+00> : vector<8x128xf32>
    %110 = tpu.matmul %108, %109, %cst_94 {dimension_numbers = #tpu.dot_dimension_numbers<[1], [0], [0], [1], [0, 0, 1, 1], [], []>} : vector<8x256xf32>, vector<256x128xf32>, vector<8x128xf32> -> vector<8x128xf32>
    %c0_95 = arith.constant 0 : index
    %c0_96 = arith.constant 0 : index
    %111 = vector.load %arg5[%c0_95, %c0_96] : memref<8x128xf32, #tpu.memory_space<vmem>>, vector<8x128xf32>
    %112 = arith.addf %110, %111 : vector<8x128xf32>
    %113 = math.tanh %112 : vector<8x128xf32>
    %c0_97 = arith.constant 0 : index
    %c0_98 = arith.constant 0 : index
    %114 = vector.load %arg6[%c0_97, %c0_98] : memref<128x128xf32, #tpu.memory_space<vmem>>, vector<128x128xf32>
    %cst_99 = arith.constant dense<0.000000e+00> : vector<8x128xf32>
    %115 = tpu.matmul %113, %114, %cst_99 {dimension_numbers = #tpu.dot_dimension_numbers<[1], [0], [0], [1], [0, 0, 1, 1], [], []>} : vector<8x128xf32>, vector<128x128xf32>, vector<8x128xf32> -> vector<8x128xf32>
    %c0_100 = arith.constant 0 : index
    %c0_101 = arith.constant 0 : index
    %116 = vector.load %arg7[%c0_100, %c0_101] : memref<128x128xf32, #tpu.memory_space<vmem>>, vector<128x128xf32>
    %cst_102 = arith.constant dense<0.000000e+00> : vector<8x128xf32>
    %117 = tpu.matmul %107, %116, %cst_102 {dimension_numbers = #tpu.dot_dimension_numbers<[1], [0], [0], [1], [0, 0, 1, 1], [], []>} : vector<8x128xf32>, vector<128x128xf32>, vector<8x128xf32> -> vector<8x128xf32>
    %118 = arith.addf %115, %117 : vector<8x128xf32>
    %c0_103 = arith.constant 0 : index
    %c0_104 = arith.constant 0 : index
    %119 = vector.load %arg8[%c0_103, %c0_104] : memref<8x128xf32, #tpu.memory_space<vmem>>, vector<8x128xf32>
    %120 = arith.addf %118, %119 : vector<8x128xf32>
    %121 = math.tanh %120 : vector<8x128xf32>
    %c0_105 = arith.constant 0 : index
    %c0_106 = arith.constant 0 : index
    %122 = vector.load %arg11[%c0_105, %c0_106] : memref<128x128xf32, #tpu.memory_space<vmem>>, vector<128x128xf32>
    %cst_107 = arith.constant dense<0.000000e+00> : vector<8x128xf32>
    %123 = tpu.matmul %121, %122, %cst_107 {dimension_numbers = #tpu.dot_dimension_numbers<[1], [0], [0], [1], [0, 0, 1, 1], [], []>} : vector<8x128xf32>, vector<128x128xf32>, vector<8x128xf32> -> vector<8x128xf32>
    %c0_108 = arith.constant 0 : index
    %c0_109 = arith.constant 0 : index
    %124 = vector.load %arg12[%c0_108, %c0_109] : memref<8x128xf32, #tpu.memory_space<vmem>>, vector<8x128xf32>
    %125 = arith.addf %123, %124 : vector<8x128xf32>
    %126 = math.tanh %125 : vector<8x128xf32>
    %c0_110 = arith.constant 0 : index
    %c0_111 = arith.constant 0 : index
    %127 = vector.load %arg13[%c0_110, %c0_111] : memref<128x128xf32, #tpu.memory_space<vmem>>, vector<128x128xf32>
    %cst_112 = arith.constant dense<0.000000e+00> : vector<8x128xf32>
    %128 = tpu.matmul %126, %127, %cst_112 {dimension_numbers = #tpu.dot_dimension_numbers<[1], [0], [0], [1], [0, 0, 1, 1], [], []>} : vector<8x128xf32>, vector<128x128xf32>, vector<8x128xf32> -> vector<8x128xf32>
    %c0_113 = arith.constant 0 : index
    %c0_114 = arith.constant 0 : index
    %129 = vector.load %arg14[%c0_113, %c0_114] : memref<8x128xf32, #tpu.memory_space<vmem>>, vector<8x128xf32>
    %130 = arith.addf %128, %129 : vector<8x128xf32>
    %c0_115 = arith.constant 0 : index
    %c0_116 = arith.constant 0 : index
    %c0_117 = arith.constant 0 : index
    %131 = vector.load %arg15[%c0_115, %c0_116, %c0_117] : memref<6x8x128xf32, #tpu.memory_space<vmem>>, vector<1x8x128xf32>
    %132 = vector.shape_cast %131 : vector<1x8x128xf32> to vector<8x128xf32>
    %133 = vector.shape_cast %130 : vector<8x128xf32> to vector<1x8x128xf32>
    tpu.vector_store %arg15[%c0_115, %c0_116, %c0_117], %133 {strides = array<i32>} : memref<6x8x128xf32, #tpu.memory_space<vmem>>, vector<1x8x128xf32>,
    %c0_118 = arith.constant 0 : index
    %c0_119 = arith.constant 0 : index
    %134 = vector.load %arg9[%c0_118, %c0_119] : memref<128x128xf32, #tpu.memory_space<vmem>>, vector<128x128xf32>
    %cst_120 = arith.constant dense<0.000000e+00> : vector<8x128xf32>
    %135 = tpu.matmul %126, %134, %cst_120 {dimension_numbers = #tpu.dot_dimension_numbers<[1], [0], [0], [1], [0, 0, 1, 1], [], []>} : vector<8x128xf32>, vector<128x128xf32>, vector<8x128xf32> -> vector<8x128xf32>
    %c0_121 = arith.constant 0 : index
    %c0_122 = arith.constant 0 : index
    %136 = vector.load %arg10[%c0_121, %c0_122] : memref<8x128xf32, #tpu.memory_space<vmem>>, vector<8x128xf32>
    %137 = arith.addf %135, %136 : vector<8x128xf32>
    %138 = math.tanh %137 : vector<8x128xf32>
    %c0_123 = arith.constant 0 : index
    %c0_124 = arith.constant 0 : index
    %139 = vector.load %arg11[%c0_123, %c0_124] : memref<128x128xf32, #tpu.memory_space<vmem>>, vector<128x128xf32>
    %cst_125 = arith.constant dense<0.000000e+00> : vector<8x128xf32>
    %140 = tpu.matmul %138, %139, %cst_125 {dimension_numbers = #tpu.dot_dimension_numbers<[1], [0], [0], [1], [0, 0, 1, 1], [], []>} : vector<8x128xf32>, vector<128x128xf32>, vector<8x128xf32> -> vector<8x128xf32>
    %c0_126 = arith.constant 0 : index
    %c0_127 = arith.constant 0 : index
    %141 = vector.load %arg12[%c0_126, %c0_127] : memref<8x128xf32, #tpu.memory_space<vmem>>, vector<8x128xf32>
    %142 = arith.addf %140, %141 : vector<8x128xf32>
    %143 = math.tanh %142 : vector<8x128xf32>
    %c0_128 = arith.constant 0 : index
    %c0_129 = arith.constant 0 : index
    %144 = vector.load %arg13[%c0_128, %c0_129] : memref<128x128xf32, #tpu.memory_space<vmem>>, vector<128x128xf32>
    %cst_130 = arith.constant dense<0.000000e+00> : vector<8x128xf32>
    %145 = tpu.matmul %143, %144, %cst_130 {dimension_numbers = #tpu.dot_dimension_numbers<[1], [0], [0], [1], [0, 0, 1, 1], [], []>} : vector<8x128xf32>, vector<128x128xf32>, vector<8x128xf32> -> vector<8x128xf32>
    %c0_131 = arith.constant 0 : index
    %c0_132 = arith.constant 0 : index
    %146 = vector.load %arg14[%c0_131, %c0_132] : memref<8x128xf32, #tpu.memory_space<vmem>>, vector<8x128xf32>
    %147 = arith.addf %145, %146 : vector<8x128xf32>
    %c1_133 = arith.constant 1 : index
    %c0_134 = arith.constant 0 : index
    %c0_135 = arith.constant 0 : index
    %148 = vector.load %arg15[%c1_133, %c0_134, %c0_135] : memref<6x8x128xf32, #tpu.memory_space<vmem>>, vector<1x8x128xf32>
    %149 = vector.shape_cast %148 : vector<1x8x128xf32> to vector<8x128xf32>
    %150 = vector.shape_cast %147 : vector<8x128xf32> to vector<1x8x128xf32>
    tpu.vector_store %arg15[%c1_133, %c0_134, %c0_135], %150 {strides = array<i32>} : memref<6x8x128xf32, #tpu.memory_space<vmem>>, vector<1x8x128xf32>,
    %c0_136 = arith.constant 0 : index
    %c0_137 = arith.constant 0 : index
    %151 = vector.load %arg9[%c0_136, %c0_137] : memref<128x128xf32, #tpu.memory_space<vmem>>, vector<128x128xf32>
    %cst_138 = arith.constant dense<0.000000e+00> : vector<8x128xf32>
    %152 = tpu.matmul %143, %151, %cst_138 {dimension_numbers = #tpu.dot_dimension_numbers<[1], [0], [0], [1], [0, 0, 1, 1], [], []>} : vector<8x128xf32>, vector<128x128xf32>, vector<8x128xf32> -> vector<8x128xf32>
    %c0_139 = arith.constant 0 : index
    %c0_140 = arith.constant 0 : index
    %153 = vector.load %arg10[%c0_139, %c0_140] : memref<8x128xf32, #tpu.memory_space<vmem>>, vector<8x128xf32>
    %154 = arith.addf %152, %153 : vector<8x128xf32>
    %155 = math.tanh %154 : vector<8x128xf32>
    %c0_141 = arith.constant 0 : index
    %c0_142 = arith.constant 0 : index
    %156 = vector.load %arg11[%c0_141, %c0_142] : memref<128x128xf32, #tpu.memory_space<vmem>>, vector<128x128xf32>
    %cst_143 = arith.constant dense<0.000000e+00> : vector<8x128xf32>
    %157 = tpu.matmul %155, %156, %cst_143 {dimension_numbers = #tpu.dot_dimension_numbers<[1], [0], [0], [1], [0, 0, 1, 1], [], []>} : vector<8x128xf32>, vector<128x128xf32>, vector<8x128xf32> -> vector<8x128xf32>
    %c0_144 = arith.constant 0 : index
    %c0_145 = arith.constant 0 : index
    %158 = vector.load %arg12[%c0_144, %c0_145] : memref<8x128xf32, #tpu.memory_space<vmem>>, vector<8x128xf32>
    %159 = arith.addf %157, %158 : vector<8x128xf32>
    %160 = math.tanh %159 : vector<8x128xf32>
    %c0_146 = arith.constant 0 : index
    %c0_147 = arith.constant 0 : index
    %161 = vector.load %arg13[%c0_146, %c0_147] : memref<128x128xf32, #tpu.memory_space<vmem>>, vector<128x128xf32>
    %cst_148 = arith.constant dense<0.000000e+00> : vector<8x128xf32>
    %162 = tpu.matmul %160, %161, %cst_148 {dimension_numbers = #tpu.dot_dimension_numbers<[1], [0], [0], [1], [0, 0, 1, 1], [], []>} : vector<8x128xf32>, vector<128x128xf32>, vector<8x128xf32> -> vector<8x128xf32>
    %c0_149 = arith.constant 0 : index
    %c0_150 = arith.constant 0 : index
    %163 = vector.load %arg14[%c0_149, %c0_150] : memref<8x128xf32, #tpu.memory_space<vmem>>, vector<8x128xf32>
    %164 = arith.addf %162, %163 : vector<8x128xf32>
    %c2_151 = arith.constant 2 : index
    %c0_152 = arith.constant 0 : index
    %c0_153 = arith.constant 0 : index
    %165 = vector.load %arg15[%c2_151, %c0_152, %c0_153] : memref<6x8x128xf32, #tpu.memory_space<vmem>>, vector<1x8x128xf32>
    %166 = vector.shape_cast %165 : vector<1x8x128xf32> to vector<8x128xf32>
    %167 = vector.shape_cast %164 : vector<8x128xf32> to vector<1x8x128xf32>
    tpu.vector_store %arg15[%c2_151, %c0_152, %c0_153], %167 {strides = array<i32>} : memref<6x8x128xf32, #tpu.memory_space<vmem>>, vector<1x8x128xf32>,
    %c0_154 = arith.constant 0 : index
    %c0_155 = arith.constant 0 : index
    %168 = vector.load %arg9[%c0_154, %c0_155] : memref<128x128xf32, #tpu.memory_space<vmem>>, vector<128x128xf32>
    %cst_156 = arith.constant dense<0.000000e+00> : vector<8x128xf32>
    %169 = tpu.matmul %160, %168, %cst_156 {dimension_numbers = #tpu.dot_dimension_numbers<[1], [0], [0], [1], [0, 0, 1, 1], [], []>} : vector<8x128xf32>, vector<128x128xf32>, vector<8x128xf32> -> vector<8x128xf32>
    %c0_157 = arith.constant 0 : index
    %c0_158 = arith.constant 0 : index
    %170 = vector.load %arg10[%c0_157, %c0_158] : memref<8x128xf32, #tpu.memory_space<vmem>>, vector<8x128xf32>
    %171 = arith.addf %169, %170 : vector<8x128xf32>
    %172 = math.tanh %171 : vector<8x128xf32>
    %c0_159 = arith.constant 0 : index
    %c0_160 = arith.constant 0 : index
    %173 = vector.load %arg11[%c0_159, %c0_160] : memref<128x128xf32, #tpu.memory_space<vmem>>, vector<128x128xf32>
    %cst_161 = arith.constant dense<0.000000e+00> : vector<8x128xf32>
    %174 = tpu.matmul %172, %173, %cst_161 {dimension_numbers = #tpu.dot_dimension_numbers<[1], [0], [0], [1], [0, 0, 1, 1], [], []>} : vector<8x128xf32>, vector<128x128xf32>, vector<8x128xf32> -> vector<8x128xf32>
    %c0_162 = arith.constant 0 : index
    %c0_163 = arith.constant 0 : index
    %175 = vector.load %arg12[%c0_162, %c0_163] : memref<8x128xf32, #tpu.memory_space<vmem>>, vector<8x128xf32>
    %176 = arith.addf %174, %175 : vector<8x128xf32>
    %177 = math.tanh %176 : vector<8x128xf32>
    %c0_164 = arith.constant 0 : index
    %c0_165 = arith.constant 0 : index
    %178 = vector.load %arg13[%c0_164, %c0_165] : memref<128x128xf32, #tpu.memory_space<vmem>>, vector<128x128xf32>
    %cst_166 = arith.constant dense<0.000000e+00> : vector<8x128xf32>
    %179 = tpu.matmul %177, %178, %cst_166 {dimension_numbers = #tpu.dot_dimension_numbers<[1], [0], [0], [1], [0, 0, 1, 1], [], []>} : vector<8x128xf32>, vector<128x128xf32>, vector<8x128xf32> -> vector<8x128xf32>
    %c0_167 = arith.constant 0 : index
    %c0_168 = arith.constant 0 : index
    %180 = vector.load %arg14[%c0_167, %c0_168] : memref<8x128xf32, #tpu.memory_space<vmem>>, vector<8x128xf32>
    %181 = arith.addf %179, %180 : vector<8x128xf32>
    %c3_169 = arith.constant 3 : index
    %c0_170 = arith.constant 0 : index
    %c0_171 = arith.constant 0 : index
    %182 = vector.load %arg15[%c3_169, %c0_170, %c0_171] : memref<6x8x128xf32, #tpu.memory_space<vmem>>, vector<1x8x128xf32>
    %183 = vector.shape_cast %182 : vector<1x8x128xf32> to vector<8x128xf32>
    %184 = vector.shape_cast %181 : vector<8x128xf32> to vector<1x8x128xf32>
    tpu.vector_store %arg15[%c3_169, %c0_170, %c0_171], %184 {strides = array<i32>} : memref<6x8x128xf32, #tpu.memory_space<vmem>>, vector<1x8x128xf32>,
    %c0_172 = arith.constant 0 : index
    %c0_173 = arith.constant 0 : index
    %185 = vector.load %arg9[%c0_172, %c0_173] : memref<128x128xf32, #tpu.memory_space<vmem>>, vector<128x128xf32>
    %cst_174 = arith.constant dense<0.000000e+00> : vector<8x128xf32>
    %186 = tpu.matmul %177, %185, %cst_174 {dimension_numbers = #tpu.dot_dimension_numbers<[1], [0], [0], [1], [0, 0, 1, 1], [], []>} : vector<8x128xf32>, vector<128x128xf32>, vector<8x128xf32> -> vector<8x128xf32>
    %c0_175 = arith.constant 0 : index
    %c0_176 = arith.constant 0 : index
    %187 = vector.load %arg10[%c0_175, %c0_176] : memref<8x128xf32, #tpu.memory_space<vmem>>, vector<8x128xf32>
    %188 = arith.addf %186, %187 : vector<8x128xf32>
    %189 = math.tanh %188 : vector<8x128xf32>
    %c0_177 = arith.constant 0 : index
    %c0_178 = arith.constant 0 : index
    %190 = vector.load %arg11[%c0_177, %c0_178] : memref<128x128xf32, #tpu.memory_space<vmem>>, vector<128x128xf32>
    %cst_179 = arith.constant dense<0.000000e+00> : vector<8x128xf32>
    %191 = tpu.matmul %189, %190, %cst_179 {dimension_numbers = #tpu.dot_dimension_numbers<[1], [0], [0], [1], [0, 0, 1, 1], [], []>} : vector<8x128xf32>, vector<128x128xf32>, vector<8x128xf32> -> vector<8x128xf32>
    %c0_180 = arith.constant 0 : index
    %c0_181 = arith.constant 0 : index
    %192 = vector.load %arg12[%c0_180, %c0_181] : memref<8x128xf32, #tpu.memory_space<vmem>>, vector<8x128xf32>
    %193 = arith.addf %191, %192 : vector<8x128xf32>
    %194 = math.tanh %193 : vector<8x128xf32>
    %c0_182 = arith.constant 0 : index
    %c0_183 = arith.constant 0 : index
    %195 = vector.load %arg13[%c0_182, %c0_183] : memref<128x128xf32, #tpu.memory_space<vmem>>, vector<128x128xf32>
    %cst_184 = arith.constant dense<0.000000e+00> : vector<8x128xf32>
    %196 = tpu.matmul %194, %195, %cst_184 {dimension_numbers = #tpu.dot_dimension_numbers<[1], [0], [0], [1], [0, 0, 1, 1], [], []>} : vector<8x128xf32>, vector<128x128xf32>, vector<8x128xf32> -> vector<8x128xf32>
    %c0_185 = arith.constant 0 : index
    %c0_186 = arith.constant 0 : index
    %197 = vector.load %arg14[%c0_185, %c0_186] : memref<8x128xf32, #tpu.memory_space<vmem>>, vector<8x128xf32>
    %198 = arith.addf %196, %197 : vector<8x128xf32>
    %c4_187 = arith.constant 4 : index
    %c0_188 = arith.constant 0 : index
    %c0_189 = arith.constant 0 : index
    %199 = vector.load %arg15[%c4_187, %c0_188, %c0_189] : memref<6x8x128xf32, #tpu.memory_space<vmem>>, vector<1x8x128xf32>
    %200 = vector.shape_cast %199 : vector<1x8x128xf32> to vector<8x128xf32>
    %201 = vector.shape_cast %198 : vector<8x128xf32> to vector<1x8x128xf32>
    tpu.vector_store %arg15[%c4_187, %c0_188, %c0_189], %201 {strides = array<i32>} : memref<6x8x128xf32, #tpu.memory_space<vmem>>, vector<1x8x128xf32>,
    %c0_190 = arith.constant 0 : index
    %c0_191 = arith.constant 0 : index
    %202 = vector.load %arg9[%c0_190, %c0_191] : memref<128x128xf32, #tpu.memory_space<vmem>>, vector<128x128xf32>
    %cst_192 = arith.constant dense<0.000000e+00> : vector<8x128xf32>
    %203 = tpu.matmul %194, %202, %cst_192 {dimension_numbers = #tpu.dot_dimension_numbers<[1], [0], [0], [1], [0, 0, 1, 1], [], []>} : vector<8x128xf32>, vector<128x128xf32>, vector<8x128xf32> -> vector<8x128xf32>
    %c0_193 = arith.constant 0 : index
    %c0_194 = arith.constant 0 : index
    %204 = vector.load %arg10[%c0_193, %c0_194] : memref<8x128xf32, #tpu.memory_space<vmem>>, vector<8x128xf32>
    %205 = arith.addf %203, %204 : vector<8x128xf32>
    %206 = math.tanh %205 : vector<8x128xf32>
    %c0_195 = arith.constant 0 : index
    %c0_196 = arith.constant 0 : index
    %207 = vector.load %arg11[%c0_195, %c0_196] : memref<128x128xf32, #tpu.memory_space<vmem>>, vector<128x128xf32>
    %cst_197 = arith.constant dense<0.000000e+00> : vector<8x128xf32>
    %208 = tpu.matmul %206, %207, %cst_197 {dimension_numbers = #tpu.dot_dimension_numbers<[1], [0], [0], [1], [0, 0, 1, 1], [], []>} : vector<8x128xf32>, vector<128x128xf32>, vector<8x128xf32> -> vector<8x128xf32>
    %c0_198 = arith.constant 0 : index
    %c0_199 = arith.constant 0 : index
    %209 = vector.load %arg12[%c0_198, %c0_199] : memref<8x128xf32, #tpu.memory_space<vmem>>, vector<8x128xf32>
    %210 = arith.addf %208, %209 : vector<8x128xf32>
    %211 = math.tanh %210 : vector<8x128xf32>
    %c0_200 = arith.constant 0 : index
    %c0_201 = arith.constant 0 : index
    %212 = vector.load %arg13[%c0_200, %c0_201] : memref<128x128xf32, #tpu.memory_space<vmem>>, vector<128x128xf32>
    %cst_202 = arith.constant dense<0.000000e+00> : vector<8x128xf32>
    %213 = tpu.matmul %211, %212, %cst_202 {dimension_numbers = #tpu.dot_dimension_numbers<[1], [0], [0], [1], [0, 0, 1, 1], [], []>} : vector<8x128xf32>, vector<128x128xf32>, vector<8x128xf32> -> vector<8x128xf32>
    %c0_203 = arith.constant 0 : index
    %c0_204 = arith.constant 0 : index
    %214 = vector.load %arg14[%c0_203, %c0_204] : memref<8x128xf32, #tpu.memory_space<vmem>>, vector<8x128xf32>
    %215 = arith.addf %213, %214 : vector<8x128xf32>
    %c5_205 = arith.constant 5 : index
    %c0_206 = arith.constant 0 : index
    %c0_207 = arith.constant 0 : index
    %216 = vector.load %arg15[%c5_205, %c0_206, %c0_207] : memref<6x8x128xf32, #tpu.memory_space<vmem>>, vector<1x8x128xf32>
    %217 = vector.shape_cast %216 : vector<1x8x128xf32> to vector<8x128xf32>
    %218 = vector.shape_cast %215 : vector<8x128xf32> to vector<1x8x128xf32>
    tpu.vector_store %arg15[%c5_205, %c0_206, %c0_207], %218 {strides = array<i32>} : memref<6x8x128xf32, #tpu.memory_space<vmem>>, vector<1x8x128xf32>,
    return
  }
  func.func @transform_0(%arg0: i32) -> (i32, i32, i32) {
    %c0_i32 = arith.constant 0 : i32
    %c0_i32_0 = arith.constant 0 : i32
    %c0_i32_1 = arith.constant 0 : i32
    return %c0_i32, %arg0, %c0_i32_0 : i32, i32, i32
  }
  func.func @transform_1(%arg0: i32) -> (i32, i32) {
    %c0_i32 = arith.constant 0 : i32
    %c0_i32_0 = arith.constant 0 : i32
    %c0_i32_1 = arith.constant 0 : i32
    return %c0_i32, %c0_i32_0 : i32, i32
  }
  func.func @transform_2(%arg0: i32) -> (i32, i32) {
    %c0_i32 = arith.constant 0 : i32
    %c0_i32_0 = arith.constant 0 : i32
    %c0_i32_1 = arith.constant 0 : i32
    return %c0_i32, %c0_i32_0 : i32, i32
  }
  func.func @transform_3(%arg0: i32) -> (i32, i32) {
    %c0_i32 = arith.constant 0 : i32
    %c0_i32_0 = arith.constant 0 : i32
    %c0_i32_1 = arith.constant 0 : i32
    return %c0_i32, %c0_i32_0 : i32, i32
  }
  func.func @transform_4(%arg0: i32) -> (i32, i32) {
    %c0_i32 = arith.constant 0 : i32
    %c0_i32_0 = arith.constant 0 : i32
    %c0_i32_1 = arith.constant 0 : i32
    return %c0_i32, %c0_i32_0 : i32, i32
  }
  func.func @transform_5(%arg0: i32) -> (i32, i32) {
    %c0_i32 = arith.constant 0 : i32
    %c0_i32_0 = arith.constant 0 : i32
    %c0_i32_1 = arith.constant 0 : i32
    return %c0_i32, %c0_i32_0 : i32, i32
  }
  func.func @transform_6(%arg0: i32) -> (i32, i32) {
    %c0_i32 = arith.constant 0 : i32
    %c0_i32_0 = arith.constant 0 : i32
    %c0_i32_1 = arith.constant 0 : i32
    return %c0_i32, %c0_i32_0 : i32, i32
  }
  func.func @transform_7(%arg0: i32) -> (i32, i32) {
    %c0_i32 = arith.constant 0 : i32
    %c0_i32_0 = arith.constant 0 : i32
    %c0_i32_1 = arith.constant 0 : i32
    return %c0_i32, %c0_i32_0 : i32, i32
  }
  func.func @transform_8(%arg0: i32) -> (i32, i32) {
    %c0_i32 = arith.constant 0 : i32
    %c0_i32_0 = arith.constant 0 : i32
    %c0_i32_1 = arith.constant 0 : i32
    return %c0_i32, %c0_i32_0 : i32, i32
  }
  func.func @transform_9(%arg0: i32) -> (i32, i32) {
    %c0_i32 = arith.constant 0 : i32
    %c0_i32_0 = arith.constant 0 : i32
    %c0_i32_1 = arith.constant 0 : i32
    return %c0_i32, %c0_i32_0 : i32, i32
  }
  func.func @transform_10(%arg0: i32) -> (i32, i32) {
    %c0_i32 = arith.constant 0 : i32
    %c0_i32_0 = arith.constant 0 : i32
    %c0_i32_1 = arith.constant 0 : i32
    return %c0_i32, %c0_i32_0 : i32, i32
  }
  func.func @transform_11(%arg0: i32) -> (i32, i32) {
    %c0_i32 = arith.constant 0 : i32
    %c0_i32_0 = arith.constant 0 : i32
    %c0_i32_1 = arith.constant 0 : i32
    return %c0_i32, %c0_i32_0 : i32, i32
  }
  func.func @transform_12(%arg0: i32) -> (i32, i32) {
    %c0_i32 = arith.constant 0 : i32
    %c0_i32_0 = arith.constant 0 : i32
    %c0_i32_1 = arith.constant 0 : i32
    return %c0_i32, %c0_i32_0 : i32, i32
  }
  func.func @transform_13(%arg0: i32) -> (i32, i32) {
    %c0_i32 = arith.constant 0 : i32
    %c0_i32_0 = arith.constant 0 : i32
    %c0_i32_1 = arith.constant 0 : i32
    return %c0_i32, %c0_i32_0 : i32, i32
  }
  func.func @transform_14(%arg0: i32) -> (i32, i32, i32) {
    %c0_i32 = arith.constant 0 : i32
    %c0_i32_0 = arith.constant 0 : i32
    %c0_i32_1 = arith.constant 0 : i32
    return %c0_i32, %arg0, %c0_i32_0 : i32, i32, i32
  }
}

</mosaic_0001>

<llo_original>
// kernel: tpu_custom_call.1
$region0: #{tpu_custom_call.1}
  #allocation0 [shape = 'u32[]', space=smem, size = 0x4, offset = 0x4, fixed_abs, tag = 'smem constant byte address 0x4 - core index']
  #allocation1 [shape = 'u32[144,128]{1,0:T(1,128)}', space=vmem, size = 0x12000, scoped, tag = 'internal scratch']
  %s0 = inlined_call_operand.hbm [shape: f32[8,8,128], index: 0, kind: input, shape index: {}]
  %s1 = inlined_call_operand.hbm [shape: f32[256,128], index: 1, kind: input, shape index: {}]
  %s2 = inlined_call_operand.hbm [shape: f32[8,128], index: 2, kind: input, shape index: {}]
  %s3 = inlined_call_operand.hbm [shape: f32[256,128], index: 3, kind: input, shape index: {}]
  %s4 = inlined_call_operand.vmem [shape: f32[8,128], index: 4, kind: input, shape index: {}]
  %s5 = inlined_call_operand.hbm [shape: f32[128,128], index: 5, kind: input, shape index: {}]
  %s6 = inlined_call_operand.hbm [shape: f32[128,128], index: 6, kind: input, shape index: {}]
  %s7 = inlined_call_operand.vmem [shape: f32[8,128], index: 7, kind: input, shape index: {}]
  %s8 = inlined_call_operand.hbm [shape: f32[128,128], index: 8, kind: input, shape index: {}]
  %s9 = inlined_call_operand.vmem [shape: f32[8,128], index: 9, kind: input, shape index: {}]
  %s10 = inlined_call_operand.hbm [shape: f32[128,128], index: 10, kind: input, shape index: {}]
  %s11 = inlined_call_operand.vmem [shape: f32[8,128], index: 11, kind: input, shape index: {}]
  %s12 = inlined_call_operand.hbm [shape: f32[128,128], index: 12, kind: input, shape index: {}]
  %s13 = inlined_call_operand.vmem [shape: f32[8,128], index: 13, kind: input, shape index: {}]
  %s14 = inlined_call_operand.hbm [shape: f32[6,8,128], index: 14, kind: output, shape index: {}]
  %s15 = sld [smem:[#allocation0]]
  $region102: #{tpu_custom_call.1} parent=0
    _
  %s17 = ssub.s32 1, %s15
  %s18 = scalar_select 0, %s17, %s15
  $region1: #{tpu_custom_call.1} parent=0
    #allocation2 [shape = 'u8[32768]{0}', space=vmem, size = 0x8000, scoped, tag = 'input window, operand 0, single buffered']
    #allocation3 [shape = 's32[1]{0}', space=sflag, size = 0x4, scoped, tag = 'scoped memory for tpu_custom_call.1']
    #allocation4 [shape = 's32[1]{0}', space=sflag, size = 0x4, scoped, tag = 'scoped memory for tpu_custom_call.1']
    #allocation5 [shape = 'u8[131072]{0}', space=vmem, size = 0x20000, scoped, tag = 'input window, operand 1, single buffered']
    #allocation6 [shape = 's32[1]{0}', space=sflag, size = 0x4, scoped, tag = 'scoped memory for tpu_custom_call.1']
    #allocation7 [shape = 'u8[4096]{0}', space=vmem, size = 0x1000, scoped, tag = 'input window, operand 2, single buffered']
    #allocation8 [shape = 'u8[131072]{0}', space=vmem, size = 0x20000, scoped, tag = 'input window, operand 3, single buffered']
    #allocation9 [shape = 's32[1]{0}', space=sflag, size = 0x4, scoped, tag = 'scoped memory for tpu_custom_call.1']
    #allocation10 [shape = 'u8[65536]{0}', space=vmem, size = 0x10000, scoped, tag = 'input window, operand 5, single buffered']
    #allocation11 [shape = 'u8[65536]{0}', space=vmem, size = 0x10000, scoped, tag = 'input window, operand 6, single buffered']
    #allocation12 [shape = 's32[1]{0}', space=sflag, size = 0x4, scoped, tag = 'scoped memory for tpu_custom_call.1']
    #allocation13 [shape = 'u8[65536]{0}', space=vmem, size = 0x10000, scoped, tag = 'input window, operand 8, single buffered']
    #allocation14 [shape = 'u8[65536]{0}', space=vmem, size = 0x10000, scoped, tag = 'input window, operand 10, single buffered']
    #allocation15 [shape = 's32[1]{0}', space=sflag, size = 0x4, scoped, tag = 'scoped memory for tpu_custom_call.1']
    #allocation16 [shape = 'u8[65536]{0}', space=vmem, size = 0x10000, scoped, tag = 'input window, operand 12, single buffered']
    #allocation17 [shape = 'u8[24576]{0}', space=vmem, size = 0x6000, scoped, tag = 'output window, operand 0, single buffered']
    %19 = vsyncpa [#allocation3], 0
    %20 = vsyncpa [#allocation6], 0
    %21 = vsyncpa [#allocation9], 0
    %22 = vsyncpa [#allocation12], 0
    %23 = vsyncpa [#allocation15], 0
    %24 = vsyncpa [#allocation4], 0
    // Predicated region
    $region2: #{tpu_custom_call.1} parent=1 // pred_check
      _
    $region3: #{tpu_custom_call.1} parent=1 // pred_check_branch
      %26 = sbr.rel (0) target = $region5
    $region4: #{tpu_custom_call.1} parent=1 // pred_region
      %s28 = ssub.s32 1024, 1024
      %29 = vsyncadd [#allocation3], %s28
      %s30 = sshll.u32 [#allocation2], 4
      %s31 = int_to_ptr.vmem [resolvable:$true] %s30
      %36 = dma.hbm_to_vmem [thread:$0]  %s0, 1024, %s31, [#allocation3], 128, 128, 8
    $region5: #{tpu_custom_call.1} parent=1 // pred_fallthru
      _
    // Predicated region
    $region6: #{tpu_custom_call.1} parent=1 // pred_check
      _
    $region7: #{tpu_custom_call.1} parent=1 // pred_check_branch
      %38 = sbr.rel (0) target = $region9
    $region8: #{tpu_custom_call.1} parent=1 // pred_region
      %s40 = ssub.s32 4096, 4096
      %41 = vsyncadd [#allocation6], %s40
      %s42 = sshll.u32 [#allocation5], 4
      %s43 = int_to_ptr.vmem [resolvable:$true] %s42
      %48 = dma.hbm_to_vmem [thread:$0]  %s1, 4096, %s43, [#allocation6], 128, 128, 8
    $region9: #{tpu_custom_call.1} parent=1 // pred_fallthru
      _
    // Predicated region
    $region10: #{tpu_custom_call.1} parent=1 // pred_check
      _
    $region11: #{tpu_custom_call.1} parent=1 // pred_check_branch
      %50 = sbr.rel (0) target = $region13
    $region12: #{tpu_custom_call.1} parent=1 // pred_region
      %s52 = ssub.s32 128, 128
      %53 = vsyncadd [#allocation6], %s52
      %s55 = sshll.u32 [#allocation7], 4
      %s56 = int_to_ptr.vmem [resolvable:$true] %s55
      %58 = dma.hbm_to_vmem [thread:$0]  %s2, 128, %s56, [#allocation6]
    $region13: #{tpu_custom_call.1} parent=1 // pred_fallthru
      _
    // Predicated region
    $region14: #{tpu_custom_call.1} parent=1 // pred_check
      _
    $region15: #{tpu_custom_call.1} parent=1 // pred_check_branch
      %60 = sbr.rel (0) target = $region17
    $region16: #{tpu_custom_call.1} parent=1 // pred_region
      %s62 = ssub.s32 4096, 4096
      %63 = vsyncadd [#allocation9], %s62
      %s64 = sshll.u32 [#allocation8], 4
      %s65 = int_to_ptr.vmem [resolvable:$true] %s64
      %70 = dma.hbm_to_vmem [thread:$0]  %s3, 4096, %s65, [#allocation9], 128, 128, 8
    $region17: #{tpu_custom_call.1} parent=1 // pred_fallthru
      _
    // Predicated region
    $region18: #{tpu_custom_call.1} parent=1 // pred_check
      _
    $region19: #{tpu_custom_call.1} parent=1 // pred_check_branch
      %72 = sbr.rel (0) target = $region21
    $region20: #{tpu_custom_call.1} parent=1 // pred_region
      _
    $region21: #{tpu_custom_call.1} parent=1 // pred_fallthru
      _
    // Predicated region
    $region22: #{tpu_custom_call.1} parent=1 // pred_check
      _
    $region23: #{tpu_custom_call.1} parent=1 // pred_check_branch
      %74 = sbr.rel (0) target = $region25
    $region24: #{tpu_custom_call.1} parent=1 // pred_region
      %s76 = ssub.s32 2048, 2048
      %77 = vsyncadd [#allocation9], %s76
      %s78 = sshll.u32 [#allocation10], 4
      %s79 = int_to_ptr.vmem [resolvable:$true] %s78
      %84 = dma.hbm_to_vmem [thread:$0]  %s5, 2048, %s79, [#allocation9], 128, 128, 8
    $region25: #{tpu_custom_call.1} parent=1 // pred_fallthru
      _
    // Predicated region
    $region26: #{tpu_custom_call.1} parent=1 // pred_check
      _
    $region27: #{tpu_custom_call.1} parent=1 // pred_check_branch
      %86 = sbr.rel (0) target = $region29
    $region28: #{tpu_custom_call.1} parent=1 // pred_region
      %s88 = ssub.s32 2048, 2048
      %89 = vsyncadd [#allocation12], %s88
      %s90 = sshll.u32 [#allocation11], 4
      %s91 = int_to_ptr.vmem [resolvable:$true] %s90
      %96 = dma.hbm_to_vmem [thread:$0]  %s6, 2048, %s91, [#allocation12], 128, 128, 8
    $region29: #{tpu_custom_call.1} parent=1 // pred_fallthru
      _
    // Predicated region
    $region30: #{tpu_custom_call.1} parent=1 // pred_check
      _
    $region31: #{tpu_custom_call.1} parent=1 // pred_check_branch
      %98 = sbr.rel (0) target = $region33
    $region32: #{tpu_custom_call.1} parent=1 // pred_region
      _
    $region33: #{tpu_custom_call.1} parent=1 // pred_fallthru
      _
    // Predicated region
    $region34: #{tpu_custom_call.1} parent=1 // pred_check
      _
    $region35: #{tpu_custom_call.1} parent=1 // pred_check_branch
      %100 = sbr.rel (0) target = $region37
    $region36: #{tpu_custom_call.1} parent=1 // pred_region
      %s102 = ssub.s32 2048, 2048
      %103 = vsyncadd [#allocation12], %s102
      %s104 = sshll.u32 [#allocation13], 4
      %s105 = int_to_ptr.vmem [resolvable:$true] %s104
      %110 = dma.hbm_to_vmem [thread:$0]  %s8, 2048, %s105, [#allocation12], 128, 128, 8
    $region37: #{tpu_custom_call.1} parent=1 // pred_fallthru
      _
    // Predicated region
    $region38: #{tpu_custom_call.1} parent=1 // pred_check
      _
    $region39: #{tpu_custom_call.1} parent=1 // pred_check_branch
      %112 = sbr.rel (0) target = $region41
    $region40: #{tpu_custom_call.1} parent=1 // pred_region
      _
    $region41: #{tpu_custom_call.1} parent=1 // pred_fallthru
      _
    // Predicated region
    $region42: #{tpu_custom_call.1} parent=1 // pred_check
      _
    $region43: #{tpu_custom_call.1} parent=1 // pred_check_branch
      %114 = sbr.rel (0) target = $region45
    $region44: #{tpu_custom_call.1} parent=1 // pred_region
      %s116 = ssub.s32 2048, 2048
      %117 = vsyncadd [#allocation15], %s116
      %s118 = sshll.u32 [#allocation14], 4
      %s119 = int_to_ptr.vmem [resolvable:$true] %s118
      %124 = dma.hbm_to_vmem [thread:$0]  %s10, 2048, %s119, [#allocation15], 128, 128, 8
    $region45: #{tpu_custom_call.1} parent=1 // pred_fallthru
      _
    // Predicated region
    $region46: #{tpu_custom_call.1} parent=1 // pred_check
      _
    $region47: #{tpu_custom_call.1} parent=1 // pred_check_branch
      %126 = sbr.rel (0) target = $region49
    $region48: #{tpu_custom_call.1} parent=1 // pred_region
      _
    $region49: #{tpu_custom_call.1} parent=1 // pred_fallthru
      _
    // Predicated region
    $region50: #{tpu_custom_call.1} parent=1 // pred_check
      _
    $region51: #{tpu_custom_call.1} parent=1 // pred_check_branch
      %128 = sbr.rel (0) target = $region53
    $region52: #{tpu_custom_call.1} parent=1 // pred_region
      %s130 = ssub.s32 2048, 2048
      %131 = vsyncadd [#allocation15], %s130
      %s132 = sshll.u32 [#allocation16], 4
      %s133 = int_to_ptr.vmem [resolvable:$true] %s132
      %138 = dma.hbm_to_vmem [thread:$0]  %s12, 2048, %s133, [#allocation15], 128, 128, 8
    $region53: #{tpu_custom_call.1} parent=1 // pred_fallthru
      _
    // Predicated region
    $region54: #{tpu_custom_call.1} parent=1 // pred_check
      _
    $region55: #{tpu_custom_call.1} parent=1 // pred_check_branch
      %140 = sbr.rel (0) target = $region57
    $region56: #{tpu_custom_call.1} parent=1 // pred_region
      _
    $region57: #{tpu_custom_call.1} parent=1 // pred_fallthru
      _
    // Predicated region
    $region58: #{tpu_custom_call.1} parent=1 // pred_check
      _
    $region59: #{tpu_custom_call.1} parent=1 // pred_check_branch
      %142 = sbr.rel (0) target = $region61
    $region60: #{tpu_custom_call.1} parent=1 // pred_region
      %143 = dma.done [#allocation3], 1024
    $region61: #{tpu_custom_call.1} parent=1 // pred_fallthru
      _
    // Predicated region
    $region62: #{tpu_custom_call.1} parent=1 // pred_check
      _
    $region63: #{tpu_custom_call.1} parent=1 // pred_check_branch
      %145 = sbr.rel (0) target = $region65
    $region64: #{tpu_custom_call.1} parent=1 // pred_region
      %146 = dma.done [#allocation6], 4096
    $region65: #{tpu_custom_call.1} parent=1 // pred_fallthru
      _
    // Predicated region
    $region66: #{tpu_custom_call.1} parent=1 // pred_check
      _
    $region67: #{tpu_custom_call.1} parent=1 // pred_check_branch
      %148 = sbr.rel (0) target = $region69
    $region68: #{tpu_custom_call.1} parent=1 // pred_region
      %149 = dma.done [#allocation6], 128
    $region69: #{tpu_custom_call.1} parent=1 // pred_fallthru
      _
    // Predicated region
    $region70: #{tpu_custom_call.1} parent=1 // pred_check
      _
    $region71: #{tpu_custom_call.1} parent=1 // pred_check_branch
      %151 = sbr.rel (0) target = $region73
    $region72: #{tpu_custom_call.1} parent=1 // pred_region
      %152 = dma.done [#allocation9], 4096
    $region73: #{tpu_custom_call.1} parent=1 // pred_fallthru
      _
    // Predicated region
    $region74: #{tpu_custom_call.1} parent=1 // pred_check
      _
    $region75: #{tpu_custom_call.1} parent=1 // pred_check_branch
      %154 = sbr.rel (0) target = $region77
    $region76: #{tpu_custom_call.1} parent=1 // pred_region
      %155 = dma.done [#allocation9], 2048
    $region77: #{tpu_custom_call.1} parent=1 // pred_fallthru
      _
    // Predicated region
    $region78: #{tpu_custom_call.1} parent=1 // pred_check
      _
    $region79: #{tpu_custom_call.1} parent=1 // pred_check_branch
      %157 = sbr.rel (0) target = $region81
    $region80: #{tpu_custom_call.1} parent=1 // pred_region
      %158 = dma.done [#allocation12], 2048
    $region81: #{tpu_custom_call.1} parent=1 // pred_fallthru
      _
    // Predicated region
    $region82: #{tpu_custom_call.1} parent=1 // pred_check
      _
    $region83: #{tpu_custom_call.1} parent=1 // pred_check_branch
      %160 = sbr.rel (0) target = $region85
    $region84: #{tpu_custom_call.1} parent=1 // pred_region
      %161 = dma.done [#allocation12], 2048
    $region85: #{tpu_custom_call.1} parent=1 // pred_fallthru
      _
    // Predicated region
    $region86: #{tpu_custom_call.1} parent=1 // pred_check
      _
    $region87: #{tpu_custom_call.1} parent=1 // pred_check_branch
      %163 = sbr.rel (0) target = $region89
    $region88: #{tpu_custom_call.1} parent=1 // pred_region
      %164 = dma.done [#allocation15], 2048
    $region89: #{tpu_custom_call.1} parent=1 // pred_fallthru
      _
    // Predicated region
    $region90: #{tpu_custom_call.1} parent=1 // pred_check
      _
    $region91: #{tpu_custom_call.1} parent=1 // pred_check_branch
      %166 = sbr.rel (0) target = $region93
    $region92: #{tpu_custom_call.1} parent=1 // pred_region
      %167 = dma.done [#allocation15], 2048
    $region93: #{tpu_custom_call.1} parent=1 // pred_fallthru
      _
    %v168 = vld [vmem:[#allocation2] sm:$0xff]
    %v169 = vld [vmem:[#allocation5] sm:$0xff]
    %v170 = vld [vmem:[#allocation5 + $0x8] sm:$0xff]
    %v171 = vld [vmem:[#allocation5 + $0x10] sm:$0xff]
    %v172 = vld [vmem:[#allocation5 + $0x18] sm:$0xff]
    %v173 = vld [vmem:[#allocation5 + $0x20] sm:$0xff]
    %v174 = vld [vmem:[#allocation5 + $0x28] sm:$0xff]
    %v175 = vld [vmem:[#allocation5 + $0x30] sm:$0xff]
    %v176 = vld [vmem:[#allocation5 + $0x38] sm:$0xff]
    %v177 = vld [vmem:[#allocation5 + $0x40] sm:$0xff]
    %v178 = vld [vmem:[#allocation5 + $0x48] sm:$0xff]
    %v179 = vld [vmem:[#allocation5 + $0x50] sm:$0xff]
    %v180 = vld [vmem:[#allocation5 + $0x58] sm:$0xff]
    %v181 = vld [vmem:[#allocation5 + $0x60] sm:$0xff]
    %v182 = vld [vmem:[#allocation5 + $0x68] sm:$0xff]
    %v183 = vld [vmem:[#allocation5 + $0x70] sm:$0xff]
    %v184 = vld [vmem:[#allocation5 + $0x78] sm:$0xff]
    %v185 = vld [vmem:[#allocation5 + $0x80] sm:$0xff]
    %v186 = vld [vmem:[#allocation5 + $0x88] sm:$0xff]
    %v187 = vld [vmem:[#allocation5 + $0x90] sm:$0xff]
    %v188 = vld [vmem:[#allocation5 + $0x98] sm:$0xff]
    %v189 = vld [vmem:[#allocation5 + $0xa0] sm:$0xff]
    %v190 = vld [vmem:[#allocation5 + $0xa8] sm:$0xff]
    %v191 = vld [vmem:[#allocation5 + $0xb0] sm:$0xff]
    %v192 = vld [vmem:[#allocation5 + $0xb8] sm:$0xff]
    %v193 = vld [vmem:[#allocation5 + $0xc0] sm:$0xff]
    %v194 = vld [vmem:[#allocation5 + $0xc8] sm:$0xff]
    %v195 = vld [vmem:[#allocation5 + $0xd0] sm:$0xff]
    %v196 = vld [vmem:[#allocation5 + $0xd8] sm:$0xff]
    %v197 = vld [vmem:[#allocation5 + $0xe0] sm:$0xff]
    %v198 = vld [vmem:[#allocation5 + $0xe8] sm:$0xff]
    %v199 = vld [vmem:[#allocation5 + $0xf0] sm:$0xff]
    %v200 = vld [vmem:[#allocation5 + $0xf8] sm:$0xff]
    %v201 = vld [vmem:[#allocation7] sm:$0xff]
    %202 = vmatprep.subr.mxu0 0.0
    %203 = vmatpush1.msra.mxu0 %v169
    %204 = vmatprep.subr.mxu0 0.0
    %205 = vmatpush1.msra.mxu0 %v170
    %206 = vmatprep.subr.mxu0 0.0
    %207 = vmatpush1.msra.mxu0 %v171
    %208 = vmatprep.subr.mxu0 0.0
    %209 = vmatpush1.msra.mxu0 %v172
    %210 = vmatprep.subr.mxu0 0.0
    %211 = vmatpush1.msra.mxu0 %v173
    %212 = vmatprep.subr.mxu0 0.0
    %213 = vmatpush1.msra.mxu0 %v174
    %214 = vmatprep.subr.mxu0 0.0
    %215 = vmatpush1.msra.mxu0 %v175
    %216 = vmatprep.subr.mxu0 0.0
    %217 = vmatpush1.msra.mxu0 %v176
    %218 = vmatprep.subr.mxu0 0.0
    %219 = vmatpush1.msra.mxu0 %v177
    %220 = vmatprep.subr.mxu0 0.0
    %221 = vmatpush1.msra.mxu0 %v178
    %222 = vmatprep.subr.mxu0 0.0
    %223 = vmatpush1.msra.mxu0 %v179
    %224 = vmatprep.subr.mxu0 0.0
    %225 = vmatpush1.msra.mxu0 %v180
    %226 = vmatprep.subr.mxu0 0.0
    %227 = vmatpush1.msra.mxu0 %v181
    %228 = vmatprep.subr.mxu0 0.0
    %229 = vmatpush1.msra.mxu0 %v182
    %230 = vmatprep.subr.mxu0 0.0
    %231 = vmatpush1.msra.mxu0 %v183
    %232 = vmatprep.subr.mxu0 0.0
    %233 = vmatpush1.msra.mxu0 %v184
    %234 = vmatprep.subr.mxu0 0.0
    %235 = vmatpush1.msra.mxu0 %v185
    %236 = vmatprep.subr.mxu0 0.0
    %237 = vmatpush1.msra.mxu0 %v186
    %238 = vmatprep.subr.mxu0 0.0
    %239 = vmatpush1.msra.mxu0 %v187
    %240 = vmatprep.subr.mxu0 0.0
    %241 = vmatpush1.msra.mxu0 %v188
    %242 = vmatprep.subr.mxu0 0.0
    %243 = vmatpush1.msra.mxu0 %v189
    %244 = vmatprep.subr.mxu0 0.0
    %245 = vmatpush1.msra.mxu0 %v190
    %246 = vmatprep.subr.mxu0 0.0
    %247 = vmatpush1.msra.mxu0 %v191
    %248 = vmatprep.subr.mxu0 0.0
    %249 = vmatpush1.msra.mxu0 %v192
    %250 = vmatprep.subr.mxu0 0.0
    %251 = vmatpush1.msra.mxu0 %v193
    %252 = vmatprep.subr.mxu0 0.0
    %253 = vmatpush1.msra.mxu0 %v194
    %254 = vmatprep.subr.mxu0 0.0
    %255 = vmatpush1.msra.mxu0 %v195
    %256 = vmatprep.subr.mxu0 0.0
    %257 = vmatpush1.msra.mxu0 %v196
    %258 = vmatprep.subr.mxu0 0.0
    %259 = vmatpush1.msra.mxu0 %v197
    %260 = vmatprep.subr.mxu0 0.0
    %261 = vmatpush1.msra.mxu0 %v198
    %262 = vmatprep.subr.mxu0 0.0
    %263 = vmatpush1.msra.mxu0 %v199
    %264 = vmatprep.subr.mxu0 0.0
    %265 = vmatpush1.msra.mxu0 %v200
    %266 = vmatprep.mubr.f32.mxu0 0.0
    %267 = vmatmul.mubr.f32.gmra.mrb[0].mxu0 %v168
    %v268 = vpop.f32.mrb[0].mxu0
    %v269 = vadd.f32 %v201, %v268
    %v270 = vpop.f32.mrb[0].mxu0
    %271 = vdwg.mxu0
    %v272 = vtanh.pop %v269
    %v273 = vld [vmem:[#allocation8] sm:$0xff]
    %v274 = vld [vmem:[#allocation8 + $0x8] sm:$0xff]
    %v275 = vld [vmem:[#allocation8 + $0x10] sm:$0xff]
    %v276 = vld [vmem:[#allocation8 + $0x18] sm:$0xff]
    %v277 = vld [vmem:[#allocation8 + $0x20] sm:$0xff]
    %v278 = vld [vmem:[#allocation8 + $0x28] sm:$0xff]
    %v279 = vld [vmem:[#allocation8 + $0x30] sm:$0xff]
    %v280 = vld [vmem:[#allocation8 + $0x38] sm:$0xff]
    %v281 = vld [vmem:[#allocation8 + $0x40] sm:$0xff]
    %v282 = vld [vmem:[#allocation8 + $0x48] sm:$0xff]
    %v283 = vld [vmem:[#allocation8 + $0x50] sm:$0xff]
    %v284 = vld [vmem:[#allocation8 + $0x58] sm:$0xff]
    %v285 = vld [vmem:[#allocation8 + $0x60] sm:$0xff]
    %v286 = vld [vmem:[#allocation8 + $0x68] sm:$0xff]
    %v287 = vld [vmem:[#allocation8 + $0x70] sm:$0xff]
    %v288 = vld [vmem:[#allocation8 + $0x78] sm:$0xff]
    %v289 = vld [vmem:[#allocation8 + $0x80] sm:$0xff]
    %v290 = vld [vmem:[#allocation8 + $0x88] sm:$0xff]
    %v291 = vld [vmem:[#allocation8 + $0x90] sm:$0xff]
    %v292 = vld [vmem:[#allocation8 + $0x98] sm:$0xff]
    %v293 = vld [vmem:[#allocation8 + $0xa0] sm:$0xff]
    %v294 = vld [vmem:[#allocation8 + $0xa8] sm:$0xff]
    %v295 = vld [vmem:[#allocation8 + $0xb0] sm:$0xff]
    %v296 = vld [vmem:[#allocation8 + $0xb8] sm:$0xff]
    %v297 = vld [vmem:[#allocation8 + $0xc0] sm:$0xff]
    %v298 = vld [vmem:[#allocation8 + $0xc8] sm:$0xff]
    %v299 = vld [vmem:[#allocation8 + $0xd0] sm:$0xff]
    %v300 = vld [vmem:[#allocation8 + $0xd8] sm:$0xff]
    %v301 = vld [vmem:[#allocation8 + $0xe0] sm:$0xff]
    %v302 = vld [vmem:[#allocation8 + $0xe8] sm:$0xff]
    %v303 = vld [vmem:[#allocation8 + $0xf0] sm:$0xff]
    %v304 = vld [vmem:[#allocation8 + $0xf8] sm:$0xff]
    %v305 = vld [vmem:[%s4] sm:$0xff]
    %306 = vmatprep.subr.mxu0 0.0
    %307 = vmatpush1.msra.mxu0 %v273
    %308 = vmatprep.subr.mxu0 0.0
    %309 = vmatpush1.msra.mxu0 %v274
    %310 = vmatprep.subr.mxu0 0.0
    %311 = vmatpush1.msra.mxu0 %v275
    %312 = vmatprep.subr.mxu0 0.0
    %313 = vmatpush1.msra.mxu0 %v276
    %314 = vmatprep.subr.mxu0 0.0
    %315 = vmatpush1.msra.mxu0 %v277
    %316 = vmatprep.subr.mxu0 0.0
    %317 = vmatpush1.msra.mxu0 %v278
    %318 = vmatprep.subr.mxu0 0.0
    %319 = vmatpush1.msra.mxu0 %v279
    %320 = vmatprep.subr.mxu0 0.0
    %321 = vmatpush1.msra.mxu0 %v280
    %322 = vmatprep.subr.mxu0 0.0
    %323 = vmatpush1.msra.mxu0 %v281
    %324 = vmatprep.subr.mxu0 0.0
    %325 = vmatpush1.msra.mxu0 %v282
    %326 = vmatprep.subr.mxu0 0.0
    %327 = vmatpush1.msra.mxu0 %v283
    %328 = vmatprep.subr.mxu0 0.0
    %329 = vmatpush1.msra.mxu0 %v284
    %330 = vmatprep.subr.mxu0 0.0
    %331 = vmatpush1.msra.mxu0 %v285
    %332 = vmatprep.subr.mxu0 0.0
    %333 = vmatpush1.msra.mxu0 %v286
    %334 = vmatprep.subr.mxu0 0.0
    %335 = vmatpush1.msra.mxu0 %v287
    %336 = vmatprep.subr.mxu0 0.0
    %337 = vmatpush1.msra.mxu0 %v288
    %338 = vmatprep.subr.mxu0 0.0
    %339 = vmatpush1.msra.mxu0 %v289
    %340 = vmatprep.subr.mxu0 0.0
    %341 = vmatpush1.msra.mxu0 %v290
    %342 = vmatprep.subr.mxu0 0.0
    %343 = vmatpush1.msra.mxu0 %v291
    %344 = vmatprep.subr.mxu0 0.0
    %345 = vmatpush1.msra.mxu0 %v292
    %346 = vmatprep.subr.mxu0 0.0
    %347 = vmatpush1.msra.mxu0 %v293
    %348 = vmatprep.subr.mxu0 0.0
    %349 = vmatpush1.msra.mxu0 %v294
    %350 = vmatprep.subr.mxu0 0.0
    %351 = vmatpush1.msra.mxu0 %v295
    %352 = vmatprep.subr.mxu0 0.0
    %353 = vmatpush1.msra.mxu0 %v296
    %354 = vmatprep.subr.mxu0 0.0
    %355 = vmatpush1.msra.mxu0 %v297
    %356 = vmatprep.subr.mxu0 0.0
    %357 = vmatpush1.msra.mxu0 %v298
    %358 = vmatprep.subr.mxu0 0.0
    %359 = vmatpush1.msra.mxu0 %v299
    %360 = vmatprep.subr.mxu0 0.0
    %361 = vmatpush1.msra.mxu0 %v300
    %362 = vmatprep.subr.mxu0 0.0
    %363 = vmatpush1.msra.mxu0 %v301
    %364 = vmatprep.subr.mxu0 0.0
    %365 = vmatpush1.msra.mxu0 %v302
    %366 = vmatprep.subr.mxu0 0.0
    %367 = vmatpush1.msra.mxu0 %v303
    %368 = vmatprep.subr.mxu0 0.0
    %369 = vmatpush1.msra.mxu0 %v304
    %370 = vmatprep.mubr.f32.mxu0 0.0
    %371 = vmatmul.mubr.f32.gmra.mrb[0].mxu0 %v272
    %v372 = vpop.f32.mrb[0].mxu0
    %v373 = vadd.f32 %v305, %v372
    %v374 = vpop.f32.mrb[0].mxu0
    %375 = vdwg.mxu0
    %v376 = vtanh.pop %v373
    %s377 = scalar_lea.vmem [#allocation2], 8
    %v378 = vld [vmem:[%s377] sm:$0xff]
    %379 = vmatprep.subr.mxu0 0.0
    %380 = vmatpush1.msra.mxu0 %v169
    %381 = vmatprep.subr.mxu0 0.0
    %382 = vmatpush1.msra.mxu0 %v170
    %383 = vmatprep.subr.mxu0 0.0
    %384 = vmatpush1.msra.mxu0 %v171
    %385 = vmatprep.subr.mxu0 0.0
    %386 = vmatpush1.msra.mxu0 %v172
    %387 = vmatprep.subr.mxu0 0.0
    %388 = vmatpush1.msra.mxu0 %v173
    %389 = vmatprep.subr.mxu0 0.0
    %390 = vmatpush1.msra.mxu0 %v174
    %391 = vmatprep.subr.mxu0 0.0
    %392 = vmatpush1.msra.mxu0 %v175
    %393 = vmatprep.subr.mxu0 0.0
    %394 = vmatpush1.msra.mxu0 %v176
    %395 = vmatprep.subr.mxu0 0.0
    %396 = vmatpush1.msra.mxu0 %v177
    %397 = vmatprep.subr.mxu0 0.0
    %398 = vmatpush1.msra.mxu0 %v178
    %399 = vmatprep.subr.mxu0 0.0
    %400 = vmatpush1.msra.mxu0 %v179
    %401 = vmatprep.subr.mxu0 0.0
    %402 = vmatpush1.msra.mxu0 %v180
    %403 = vmatprep.subr.mxu0 0.0
    %404 = vmatpush1.msra.mxu0 %v181
    %405 = vmatprep.subr.mxu0 0.0
    %406 = vmatpush1.msra.mxu0 %v182
    %407 = vmatprep.subr.mxu0 0.0
    %408 = vmatpush1.msra.mxu0 %v183
    %409 = vmatprep.subr.mxu0 0.0
    %410 = vmatpush1.msra.mxu0 %v184
    %411 = vmatprep.subr.mxu0 0.0
    %412 = vmatpush1.msra.mxu0 %v185
    %413 = vmatprep.subr.mxu0 0.0
    %414 = vmatpush1.msra.mxu0 %v186
    %415 = vmatprep.subr.mxu0 0.0
    %416 = vmatpush1.msra.mxu0 %v187
    %417 = vmatprep.subr.mxu0 0.0
    %418 = vmatpush1.msra.mxu0 %v188
    %419 = vmatprep.subr.mxu0 0.0
    %420 = vmatpush1.msra.mxu0 %v189
    %421 = vmatprep.subr.mxu0 0.0
    %422 = vmatpush1.msra.mxu0 %v190
    %423 = vmatprep.subr.mxu0 0.0
    %424 = vmatpush1.msra.mxu0 %v191
    %425 = vmatprep.subr.mxu0 0.0
    %426 = vmatpush1.msra.mxu0 %v192
    %427 = vmatprep.subr.mxu0 0.0
    %428 = vmatpush1.msra.mxu0 %v193
    %429 = vmatprep.subr.mxu0 0.0
    %430 = vmatpush1.msra.mxu0 %v194
    %431 = vmatprep.subr.mxu0 0.0
    %432 = vmatpush1.msra.mxu0 %v195
    %433 = vmatprep.subr.mxu0 0.0
    %434 = vmatpush1.msra.mxu0 %v196
    %435 = vmatprep.subr.mxu0 0.0
    %436 = vmatpush1.msra.mxu0 %v197
    %437 = vmatprep.subr.mxu0 0.0
    %438 = vmatpush1.msra.mxu0 %v198
    %439 = vmatprep.subr.mxu0 0.0
    %440 = vmatpush1.msra.mxu0 %v199
    %441 = vmatprep.subr.mxu0 0.0
    %442 = vmatpush1.msra.mxu0 %v200
    %443 = vmatprep.mubr.f32.mxu0 %v272
    %444 = vmatmul.mubr.f32.gmra.mrb[0].mxu0 %v378
    %v445 = vpop.f32.mrb[0].mxu0
    %v446 = vadd.f32 %v201, %v445
    %v447 = vpop.f32.mrb[0].mxu0
    %448 = vdwg.mxu0
    %v449 = vtanh.pop %v446
    %450 = vmatprep.subr.mxu0 0.0
    %451 = vmatpush1.msra.mxu0 %v273
    %452 = vmatprep.subr.mxu0 0.0
    %453 = vmatpush1.msra.mxu0 %v274
    %454 = vmatprep.subr.mxu0 0.0
    %455 = vmatpush1.msra.mxu0 %v275
    %456 = vmatprep.subr.mxu0 0.0
    %457 = vmatpush1.msra.mxu0 %v276
    %458 = vmatprep.subr.mxu0 0.0
    %459 = vmatpush1.msra.mxu0 %v277
    %460 = vmatprep.subr.mxu0 0.0
    %461 = vmatpush1.msra.mxu0 %v278
    %462 = vmatprep.subr.mxu0 0.0
    %463 = vmatpush1.msra.mxu0 %v279
    %464 = vmatprep.subr.mxu0 0.0
    %465 = vmatpush1.msra.mxu0 %v280
    %466 = vmatprep.subr.mxu0 0.0
    %467 = vmatpush1.msra.mxu0 %v281
    %468 = vmatprep.subr.mxu0 0.0
    %469 = vmatpush1.msra.mxu0 %v282
    %470 = vmatprep.subr.mxu0 0.0
    %471 = vmatpush1.msra.mxu0 %v283
    %472 = vmatprep.subr.mxu0 0.0
    %473 = vmatpush1.msra.mxu0 %v284
    %474 = vmatprep.subr.mxu0 0.0
    %475 = vmatpush1.msra.mxu0 %v285
    %476 = vmatprep.subr.mxu0 0.0
    %477 = vmatpush1.msra.mxu0 %v286
    %478 = vmatprep.subr.mxu0 0.0
    %479 = vmatpush1.msra.mxu0 %v287
    %480 = vmatprep.subr.mxu0 0.0
    %481 = vmatpush1.msra.mxu0 %v288
    %482 = vmatprep.subr.mxu0 0.0
    %483 = vmatpush1.msra.mxu0 %v289
    %484 = vmatprep.subr.mxu0 0.0
    %485 = vmatpush1.msra.mxu0 %v290
    %486 = vmatprep.subr.mxu0 0.0
    %487 = vmatpush1.msra.mxu0 %v291
    %488 = vmatprep.subr.mxu0 0.0
    %489 = vmatpush1.msra.mxu0 %v292
    %490 = vmatprep.subr.mxu0 0.0
    %491 = vmatpush1.msra.mxu0 %v293
    %492 = vmatprep.subr.mxu0 0.0
    %493 = vmatpush1.msra.mxu0 %v294
    %494 = vmatprep.subr.mxu0 0.0
    %495 = vmatpush1.msra.mxu0 %v295
    %496 = vmatprep.subr.mxu0 0.0
    %497 = vmatpush1.msra.mxu0 %v296
    %498 = vmatprep.subr.mxu0 0.0
    %499 = vmatpush1.msra.mxu0 %v297
    %500 = vmatprep.subr.mxu0 0.0
    %501 = vmatpush1.msra.mxu0 %v298
    %502 = vmatprep.subr.mxu0 0.0
    %503 = vmatpush1.msra.mxu0 %v299
    %504 = vmatprep.subr.mxu0 0.0
    %505 = vmatpush1.msra.mxu0 %v300
    %506 = vmatprep.subr.mxu0 0.0
    %507 = vmatpush1.msra.mxu0 %v301
    %508 = vmatprep.subr.mxu0 0.0
    %509 = vmatpush1.msra.mxu0 %v302
    %510 = vmatprep.subr.mxu0 0.0
    %511 = vmatpush1.msra.mxu0 %v303
    %512 = vmatprep.subr.mxu0 0.0
    %513 = vmatpush1.msra.mxu0 %v304
    %514 = vmatprep.mubr.f32.mxu0 %v376
    %515 = vmatmul.mubr.f32.gmra.mrb[0].mxu0 %v449
    %v516 = vpop.f32.mrb[0].mxu0
    %v517 = vadd.f32 %v305, %v516
    %v518 = vpop.f32.mrb[0].mxu0
    %519 = vdwg.mxu0
    %v520 = vtanh.pop %v517
    %s521 = scalar_lea.vmem [#allocation2], 16
    %v522 = vld [vmem:[%s521] sm:$0xff]
    %523 = vmatprep.subr.mxu0 0.0
    %524 = vmatpush1.msra.mxu0 %v169
    %525 = vmatprep.subr.mxu0 0.0
    %526 = vmatpush1.msra.mxu0 %v170
    %527 = vmatprep.subr.mxu0 0.0
    %528 = vmatpush1.msra.mxu0 %v171
    %529 = vmatprep.subr.mxu0 0.0
    %530 = vmatpush1.msra.mxu0 %v172
    %531 = vmatprep.subr.mxu0 0.0
    %532 = vmatpush1.msra.mxu0 %v173
    %533 = vmatprep.subr.mxu0 0.0
    %534 = vmatpush1.msra.mxu0 %v174
    %535 = vmatprep.subr.mxu0 0.0
    %536 = vmatpush1.msra.mxu0 %v175
    %537 = vmatprep.subr.mxu0 0.0
    %538 = vmatpush1.msra.mxu0 %v176
    %539 = vmatprep.subr.mxu0 0.0
    %540 = vmatpush1.msra.mxu0 %v177
    %541 = vmatprep.subr.mxu0 0.0
    %542 = vmatpush1.msra.mxu0 %v178
    %543 = vmatprep.subr.mxu0 0.0
    %544 = vmatpush1.msra.mxu0 %v179
    %545 = vmatprep.subr.mxu0 0.0
    %546 = vmatpush1.msra.mxu0 %v180
    %547 = vmatprep.subr.mxu0 0.0
    %548 = vmatpush1.msra.mxu0 %v181
    %549 = vmatprep.subr.mxu0 0.0
    %550 = vmatpush1.msra.mxu0 %v182
    %551 = vmatprep.subr.mxu0 0.0
    %552 = vmatpush1.msra.mxu0 %v183
    %553 = vmatprep.subr.mxu0 0.0
    %554 = vmatpush1.msra.mxu0 %v184
    %555 = vmatprep.subr.mxu0 0.0
    %556 = vmatpush1.msra.mxu0 %v185
    %557 = vmatprep.subr.mxu0 0.0
    %558 = vmatpush1.msra.mxu0 %v186
    %559 = vmatprep.subr.mxu0 0.0
    %560 = vmatpush1.msra.mxu0 %v187
    %561 = vmatprep.subr.mxu0 0.0
    %562 = vmatpush1.msra.mxu0 %v188
    %563 = vmatprep.subr.mxu0 0.0
    %564 = vmatpush1.msra.mxu0 %v189
    %565 = vmatprep.subr.mxu0 0.0
    %566 = vmatpush1.msra.mxu0 %v190
    %567 = vmatprep.subr.mxu0 0.0
    %568 = vmatpush1.msra.mxu0 %v191
    %569 = vmatprep.subr.mxu0 0.0
    %570 = vmatpush1.msra.mxu0 %v192
    %571 = vmatprep.subr.mxu0 0.0
    %572 = vmatpush1.msra.mxu0 %v193
    %573 = vmatprep.subr.mxu0 0.0
    %574 = vmatpush1.msra.mxu0 %v194
    %575 = vmatprep.subr.mxu0 0.0
    %576 = vmatpush1.msra.mxu0 %v195
    %577 = vmatprep.subr.mxu0 0.0
    %578 = vmatpush1.msra.mxu0 %v196
    %579 = vmatprep.subr.mxu0 0.0
    %580 = vmatpush1.msra.mxu0 %v197
    %581 = vmatprep.subr.mxu0 0.0
    %582 = vmatpush1.msra.mxu0 %v198
    %583 = vmatprep.subr.mxu0 0.0
    %584 = vmatpush1.msra.mxu0 %v199
    %585 = vmatprep.subr.mxu0 0.0
    %586 = vmatpush1.msra.mxu0 %v200
    %587 = vmatprep.mubr.f32.mxu0 %v449
    %588 = vmatmul.mubr.f32.gmra.mrb[0].mxu0 %v522
    %v589 = vpop.f32.mrb[0].mxu0
    %v590 = vadd.f32 %v201, %v589
    %v591 = vpop.f32.mrb[0].mxu0
    %592 = vdwg.mxu0
    %v593 = vtanh.pop %v590
    %594 = vmatprep.subr.mxu0 0.0
    %595 = vmatpush1.msra.mxu0 %v273
    %596 = vmatprep.subr.mxu0 0.0
    %597 = vmatpush1.msra.mxu0 %v274
    %598 = vmatprep.subr.mxu0 0.0
    %599 = vmatpush1.msra.mxu0 %v275
    %600 = vmatprep.subr.mxu0 0.0
    %601 = vmatpush1.msra.mxu0 %v276
    %602 = vmatprep.subr.mxu0 0.0
    %603 = vmatpush1.msra.mxu0 %v277
    %604 = vmatprep.subr.mxu0 0.0
    %605 = vmatpush1.msra.mxu0 %v278
    %606 = vmatprep.subr.mxu0 0.0
    %607 = vmatpush1.msra.mxu0 %v279
    %608 = vmatprep.subr.mxu0 0.0
    %609 = vmatpush1.msra.mxu0 %v280
    %610 = vmatprep.subr.mxu0 0.0
    %611 = vmatpush1.msra.mxu0 %v281
    %612 = vmatprep.subr.mxu0 0.0
    %613 = vmatpush1.msra.mxu0 %v282
    %614 = vmatprep.subr.mxu0 0.0
    %615 = vmatpush1.msra.mxu0 %v283
    %616 = vmatprep.subr.mxu0 0.0
    %617 = vmatpush1.msra.mxu0 %v284
    %618 = vmatprep.subr.mxu0 0.0
    %619 = vmatpush1.msra.mxu0 %v285
    %620 = vmatprep.subr.mxu0 0.0
    %621 = vmatpush1.msra.mxu0 %v286
    %622 = vmatprep.subr.mxu0 0.0
    %623 = vmatpush1.msra.mxu0 %v287
    %624 = vmatprep.subr.mxu0 0.0
    %625 = vmatpush1.msra.mxu0 %v288
    %626 = vmatprep.subr.mxu0 0.0
    %627 = vmatpush1.msra.mxu0 %v289
    %628 = vmatprep.subr.mxu0 0.0
    %629 = vmatpush1.msra.mxu0 %v290
    %630 = vmatprep.subr.mxu0 0.0
    %631 = vmatpush1.msra.mxu0 %v291
    %632 = vmatprep.subr.mxu0 0.0
    %633 = vmatpush1.msra.mxu0 %v292
    %634 = vmatprep.subr.mxu0 0.0
    %635 = vmatpush1.msra.mxu0 %v293
    %636 = vmatprep.subr.mxu0 0.0
    %637 = vmatpush1.msra.mxu0 %v294
    %638 = vmatprep.subr.mxu0 0.0
    %639 = vmatpush1.msra.mxu0 %v295
    %640 = vmatprep.subr.mxu0 0.0
    %641 = vmatpush1.msra.mxu0 %v296
    %642 = vmatprep.subr.mxu0 0.0
    %643 = vmatpush1.msra.mxu0 %v297
    %644 = vmatprep.subr.mxu0 0.0
    %645 = vmatpush1.msra.mxu0 %v298
    %646 = vmatprep.subr.mxu0 0.0
    %647 = vmatpush1.msra.mxu0 %v299
    %648 = vmatprep.subr.mxu0 0.0
    %649 = vmatpush1.msra.mxu0 %v300
    %650 = vmatprep.subr.mxu0 0.0
    %651 = vmatpush1.msra.mxu0 %v301
    %652 = vmatprep.subr.mxu0 0.0
    %653 = vmatpush1.msra.mxu0 %v302
    %654 = vmatprep.subr.mxu0 0.0
    %655 = vmatpush1.msra.mxu0 %v303
    %656 = vmatprep.subr.mxu0 0.0
    %657 = vmatpush1.msra.mxu0 %v304
    %658 = vmatprep.mubr.f32.mxu0 %v520
    %659 = vmatmul.mubr.f32.gmra.mrb[0].mxu0 %v593
    %v660 = vpop.f32.mrb[0].mxu0
    %v661 = vadd.f32 %v305, %v660
    %v662 = vpop.f32.mrb[0].mxu0
    %663 = vdwg.mxu0
    %v664 = vtanh.pop %v661
    %s665 = scalar_lea.vmem [#allocation2], 24
    %v666 = vld [vmem:[%s665] sm:$0xff]
    %667 = vmatprep.subr.mxu0 0.0
    %668 = vmatpush1.msra.mxu0 %v169
    %669 = vmatprep.subr.mxu0 0.0
    %670 = vmatpush1.msra.mxu0 %v170
    %671 = vmatprep.subr.mxu0 0.0
    %672 = vmatpush1.msra.mxu0 %v171
    %673 = vmatprep.subr.mxu0 0.0
    %674 = vmatpush1.msra.mxu0 %v172
    %675 = vmatprep.subr.mxu0 0.0
    %676 = vmatpush1.msra.mxu0 %v173
    %677 = vmatprep.subr.mxu0 0.0
    %678 = vmatpush1.msra.mxu0 %v174
    %679 = vmatprep.subr.mxu0 0.0
    %680 = vmatpush1.msra.mxu0 %v175
    %681 = vmatprep.subr.mxu0 0.0
    %682 = vmatpush1.msra.mxu0 %v176
    %683 = vmatprep.subr.mxu0 0.0
    %684 = vmatpush1.msra.mxu0 %v177
    %685 = vmatprep.subr.mxu0 0.0
    %686 = vmatpush1.msra.mxu0 %v178
    %687 = vmatprep.subr.mxu0 0.0
    %688 = vmatpush1.msra.mxu0 %v179
    %689 = vmatprep.subr.mxu0 0.0
    %690 = vmatpush1.msra.mxu0 %v180
    %691 = vmatprep.subr.mxu0 0.0
    %692 = vmatpush1.msra.mxu0 %v181
    %693 = vmatprep.subr.mxu0 0.0
    %694 = vmatpush1.msra.mxu0 %v182
    %695 = vmatprep.subr.mxu0 0.0
    %696 = vmatpush1.msra.mxu0 %v183
    %697 = vmatprep.subr.mxu0 0.0
    %698 = vmatpush1.msra.mxu0 %v184
    %699 = vmatprep.subr.mxu0 0.0
    %700 = vmatpush1.msra.mxu0 %v185
    %701 = vmatprep.subr.mxu0 0.0
    %702 = vmatpush1.msra.mxu0 %v186
    %703 = vmatprep.subr.mxu0 0.0
    %704 = vmatpush1.msra.mxu0 %v187
    %705 = vmatprep.subr.mxu0 0.0
    %706 = vmatpush1.msra.mxu0 %v188
    %707 = vmatprep.subr.mxu0 0.0
    %708 = vmatpush1.msra.mxu0 %v189
    %709 = vmatprep.subr.mxu0 0.0
    %710 = vmatpush1.msra.mxu0 %v190
    %711 = vmatprep.subr.mxu0 0.0
    %712 = vmatpush1.msra.mxu0 %v191
    %713 = vmatprep.subr.mxu0 0.0
    %714 = vmatpush1.msra.mxu0 %v192
    %715 = vmatprep.subr.mxu0 0.0
    %716 = vmatpush1.msra.mxu0 %v193
    %717 = vmatprep.subr.mxu0 0.0
    %718 = vmatpush1.msra.mxu0 %v194
    %719 = vmatprep.subr.mxu0 0.0
    %720 = vmatpush1.msra.mxu0 %v195
    %721 = vmatprep.subr.mxu0 0.0
    %722 = vmatpush1.msra.mxu0 %v196
    %723 = vmatprep.subr.mxu0 0.0
    %724 = vmatpush1.msra.mxu0 %v197
    %725 = vmatprep.subr.mxu0 0.0
    %726 = vmatpush1.msra.mxu0 %v198
    %727 = vmatprep.subr.mxu0 0.0
    %728 = vmatpush1.msra.mxu0 %v199
    %729 = vmatprep.subr.mxu0 0.0
    %730 = vmatpush1.msra.mxu0 %v200
    %731 = vmatprep.mubr.f32.mxu0 %v593
    %732 = vmatmul.mubr.f32.gmra.mrb[0].mxu0 %v666
    %v733 = vpop.f32.mrb[0].mxu0
    %v734 = vadd.f32 %v201, %v733
    %v735 = vpop.f32.mrb[0].mxu0
    %736 = vdwg.mxu0
    %v737 = vtanh.pop %v734
    %738 = vmatprep.subr.mxu0 0.0
    %739 = vmatpush1.msra.mxu0 %v273
    %740 = vmatprep.subr.mxu0 0.0
    %741 = vmatpush1.msra.mxu0 %v274
    %742 = vmatprep.subr.mxu0 0.0
    %743 = vmatpush1.msra.mxu0 %v275
    %744 = vmatprep.subr.mxu0 0.0
    %745 = vmatpush1.msra.mxu0 %v276
    %746 = vmatprep.subr.mxu0 0.0
    %747 = vmatpush1.msra.mxu0 %v277
    %748 = vmatprep.subr.mxu0 0.0
    %749 = vmatpush1.msra.mxu0 %v278
    %750 = vmatprep.subr.mxu0 0.0
    %751 = vmatpush1.msra.mxu0 %v279
    %752 = vmatprep.subr.mxu0 0.0
    %753 = vmatpush1.msra.mxu0 %v280
    %754 = vmatprep.subr.mxu0 0.0
    %755 = vmatpush1.msra.mxu0 %v281
    %756 = vmatprep.subr.mxu0 0.0
    %757 = vmatpush1.msra.mxu0 %v282
    %758 = vmatprep.subr.mxu0 0.0
    %759 = vmatpush1.msra.mxu0 %v283
    %760 = vmatprep.subr.mxu0 0.0
    %761 = vmatpush1.msra.mxu0 %v284
    %762 = vmatprep.subr.mxu0 0.0
    %763 = vmatpush1.msra.mxu0 %v285
    %764 = vmatprep.subr.mxu0 0.0
    %765 = vmatpush1.msra.mxu0 %v286
    %766 = vmatprep.subr.mxu0 0.0
    %767 = vmatpush1.msra.mxu0 %v287
    %768 = vmatprep.subr.mxu0 0.0
    %769 = vmatpush1.msra.mxu0 %v288
    %770 = vmatprep.subr.mxu0 0.0
    %771 = vmatpush1.msra.mxu0 %v289
    %772 = vmatprep.subr.mxu0 0.0
    %773 = vmatpush1.msra.mxu0 %v290
    %774 = vmatprep.subr.mxu0 0.0
    %775 = vmatpush1.msra.mxu0 %v291
    %776 = vmatprep.subr.mxu0 0.0
    %777 = vmatpush1.msra.mxu0 %v292
    %778 = vmatprep.subr.mxu0 0.0
    %779 = vmatpush1.msra.mxu0 %v293
    %780 = vmatprep.subr.mxu0 0.0
    %781 = vmatpush1.msra.mxu0 %v294
    %782 = vmatprep.subr.mxu0 0.0
    %783 = vmatpush1.msra.mxu0 %v295
    %784 = vmatprep.subr.mxu0 0.0
    %785 = vmatpush1.msra.mxu0 %v296
    %786 = vmatprep.subr.mxu0 0.0
    %787 = vmatpush1.msra.mxu0 %v297
    %788 = vmatprep.subr.mxu0 0.0
    %789 = vmatpush1.msra.mxu0 %v298
    %790 = vmatprep.subr.mxu0 0.0
    %791 = vmatpush1.msra.mxu0 %v299
    %792 = vmatprep.subr.mxu0 0.0
    %793 = vmatpush1.msra.mxu0 %v300
    %794 = vmatprep.subr.mxu0 0.0
    %795 = vmatpush1.msra.mxu0 %v301
    %796 = vmatprep.subr.mxu0 0.0
    %797 = vmatpush1.msra.mxu0 %v302
    %798 = vmatprep.subr.mxu0 0.0
    %799 = vmatpush1.msra.mxu0 %v303
    %800 = vmatprep.subr.mxu0 0.0
    %801 = vmatpush1.msra.mxu0 %v304
    %802 = vmatprep.mubr.f32.mxu0 %v664
    %803 = vmatmul.mubr.f32.gmra.mrb[0].mxu0 %v737
    %v804 = vpop.f32.mrb[0].mxu0
    %v805 = vadd.f32 %v305, %v804
    %v806 = vpop.f32.mrb[0].mxu0
    %807 = vdwg.mxu0
    %v808 = vtanh.pop %v805
    %s809 = scalar_lea.vmem [#allocation2], 32
    %v810 = vld [vmem:[%s809] sm:$0xff]
    %811 = vmatprep.subr.mxu0 0.0
    %812 = vmatpush1.msra.mxu0 %v169
    %813 = vmatprep.subr.mxu0 0.0
    %814 = vmatpush1.msra.mxu0 %v170
    %815 = vmatprep.subr.mxu0 0.0
    %816 = vmatpush1.msra.mxu0 %v171
    %817 = vmatprep.subr.mxu0 0.0
    %818 = vmatpush1.msra.mxu0 %v172
    %819 = vmatprep.subr.mxu0 0.0
    %820 = vmatpush1.msra.mxu0 %v173
    %821 = vmatprep.subr.mxu0 0.0
    %822 = vmatpush1.msra.mxu0 %v174
    %823 = vmatprep.subr.mxu0 0.0
    %824 = vmatpush1.msra.mxu0 %v175
    %825 = vmatprep.subr.mxu0 0.0
    %826 = vmatpush1.msra.mxu0 %v176
    %827 = vmatprep.subr.mxu0 0.0
    %828 = vmatpush1.msra.mxu0 %v177
    %829 = vmatprep.subr.mxu0 0.0
    %830 = vmatpush1.msra.mxu0 %v178
    %831 = vmatprep.subr.mxu0 0.0
    %832 = vmatpush1.msra.mxu0 %v179
    %833 = vmatprep.subr.mxu0 0.0
    %834 = vmatpush1.msra.mxu0 %v180
    %835 = vmatprep.subr.mxu0 0.0
    %836 = vmatpush1.msra.mxu0 %v181
    %837 = vmatprep.subr.mxu0 0.0
    %838 = vmatpush1.msra.mxu0 %v182
    %839 = vmatprep.subr.mxu0 0.0
    %840 = vmatpush1.msra.mxu0 %v183
    %841 = vmatprep.subr.mxu0 0.0
    %842 = vmatpush1.msra.mxu0 %v184
    %843 = vmatprep.subr.mxu0 0.0
    %844 = vmatpush1.msra.mxu0 %v185
    %845 = vmatprep.subr.mxu0 0.0
    %846 = vmatpush1.msra.mxu0 %v186
    %847 = vmatprep.subr.mxu0 0.0
    %848 = vmatpush1.msra.mxu0 %v187
    %849 = vmatprep.subr.mxu0 0.0
    %850 = vmatpush1.msra.mxu0 %v188
    %851 = vmatprep.subr.mxu0 0.0
    %852 = vmatpush1.msra.mxu0 %v189
    %853 = vmatprep.subr.mxu0 0.0
    %854 = vmatpush1.msra.mxu0 %v190
    %855 = vmatprep.subr.mxu0 0.0
    %856 = vmatpush1.msra.mxu0 %v191
    %857 = vmatprep.subr.mxu0 0.0
    %858 = vmatpush1.msra.mxu0 %v192
    %859 = vmatprep.subr.mxu0 0.0
    %860 = vmatpush1.msra.mxu0 %v193
    %861 = vmatprep.subr.mxu0 0.0
    %862 = vmatpush1.msra.mxu0 %v194
    %863 = vmatprep.subr.mxu0 0.0
    %864 = vmatpush1.msra.mxu0 %v195
    %865 = vmatprep.subr.mxu0 0.0
    %866 = vmatpush1.msra.mxu0 %v196
    %867 = vmatprep.subr.mxu0 0.0
    %868 = vmatpush1.msra.mxu0 %v197
    %869 = vmatprep.subr.mxu0 0.0
    %870 = vmatpush1.msra.mxu0 %v198
    %871 = vmatprep.subr.mxu0 0.0
    %872 = vmatpush1.msra.mxu0 %v199
    %873 = vmatprep.subr.mxu0 0.0
    %874 = vmatpush1.msra.mxu0 %v200
    %875 = vmatprep.mubr.f32.mxu0 %v737
    %876 = vmatmul.mubr.f32.gmra.mrb[0].mxu0 %v810
    %v877 = vpop.f32.mrb[0].mxu0
    %v878 = vadd.f32 %v201, %v877
    %v879 = vpop.f32.mrb[0].mxu0
    %880 = vdwg.mxu0
    %v881 = vtanh.pop %v878
    %882 = vmatprep.subr.mxu0 0.0
    %883 = vmatpush1.msra.mxu0 %v273
    %884 = vmatprep.subr.mxu0 0.0
    %885 = vmatpush1.msra.mxu0 %v274
    %886 = vmatprep.subr.mxu0 0.0
    %887 = vmatpush1.msra.mxu0 %v275
    %888 = vmatprep.subr.mxu0 0.0
    %889 = vmatpush1.msra.mxu0 %v276
    %890 = vmatprep.subr.mxu0 0.0
    %891 = vmatpush1.msra.mxu0 %v277
    %892 = vmatprep.subr.mxu0 0.0
    %893 = vmatpush1.msra.mxu0 %v278
    %894 = vmatprep.subr.mxu0 0.0
    %895 = vmatpush1.msra.mxu0 %v279
    %896 = vmatprep.subr.mxu0 0.0
    %897 = vmatpush1.msra.mxu0 %v280
    %898 = vmatprep.subr.mxu0 0.0
    %899 = vmatpush1.msra.mxu0 %v281
    %900 = vmatprep.subr.mxu0 0.0
    %901 = vmatpush1.msra.mxu0 %v282
    %902 = vmatprep.subr.mxu0 0.0
    %903 = vmatpush1.msra.mxu0 %v283
    %904 = vmatprep.subr.mxu0 0.0
    %905 = vmatpush1.msra.mxu0 %v284
    %906 = vmatprep.subr.mxu0 0.0
    %907 = vmatpush1.msra.mxu0 %v285
    %908 = vmatprep.subr.mxu0 0.0
    %909 = vmatpush1.msra.mxu0 %v286
    %910 = vmatprep.subr.mxu0 0.0
    %911 = vmatpush1.msra.mxu0 %v287
    %912 = vmatprep.subr.mxu0 0.0
    %913 = vmatpush1.msra.mxu0 %v288
    %914 = vmatprep.subr.mxu0 0.0
    %915 = vmatpush1.msra.mxu0 %v289
    %916 = vmatprep.subr.mxu0 0.0
    %917 = vmatpush1.msra.mxu0 %v290
    %918 = vmatprep.subr.mxu0 0.0
    %919 = vmatpush1.msra.mxu0 %v291
    %920 = vmatprep.subr.mxu0 0.0
    %921 = vmatpush1.msra.mxu0 %v292
    %922 = vmatprep.subr.mxu0 0.0
    %923 = vmatpush1.msra.mxu0 %v293
    %924 = vmatprep.subr.mxu0 0.0
    %925 = vmatpush1.msra.mxu0 %v294
    %926 = vmatprep.subr.mxu0 0.0
    %927 = vmatpush1.msra.mxu0 %v295
    %928 = vmatprep.subr.mxu0 0.0
    %929 = vmatpush1.msra.mxu0 %v296
    %930 = vmatprep.subr.mxu0 0.0
    %931 = vmatpush1.msra.mxu0 %v297
    %932 = vmatprep.subr.mxu0 0.0
    %933 = vmatpush1.msra.mxu0 %v298
    %934 = vmatprep.subr.mxu0 0.0
    %935 = vmatpush1.msra.mxu0 %v299
    %936 = vmatprep.subr.mxu0 0.0
    %937 = vmatpush1.msra.mxu0 %v300
    %938 = vmatprep.subr.mxu0 0.0
    %939 = vmatpush1.msra.mxu0 %v301
    %940 = vmatprep.subr.mxu0 0.0
    %941 = vmatpush1.msra.mxu0 %v302
    %942 = vmatprep.subr.mxu0 0.0
    %943 = vmatpush1.msra.mxu0 %v303
    %944 = vmatprep.subr.mxu0 0.0
    %945 = vmatpush1.msra.mxu0 %v304
    %946 = vmatprep.mubr.f32.mxu0 %v808
    %947 = vmatmul.mubr.f32.gmra.mrb[0].mxu0 %v881
    %v948 = vpop.f32.mrb[0].mxu0
    %v949 = vadd.f32 %v305, %v948
    %v950 = vpop.f32.mrb[0].mxu0
    %951 = vdwg.mxu0
    %v952 = vtanh.pop %v949
    %s953 = scalar_lea.vmem [#allocation2], 40
    %v954 = vld [vmem:[%s953] sm:$0xff]
    %955 = vmatprep.subr.mxu0 0.0
    %956 = vmatpush1.msra.mxu0 %v169
    %957 = vmatprep.subr.mxu0 0.0
    %958 = vmatpush1.msra.mxu0 %v170
    %959 = vmatprep.subr.mxu0 0.0
    %960 = vmatpush1.msra.mxu0 %v171
    %961 = vmatprep.subr.mxu0 0.0
    %962 = vmatpush1.msra.mxu0 %v172
    %963 = vmatprep.subr.mxu0 0.0
    %964 = vmatpush1.msra.mxu0 %v173
    %965 = vmatprep.subr.mxu0 0.0
    %966 = vmatpush1.msra.mxu0 %v174
    %967 = vmatprep.subr.mxu0 0.0
    %968 = vmatpush1.msra.mxu0 %v175
    %969 = vmatprep.subr.mxu0 0.0
    %970 = vmatpush1.msra.mxu0 %v176
    %971 = vmatprep.subr.mxu0 0.0
    %972 = vmatpush1.msra.mxu0 %v177
    %973 = vmatprep.subr.mxu0 0.0
    %974 = vmatpush1.msra.mxu0 %v178
    %975 = vmatprep.subr.mxu0 0.0
    %976 = vmatpush1.msra.mxu0 %v179
    %977 = vmatprep.subr.mxu0 0.0
    %978 = vmatpush1.msra.mxu0 %v180
    %979 = vmatprep.subr.mxu0 0.0
    %980 = vmatpush1.msra.mxu0 %v181
    %981 = vmatprep.subr.mxu0 0.0
    %982 = vmatpush1.msra.mxu0 %v182
    %983 = vmatprep.subr.mxu0 0.0
    %984 = vmatpush1.msra.mxu0 %v183
    %985 = vmatprep.subr.mxu0 0.0
    %986 = vmatpush1.msra.mxu0 %v184
    %987 = vmatprep.subr.mxu0 0.0
    %988 = vmatpush1.msra.mxu0 %v185
    %989 = vmatprep.subr.mxu0 0.0
    %990 = vmatpush1.msra.mxu0 %v186
    %991 = vmatprep.subr.mxu0 0.0
    %992 = vmatpush1.msra.mxu0 %v187
    %993 = vmatprep.subr.mxu0 0.0
    %994 = vmatpush1.msra.mxu0 %v188
    %995 = vmatprep.subr.mxu0 0.0
    %996 = vmatpush1.msra.mxu0 %v189
    %997 = vmatprep.subr.mxu0 0.0
    %998 = vmatpush1.msra.mxu0 %v190
    %999 = vmatprep.subr.mxu0 0.0
    %1000 = vmatpush1.msra.mxu0 %v191
    %1001 = vmatprep.subr.mxu0 0.0
    %1002 = vmatpush1.msra.mxu0 %v192
    %1003 = vmatprep.subr.mxu0 0.0
    %1004 = vmatpush1.msra.mxu0 %v193
    %1005 = vmatprep.subr.mxu0 0.0
    %1006 = vmatpush1.msra.mxu0 %v194
    %1007 = vmatprep.subr.mxu0 0.0
    %1008 = vmatpush1.msra.mxu0 %v195
    %1009 = vmatprep.subr.mxu0 0.0
    %1010 = vmatpush1.msra.mxu0 %v196
    %1011 = vmatprep.subr.mxu0 0.0
    %1012 = vmatpush1.msra.mxu0 %v197
    %1013 = vmatprep.subr.mxu0 0.0
    %1014 = vmatpush1.msra.mxu0 %v198
    %1015 = vmatprep.subr.mxu0 0.0
    %1016 = vmatpush1.msra.mxu0 %v199
    %1017 = vmatprep.subr.mxu0 0.0
    %1018 = vmatpush1.msra.mxu0 %v200
    %1019 = vmatprep.mubr.f32.mxu0 %v881
    %1020 = vmatmul.mubr.f32.gmra.mrb[0].mxu0 %v954
    %v1021 = vpop.f32.mrb[0].mxu0
    %v1022 = vadd.f32 %v201, %v1021
    %v1023 = vpop.f32.mrb[0].mxu0
    %1024 = vdwg.mxu0
    %v1025 = vtanh.pop %v1022
    %1026 = vmatprep.subr.mxu0 0.0
    %1027 = vmatpush1.msra.mxu0 %v273
    %1028 = vmatprep.subr.mxu0 0.0
    %1029 = vmatpush1.msra.mxu0 %v274
    %1030 = vmatprep.subr.mxu0 0.0
    %1031 = vmatpush1.msra.mxu0 %v275
    %1032 = vmatprep.subr.mxu0 0.0
    %1033 = vmatpush1.msra.mxu0 %v276
    %1034 = vmatprep.subr.mxu0 0.0
    %1035 = vmatpush1.msra.mxu0 %v277
    %1036 = vmatprep.subr.mxu0 0.0
    %1037 = vmatpush1.msra.mxu0 %v278
    %1038 = vmatprep.subr.mxu0 0.0
    %1039 = vmatpush1.msra.mxu0 %v279
    %1040 = vmatprep.subr.mxu0 0.0
    %1041 = vmatpush1.msra.mxu0 %v280
    %1042 = vmatprep.subr.mxu0 0.0
    %1043 = vmatpush1.msra.mxu0 %v281
    %1044 = vmatprep.subr.mxu0 0.0
    %1045 = vmatpush1.msra.mxu0 %v282
    %1046 = vmatprep.subr.mxu0 0.0
    %1047 = vmatpush1.msra.mxu0 %v283
    %1048 = vmatprep.subr.mxu0 0.0
    %1049 = vmatpush1.msra.mxu0 %v284
    %1050 = vmatprep.subr.mxu0 0.0
    %1051 = vmatpush1.msra.mxu0 %v285
    %1052 = vmatprep.subr.mxu0 0.0
    %1053 = vmatpush1.msra.mxu0 %v286
    %1054 = vmatprep.subr.mxu0 0.0
    %1055 = vmatpush1.msra.mxu0 %v287
    %1056 = vmatprep.subr.mxu0 0.0
    %1057 = vmatpush1.msra.mxu0 %v288
    %1058 = vmatprep.subr.mxu0 0.0
    %1059 = vmatpush1.msra.mxu0 %v289
    %1060 = vmatprep.subr.mxu0 0.0
    %1061 = vmatpush1.msra.mxu0 %v290
    %1062 = vmatprep.subr.mxu0 0.0
    %1063 = vmatpush1.msra.mxu0 %v291
    %1064 = vmatprep.subr.mxu0 0.0
    %1065 = vmatpush1.msra.mxu0 %v292
    %1066 = vmatprep.subr.mxu0 0.0
    %1067 = vmatpush1.msra.mxu0 %v293
    %1068 = vmatprep.subr.mxu0 0.0
    %1069 = vmatpush1.msra.mxu0 %v294
    %1070 = vmatprep.subr.mxu0 0.0
    %1071 = vmatpush1.msra.mxu0 %v295
    %1072 = vmatprep.subr.mxu0 0.0
    %1073 = vmatpush1.msra.mxu0 %v296
    %1074 = vmatprep.subr.mxu0 0.0
    %1075 = vmatpush1.msra.mxu0 %v297
    %1076 = vmatprep.subr.mxu0 0.0
    %1077 = vmatpush1.msra.mxu0 %v298
    %1078 = vmatprep.subr.mxu0 0.0
    %1079 = vmatpush1.msra.mxu0 %v299
    %1080 = vmatprep.subr.mxu0 0.0
    %1081 = vmatpush1.msra.mxu0 %v300
    %1082 = vmatprep.subr.mxu0 0.0
    %1083 = vmatpush1.msra.mxu0 %v301
    %1084 = vmatprep.subr.mxu0 0.0
    %1085 = vmatpush1.msra.mxu0 %v302
    %1086 = vmatprep.subr.mxu0 0.0
    %1087 = vmatpush1.msra.mxu0 %v303
    %1088 = vmatprep.subr.mxu0 0.0
    %1089 = vmatpush1.msra.mxu0 %v304
    %1090 = vmatprep.mubr.f32.mxu0 %v952
    %1091 = vmatmul.mubr.f32.gmra.mrb[0].mxu0 %v1025
    %v1092 = vpop.f32.mrb[0].mxu0
    %v1093 = vadd.f32 %v305, %v1092
    %v1094 = vpop.f32.mrb[0].mxu0
    %1095 = vdwg.mxu0
    %v1096 = vtanh.pop %v1093
    %s1097 = scalar_lea.vmem [#allocation2], 48
    %v1098 = vld [vmem:[%s1097] sm:$0xff]
    %1099 = vmatprep.subr.mxu0 0.0
    %1100 = vmatpush1.msra.mxu0 %v169
    %1101 = vmatprep.subr.mxu0 0.0
    %1102 = vmatpush1.msra.mxu0 %v170
    %1103 = vmatprep.subr.mxu0 0.0
    %1104 = vmatpush1.msra.mxu0 %v171
    %1105 = vmatprep.subr.mxu0 0.0
    %1106 = vmatpush1.msra.mxu0 %v172
    %1107 = vmatprep.subr.mxu0 0.0
    %1108 = vmatpush1.msra.mxu0 %v173
    %1109 = vmatprep.subr.mxu0 0.0
    %1110 = vmatpush1.msra.mxu0 %v174
    %1111 = vmatprep.subr.mxu0 0.0
    %1112 = vmatpush1.msra.mxu0 %v175
    %1113 = vmatprep.subr.mxu0 0.0
    %1114 = vmatpush1.msra.mxu0 %v176
    %1115 = vmatprep.subr.mxu0 0.0
    %1116 = vmatpush1.msra.mxu0 %v177
    %1117 = vmatprep.subr.mxu0 0.0
    %1118 = vmatpush1.msra.mxu0 %v178
    %1119 = vmatprep.subr.mxu0 0.0
    %1120 = vmatpush1.msra.mxu0 %v179
    %1121 = vmatprep.subr.mxu0 0.0
    %1122 = vmatpush1.msra.mxu0 %v180
    %1123 = vmatprep.subr.mxu0 0.0
    %1124 = vmatpush1.msra.mxu0 %v181
    %1125 = vmatprep.subr.mxu0 0.0
    %1126 = vmatpush1.msra.mxu0 %v182
    %1127 = vmatprep.subr.mxu0 0.0
    %1128 = vmatpush1.msra.mxu0 %v183
    %1129 = vmatprep.subr.mxu0 0.0
    %1130 = vmatpush1.msra.mxu0 %v184
    %1131 = vmatprep.subr.mxu0 0.0
    %1132 = vmatpush1.msra.mxu0 %v185
    %1133 = vmatprep.subr.mxu0 0.0
    %1134 = vmatpush1.msra.mxu0 %v186
    %1135 = vmatprep.subr.mxu0 0.0
    %1136 = vmatpush1.msra.mxu0 %v187
    %1137 = vmatprep.subr.mxu0 0.0
    %1138 = vmatpush1.msra.mxu0 %v188
    %1139 = vmatprep.subr.mxu0 0.0
    %1140 = vmatpush1.msra.mxu0 %v189
    %1141 = vmatprep.subr.mxu0 0.0
    %1142 = vmatpush1.msra.mxu0 %v190
    %1143 = vmatprep.subr.mxu0 0.0
    %1144 = vmatpush1.msra.mxu0 %v191
    %1145 = vmatprep.subr.mxu0 0.0
    %1146 = vmatpush1.msra.mxu0 %v192
    %1147 = vmatprep.subr.mxu0 0.0
    %1148 = vmatpush1.msra.mxu0 %v193
    %1149 = vmatprep.subr.mxu0 0.0
    %1150 = vmatpush1.msra.mxu0 %v194
    %1151 = vmatprep.subr.mxu0 0.0
    %1152 = vmatpush1.msra.mxu0 %v195
    %1153 = vmatprep.subr.mxu0 0.0
    %1154 = vmatpush1.msra.mxu0 %v196
    %1155 = vmatprep.subr.mxu0 0.0
    %1156 = vmatpush1.msra.mxu0 %v197
    %1157 = vmatprep.subr.mxu0 0.0
    %1158 = vmatpush1.msra.mxu0 %v198
    %1159 = vmatprep.subr.mxu0 0.0
    %1160 = vmatpush1.msra.mxu0 %v199
    %1161 = vmatprep.subr.mxu0 0.0
    %1162 = vmatpush1.msra.mxu0 %v200
    %1163 = vmatprep.mubr.f32.mxu0 %v1025
    %1164 = vmatmul.mubr.f32.gmra.mrb[0].mxu0 %v1098
    %v1165 = vpop.f32.mrb[0].mxu0
    %v1166 = vadd.f32 %v201, %v1165
    %v1167 = vpop.f32.mrb[0].mxu0
    %1168 = vdwg.mxu0
    %v1169 = vtanh.pop %v1166
    %1170 = vmatprep.subr.mxu0 0.0
    %1171 = vmatpush1.msra.mxu0 %v273
    %1172 = vmatprep.subr.mxu0 0.0
    %1173 = vmatpush1.msra.mxu0 %v274
    %1174 = vmatprep.subr.mxu0 0.0
    %1175 = vmatpush1.msra.mxu0 %v275
    %1176 = vmatprep.subr.mxu0 0.0
    %1177 = vmatpush1.msra.mxu0 %v276
    %1178 = vmatprep.subr.mxu0 0.0
    %1179 = vmatpush1.msra.mxu0 %v277
    %1180 = vmatprep.subr.mxu0 0.0
    %1181 = vmatpush1.msra.mxu0 %v278
    %1182 = vmatprep.subr.mxu0 0.0
    %1183 = vmatpush1.msra.mxu0 %v279
    %1184 = vmatprep.subr.mxu0 0.0
    %1185 = vmatpush1.msra.mxu0 %v280
    %1186 = vmatprep.subr.mxu0 0.0
    %1187 = vmatpush1.msra.mxu0 %v281
    %1188 = vmatprep.subr.mxu0 0.0
    %1189 = vmatpush1.msra.mxu0 %v282
    %1190 = vmatprep.subr.mxu0 0.0
    %1191 = vmatpush1.msra.mxu0 %v283
    %1192 = vmatprep.subr.mxu0 0.0
    %1193 = vmatpush1.msra.mxu0 %v284
    %1194 = vmatprep.subr.mxu0 0.0
    %1195 = vmatpush1.msra.mxu0 %v285
    %1196 = vmatprep.subr.mxu0 0.0
    %1197 = vmatpush1.msra.mxu0 %v286
    %1198 = vmatprep.subr.mxu0 0.0
    %1199 = vmatpush1.msra.mxu0 %v287
    %1200 = vmatprep.subr.mxu0 0.0
    %1201 = vmatpush1.msra.mxu0 %v288
    %1202 = vmatprep.subr.mxu0 0.0
    %1203 = vmatpush1.msra.mxu0 %v289
    %1204 = vmatprep.subr.mxu0 0.0
    %1205 = vmatpush1.msra.mxu0 %v290
    %1206 = vmatprep.subr.mxu0 0.0
    %1207 = vmatpush1.msra.mxu0 %v291
    %1208 = vmatprep.subr.mxu0 0.0
    %1209 = vmatpush1.msra.mxu0 %v292
    %1210 = vmatprep.subr.mxu0 0.0
    %1211 = vmatpush1.msra.mxu0 %v293
    %1212 = vmatprep.subr.mxu0 0.0
    %1213 = vmatpush1.msra.mxu0 %v294
    %1214 = vmatprep.subr.mxu0 0.0
    %1215 = vmatpush1.msra.mxu0 %v295
    %1216 = vmatprep.subr.mxu0 0.0
    %1217 = vmatpush1.msra.mxu0 %v296
    %1218 = vmatprep.subr.mxu0 0.0
    %1219 = vmatpush1.msra.mxu0 %v297
    %1220 = vmatprep.subr.mxu0 0.0
    %1221 = vmatpush1.msra.mxu0 %v298
    %1222 = vmatprep.subr.mxu0 0.0
    %1223 = vmatpush1.msra.mxu0 %v299
    %1224 = vmatprep.subr.mxu0 0.0
    %1225 = vmatpush1.msra.mxu0 %v300
    %1226 = vmatprep.subr.mxu0 0.0
    %1227 = vmatpush1.msra.mxu0 %v301
    %1228 = vmatprep.subr.mxu0 0.0
    %1229 = vmatpush1.msra.mxu0 %v302
    %1230 = vmatprep.subr.mxu0 0.0
    %1231 = vmatpush1.msra.mxu0 %v303
    %1232 = vmatprep.subr.mxu0 0.0
    %1233 = vmatpush1.msra.mxu0 %v304
    %1234 = vmatprep.mubr.f32.mxu0 %v1096
    %1235 = vmatmul.mubr.f32.gmra.mrb[0].mxu0 %v1169
    %v1236 = vpop.f32.mrb[0].mxu0
    %v1237 = vadd.f32 %v305, %v1236
    %v1238 = vpop.f32.mrb[0].mxu0
    %1239 = vdwg.mxu0
    %v1240 = vtanh.pop %v1237
    %s1241 = scalar_lea.vmem [#allocation2], 56
    %v1242 = vld [vmem:[%s1241] sm:$0xff]
    %1243 = vmatprep.subr.mxu0 0.0
    %1244 = vmatpush1.msra.mxu0 %v169
    %1245 = vmatprep.subr.mxu0 0.0
    %1246 = vmatpush1.msra.mxu0 %v170
    %1247 = vmatprep.subr.mxu0 0.0
    %1248 = vmatpush1.msra.mxu0 %v171
    %1249 = vmatprep.subr.mxu0 0.0
    %1250 = vmatpush1.msra.mxu0 %v172
    %1251 = vmatprep.subr.mxu0 0.0
    %1252 = vmatpush1.msra.mxu0 %v173
    %1253 = vmatprep.subr.mxu0 0.0
    %1254 = vmatpush1.msra.mxu0 %v174
    %1255 = vmatprep.subr.mxu0 0.0
    %1256 = vmatpush1.msra.mxu0 %v175
    %1257 = vmatprep.subr.mxu0 0.0
    %1258 = vmatpush1.msra.mxu0 %v176
    %1259 = vmatprep.subr.mxu0 0.0
    %1260 = vmatpush1.msra.mxu0 %v177
    %1261 = vmatprep.subr.mxu0 0.0
    %1262 = vmatpush1.msra.mxu0 %v178
    %1263 = vmatprep.subr.mxu0 0.0
    %1264 = vmatpush1.msra.mxu0 %v179
    %1265 = vmatprep.subr.mxu0 0.0
    %1266 = vmatpush1.msra.mxu0 %v180
    %1267 = vmatprep.subr.mxu0 0.0
    %1268 = vmatpush1.msra.mxu0 %v181
    %1269 = vmatprep.subr.mxu0 0.0
    %1270 = vmatpush1.msra.mxu0 %v182
    %1271 = vmatprep.subr.mxu0 0.0
    %1272 = vmatpush1.msra.mxu0 %v183
    %1273 = vmatprep.subr.mxu0 0.0
    %1274 = vmatpush1.msra.mxu0 %v184
    %1275 = vmatprep.subr.mxu0 0.0
    %1276 = vmatpush1.msra.mxu0 %v185
    %1277 = vmatprep.subr.mxu0 0.0
    %1278 = vmatpush1.msra.mxu0 %v186
    %1279 = vmatprep.subr.mxu0 0.0
    %1280 = vmatpush1.msra.mxu0 %v187
    %1281 = vmatprep.subr.mxu0 0.0
    %1282 = vmatpush1.msra.mxu0 %v188
    %1283 = vmatprep.subr.mxu0 0.0
    %1284 = vmatpush1.msra.mxu0 %v189
    %1285 = vmatprep.subr.mxu0 0.0
    %1286 = vmatpush1.msra.mxu0 %v190
    %1287 = vmatprep.subr.mxu0 0.0
    %1288 = vmatpush1.msra.mxu0 %v191
    %1289 = vmatprep.subr.mxu0 0.0
    %1290 = vmatpush1.msra.mxu0 %v192
    %1291 = vmatprep.subr.mxu0 0.0
    %1292 = vmatpush1.msra.mxu0 %v193
    %1293 = vmatprep.subr.mxu0 0.0
    %1294 = vmatpush1.msra.mxu0 %v194
    %1295 = vmatprep.subr.mxu0 0.0
    %1296 = vmatpush1.msra.mxu0 %v195
    %1297 = vmatprep.subr.mxu0 0.0
    %1298 = vmatpush1.msra.mxu0 %v196
    %1299 = vmatprep.subr.mxu0 0.0
    %1300 = vmatpush1.msra.mxu0 %v197
    %1301 = vmatprep.subr.mxu0 0.0
    %1302 = vmatpush1.msra.mxu0 %v198
    %1303 = vmatprep.subr.mxu0 0.0
    %1304 = vmatpush1.msra.mxu0 %v199
    %1305 = vmatprep.subr.mxu0 0.0
    %1306 = vmatpush1.msra.mxu0 %v200
    %1307 = vmatprep.mubr.f32.mxu0 %v1169
    %1308 = vmatmul.mubr.f32.gmra.mrb[0].mxu0 %v1242
    %v1309 = vpop.f32.mrb[0].mxu0
    %v1310 = vadd.f32 %v201, %v1309
    %v1311 = vpop.f32.mrb[0].mxu0
    %1312 = vdwg.mxu0
    %v1313 = vtanh.pop %v1310
    %1314 = vmatprep.subr.mxu0 0.0
    %1315 = vmatpush1.msra.mxu0 %v273
    %1316 = vmatprep.subr.mxu0 0.0
    %1317 = vmatpush1.msra.mxu0 %v274
    %1318 = vmatprep.subr.mxu0 0.0
    %1319 = vmatpush1.msra.mxu0 %v275
    %1320 = vmatprep.subr.mxu0 0.0
    %1321 = vmatpush1.msra.mxu0 %v276
    %1322 = vmatprep.subr.mxu0 0.0
    %1323 = vmatpush1.msra.mxu0 %v277
    %1324 = vmatprep.subr.mxu0 0.0
    %1325 = vmatpush1.msra.mxu0 %v278
    %1326 = vmatprep.subr.mxu0 0.0
    %1327 = vmatpush1.msra.mxu0 %v279
    %1328 = vmatprep.subr.mxu0 0.0
    %1329 = vmatpush1.msra.mxu0 %v280
    %1330 = vmatprep.subr.mxu0 0.0
    %1331 = vmatpush1.msra.mxu0 %v281
    %1332 = vmatprep.subr.mxu0 0.0
    %1333 = vmatpush1.msra.mxu0 %v282
    %1334 = vmatprep.subr.mxu0 0.0
    %1335 = vmatpush1.msra.mxu0 %v283
    %1336 = vmatprep.subr.mxu0 0.0
    %1337 = vmatpush1.msra.mxu0 %v284
    %1338 = vmatprep.subr.mxu0 0.0
    %1339 = vmatpush1.msra.mxu0 %v285
    %1340 = vmatprep.subr.mxu0 0.0
    %1341 = vmatpush1.msra.mxu0 %v286
    %1342 = vmatprep.subr.mxu0 0.0
    %1343 = vmatpush1.msra.mxu0 %v287
    %1344 = vmatprep.subr.mxu0 0.0
    %1345 = vmatpush1.msra.mxu0 %v288
    %1346 = vmatprep.subr.mxu0 0.0
    %1347 = vmatpush1.msra.mxu0 %v289
    %1348 = vmatprep.subr.mxu0 0.0
    %1349 = vmatpush1.msra.mxu0 %v290
    %1350 = vmatprep.subr.mxu0 0.0
    %1351 = vmatpush1.msra.mxu0 %v291
    %1352 = vmatprep.subr.mxu0 0.0
    %1353 = vmatpush1.msra.mxu0 %v292
    %1354 = vmatprep.subr.mxu0 0.0
    %1355 = vmatpush1.msra.mxu0 %v293
    %1356 = vmatprep.subr.mxu0 0.0
    %1357 = vmatpush1.msra.mxu0 %v294
    %1358 = vmatprep.subr.mxu0 0.0
    %1359 = vmatpush1.msra.mxu0 %v295
    %1360 = vmatprep.subr.mxu0 0.0
    %1361 = vmatpush1.msra.mxu0 %v296
    %1362 = vmatprep.subr.mxu0 0.0
    %1363 = vmatpush1.msra.mxu0 %v297
    %1364 = vmatprep.subr.mxu0 0.0
    %1365 = vmatpush1.msra.mxu0 %v298
    %1366 = vmatprep.subr.mxu0 0.0
    %1367 = vmatpush1.msra.mxu0 %v299
    %1368 = vmatprep.subr.mxu0 0.0
    %1369 = vmatpush1.msra.mxu0 %v300
    %1370 = vmatprep.subr.mxu0 0.0
    %1371 = vmatpush1.msra.mxu0 %v301
    %1372 = vmatprep.subr.mxu0 0.0
    %1373 = vmatpush1.msra.mxu0 %v302
    %1374 = vmatprep.subr.mxu0 0.0
    %1375 = vmatpush1.msra.mxu0 %v303
    %1376 = vmatprep.subr.mxu0 0.0
    %1377 = vmatpush1.msra.mxu0 %v304
    %1378 = vmatprep.mubr.f32.mxu0 %v1240
    %1379 = vmatmul.mubr.f32.gmra.mrb[0].mxu0 %v1313
    %v1380 = vpop.f32.mrb[0].mxu0
    %v1381 = vadd.f32 %v305, %v1380
    %v1382 = vpop.f32.mrb[0].mxu0
    %1383 = vdwg.mxu0
    %v1384 = vtanh.pop %v1381
    %v1385 = vld [vmem:[#allocation10] sm:$0xff]
    %v1386 = vld [vmem:[#allocation10 + $0x8] sm:$0xff]
    %v1387 = vld [vmem:[#allocation10 + $0x10] sm:$0xff]
    %v1388 = vld [vmem:[#allocation10 + $0x18] sm:$0xff]
    %v1389 = vld [vmem:[#allocation10 + $0x20] sm:$0xff]
    %v1390 = vld [vmem:[#allocation10 + $0x28] sm:$0xff]
    %v1391 = vld [vmem:[#allocation10 + $0x30] sm:$0xff]
    %v1392 = vld [vmem:[#allocation10 + $0x38] sm:$0xff]
    %v1393 = vld [vmem:[#allocation10 + $0x40] sm:$0xff]
    %v1394 = vld [vmem:[#allocation10 + $0x48] sm:$0xff]
    %v1395 = vld [vmem:[#allocation10 + $0x50] sm:$0xff]
    %v1396 = vld [vmem:[#allocation10 + $0x58] sm:$0xff]
    %v1397 = vld [vmem:[#allocation10 + $0x60] sm:$0xff]
    %v1398 = vld [vmem:[#allocation10 + $0x68] sm:$0xff]
    %v1399 = vld [vmem:[#allocation10 + $0x70] sm:$0xff]
    %v1400 = vld [vmem:[#allocation10 + $0x78] sm:$0xff]
    %v1401 = vld [vmem:[#allocation11] sm:$0xff]
    %v1402 = vld [vmem:[#allocation11 + $0x8] sm:$0xff]
    %v1403 = vld [vmem:[#allocation11 + $0x10] sm:$0xff]
    %v1404 = vld [vmem:[#allocation11 + $0x18] sm:$0xff]
    %v1405 = vld [vmem:[#allocation11 + $0x20] sm:$0xff]
    %v1406 = vld [vmem:[#allocation11 + $0x28] sm:$0xff]
    %v1407 = vld [vmem:[#allocation11 + $0x30] sm:$0xff]
    %v1408 = vld [vmem:[#allocation11 + $0x38] sm:$0xff]
    %v1409 = vld [vmem:[#allocation11 + $0x40] sm:$0xff]
    %v1410 = vld [vmem:[#allocation11 + $0x48] sm:$0xff]
    %v1411 = vld [vmem:[#allocation11 + $0x50] sm:$0xff]
    %v1412 = vld [vmem:[#allocation11 + $0x58] sm:$0xff]
    %v1413 = vld [vmem:[#allocation11 + $0x60] sm:$0xff]
    %v1414 = vld [vmem:[#allocation11 + $0x68] sm:$0xff]
    %v1415 = vld [vmem:[#allocation11 + $0x70] sm:$0xff]
    %v1416 = vld [vmem:[#allocation11 + $0x78] sm:$0xff]
    %1417 = vmatprep.subr.mxu0 0.0
    %1418 = vmatpush1.msra.mxu0 %v1401
    %1419 = vmatprep.subr.mxu0 0.0
    %1420 = vmatpush1.msra.mxu0 %v1402
    %1421 = vmatprep.subr.mxu0 0.0
    %1422 = vmatpush1.msra.mxu0 %v1403
    %1423 = vmatprep.subr.mxu0 0.0
    %1424 = vmatpush1.msra.mxu0 %v1404
    %1425 = vmatprep.subr.mxu0 0.0
    %1426 = vmatpush1.msra.mxu0 %v1405
    %1427 = vmatprep.subr.mxu0 0.0
    %1428 = vmatpush1.msra.mxu0 %v1406
    %1429 = vmatprep.subr.mxu0 0.0
    %1430 = vmatpush1.msra.mxu0 %v1407
    %1431 = vmatprep.subr.mxu0 0.0
    %1432 = vmatpush1.msra.mxu0 %v1408
    %1433 = vmatprep.subr.mxu0 0.0
    %1434 = vmatpush1.msra.mxu0 %v1409
    %1435 = vmatprep.subr.mxu0 0.0
    %1436 = vmatpush1.msra.mxu0 %v1410
    %1437 = vmatprep.subr.mxu0 0.0
    %1438 = vmatpush1.msra.mxu0 %v1411
    %1439 = vmatprep.subr.mxu0 0.0
    %1440 = vmatpush1.msra.mxu0 %v1412
    %1441 = vmatprep.subr.mxu0 0.0
    %1442 = vmatpush1.msra.mxu0 %v1413
    %1443 = vmatprep.subr.mxu0 0.0
    %1444 = vmatpush1.msra.mxu0 %v1414
    %1445 = vmatprep.subr.mxu0 0.0
    %1446 = vmatpush1.msra.mxu0 %v1415
    %1447 = vmatprep.subr.mxu0 0.0
    %1448 = vmatpush1.msra.mxu0 %v1416
    %1449 = vmatprep.subr.mxu0 0.0
    %1450 = vmatpush1.msra.mxu0 0.0
    %1451 = vmatprep.subr.mxu0 0.0
    %1452 = vmatpush1.msra.mxu0 0.0
    %1453 = vmatprep.subr.mxu0 0.0
    %1454 = vmatpush1.msra.mxu0 0.0
    %1455 = vmatprep.subr.mxu0 0.0
    %1456 = vmatpush1.msra.mxu0 0.0
    %1457 = vmatprep.subr.mxu0 0.0
    %1458 = vmatpush1.msra.mxu0 0.0
    %1459 = vmatprep.subr.mxu0 0.0
    %1460 = vmatpush1.msra.mxu0 0.0
    %1461 = vmatprep.subr.mxu0 0.0
    %1462 = vmatpush1.msra.mxu0 0.0
    %1463 = vmatprep.subr.mxu0 0.0
    %1464 = vmatpush1.msra.mxu0 0.0
    %1465 = vmatprep.subr.mxu0 0.0
    %1466 = vmatpush1.msra.mxu0 0.0
    %1467 = vmatprep.subr.mxu0 0.0
    %1468 = vmatpush1.msra.mxu0 0.0
    %1469 = vmatprep.subr.mxu0 0.0
    %1470 = vmatpush1.msra.mxu0 0.0
    %1471 = vmatprep.subr.mxu0 0.0
    %1472 = vmatpush1.msra.mxu0 0.0
    %1473 = vmatprep.subr.mxu0 0.0
    %1474 = vmatpush1.msra.mxu0 0.0
    %1475 = vmatprep.subr.mxu0 0.0
    %1476 = vmatpush1.msra.mxu0 0.0
    %1477 = vmatprep.subr.mxu0 0.0
    %1478 = vmatpush1.msra.mxu0 0.0
    %1479 = vmatprep.subr.mxu0 0.0
    %1480 = vmatpush1.msra.mxu0 0.0
    %1481 = vmatprep.mubr.f32.mxu0 0.0
    %1482 = vmatmul.mubr.f32.gmra.mrb[0].mxu0 %v1313
    %v1483 = vpop.f32.mrb[0].mxu0
    %v1484 = vadd.f32 0.0, %v1483
    %v1485 = vpop.f32.mrb[0].mxu0
    %1486 = vdwg.mxu0
    %1487 = vmatprep.subr.mxu0 0.0
    %1488 = vmatpush1.msra.mxu0 %v1385
    %1489 = vmatprep.subr.mxu0 0.0
    %1490 = vmatpush1.msra.mxu0 %v1386
    %1491 = vmatprep.subr.mxu0 0.0
    %1492 = vmatpush1.msra.mxu0 %v1387
    %1493 = vmatprep.subr.mxu0 0.0
    %1494 = vmatpush1.msra.mxu0 %v1388
    %1495 = vmatprep.subr.mxu0 0.0
    %1496 = vmatpush1.msra.mxu0 %v1389
    %1497 = vmatprep.subr.mxu0 0.0
    %1498 = vmatpush1.msra.mxu0 %v1390
    %1499 = vmatprep.subr.mxu0 0.0
    %1500 = vmatpush1.msra.mxu0 %v1391
    %1501 = vmatprep.subr.mxu0 0.0
    %1502 = vmatpush1.msra.mxu0 %v1392
    %1503 = vmatprep.subr.mxu0 0.0
    %1504 = vmatpush1.msra.mxu0 %v1393
    %1505 = vmatprep.subr.mxu0 0.0
    %1506 = vmatpush1.msra.mxu0 %v1394
    %1507 = vmatprep.subr.mxu0 0.0
    %1508 = vmatpush1.msra.mxu0 %v1395
    %1509 = vmatprep.subr.mxu0 0.0
    %1510 = vmatpush1.msra.mxu0 %v1396
    %1511 = vmatprep.subr.mxu0 0.0
    %1512 = vmatpush1.msra.mxu0 %v1397
    %1513 = vmatprep.subr.mxu0 0.0
    %1514 = vmatpush1.msra.mxu0 %v1398
    %1515 = vmatprep.subr.mxu0 0.0
    %1516 = vmatpush1.msra.mxu0 %v1399
    %1517 = vmatprep.subr.mxu0 0.0
    %1518 = vmatpush1.msra.mxu0 %v1400
    %1519 = vmatprep.subr.mxu0 0.0
    %1520 = vmatpush1.msra.mxu0 0.0
    %1521 = vmatprep.subr.mxu0 0.0
    %1522 = vmatpush1.msra.mxu0 0.0
    %1523 = vmatprep.subr.mxu0 0.0
    %1524 = vmatpush1.msra.mxu0 0.0
    %1525 = vmatprep.subr.mxu0 0.0
    %1526 = vmatpush1.msra.mxu0 0.0
    %1527 = vmatprep.subr.mxu0 0.0
    %1528 = vmatpush1.msra.mxu0 0.0
    %1529 = vmatprep.subr.mxu0 0.0
    %1530 = vmatpush1.msra.mxu0 0.0
    %1531 = vmatprep.subr.mxu0 0.0
    %1532 = vmatpush1.msra.mxu0 0.0
    %1533 = vmatprep.subr.mxu0 0.0
    %1534 = vmatpush1.msra.mxu0 0.0
    %1535 = vmatprep.subr.mxu0 0.0
    %1536 = vmatpush1.msra.mxu0 0.0
    %1537 = vmatprep.subr.mxu0 0.0
    %1538 = vmatpush1.msra.mxu0 0.0
    %1539 = vmatprep.subr.mxu0 0.0
    %1540 = vmatpush1.msra.mxu0 0.0
    %1541 = vmatprep.subr.mxu0 0.0
    %1542 = vmatpush1.msra.mxu0 0.0
    %1543 = vmatprep.subr.mxu0 0.0
    %1544 = vmatpush1.msra.mxu0 0.0
    %1545 = vmatprep.subr.mxu0 0.0
    %1546 = vmatpush1.msra.mxu0 0.0
    %1547 = vmatprep.subr.mxu0 0.0
    %1548 = vmatpush1.msra.mxu0 0.0
    %1549 = vmatprep.subr.mxu0 0.0
    %1550 = vmatpush1.msra.mxu0 0.0
    %1551 = vmatprep.mubr.f32.mxu0 0.0
    %1552 = vmatmul.mubr.f32.gmra.mrb[0].mxu0 %v1384
    %v1553 = vpop.f32.mrb[0].mxu0
    %v1554 = vadd.f32 %v1484, %v1553
    %v1555 = vpop.f32.mrb[0].mxu0
    %1556 = vdwg.mxu0
    %v1557 = vld [vmem:[%s7] sm:$0xff]
    %v1558 = vadd.f32 %v1554, %v1557
    %v1559 = vtanh.pop %v1558
    %v1560 = vld [vmem:[#allocation14] sm:$0xff]
    %v1561 = vld [vmem:[#allocation14 + $0x8] sm:$0xff]
    %v1562 = vld [vmem:[#allocation14 + $0x10] sm:$0xff]
    %v1563 = vld [vmem:[#allocation14 + $0x18] sm:$0xff]
    %v1564 = vld [vmem:[#allocation14 + $0x20] sm:$0xff]
    %v1565 = vld [vmem:[#allocation14 + $0x28] sm:$0xff]
    %v1566 = vld [vmem:[#allocation14 + $0x30] sm:$0xff]
    %v1567 = vld [vmem:[#allocation14 + $0x38] sm:$0xff]
    %v1568 = vld [vmem:[#allocation14 + $0x40] sm:$0xff]
    %v1569 = vld [vmem:[#allocation14 + $0x48] sm:$0xff]
    %v1570 = vld [vmem:[#allocation14 + $0x50] sm:$0xff]
    %v1571 = vld [vmem:[#allocation14 + $0x58] sm:$0xff]
    %v1572 = vld [vmem:[#allocation14 + $0x60] sm:$0xff]
    %v1573 = vld [vmem:[#allocation14 + $0x68] sm:$0xff]
    %v1574 = vld [vmem:[#allocation14 + $0x70] sm:$0xff]
    %v1575 = vld [vmem:[#allocation14 + $0x78] sm:$0xff]
    %v1576 = vld [vmem:[%s11] sm:$0xff]
    %1577 = vmatprep.subr.mxu0 0.0
    %1578 = vmatpush1.msra.mxu0 %v1560
    %1579 = vmatprep.subr.mxu0 0.0
    %1580 = vmatpush1.msra.mxu0 %v1561
    %1581 = vmatprep.subr.mxu0 0.0
    %1582 = vmatpush1.msra.mxu0 %v1562
    %1583 = vmatprep.subr.mxu0 0.0
    %1584 = vmatpush1.msra.mxu0 %v1563
    %1585 = vmatprep.subr.mxu0 0.0
    %1586 = vmatpush1.msra.mxu0 %v1564
    %1587 = vmatprep.subr.mxu0 0.0
    %1588 = vmatpush1.msra.mxu0 %v1565
    %1589 = vmatprep.subr.mxu0 0.0
    %1590 = vmatpush1.msra.mxu0 %v1566
    %1591 = vmatprep.subr.mxu0 0.0
    %1592 = vmatpush1.msra.mxu0 %v1567
    %1593 = vmatprep.subr.mxu0 0.0
    %1594 = vmatpush1.msra.mxu0 %v1568
    %1595 = vmatprep.subr.mxu0 0.0
    %1596 = vmatpush1.msra.mxu0 %v1569
    %1597 = vmatprep.subr.mxu0 0.0
    %1598 = vmatpush1.msra.mxu0 %v1570
    %1599 = vmatprep.subr.mxu0 0.0
    %1600 = vmatpush1.msra.mxu0 %v1571
    %1601 = vmatprep.subr.mxu0 0.0
    %1602 = vmatpush1.msra.mxu0 %v1572
    %1603 = vmatprep.subr.mxu0 0.0
    %1604 = vmatpush1.msra.mxu0 %v1573
    %1605 = vmatprep.subr.mxu0 0.0
    %1606 = vmatpush1.msra.mxu0 %v1574
    %1607 = vmatprep.subr.mxu0 0.0
    %1608 = vmatpush1.msra.mxu0 %v1575
    %1609 = vmatprep.subr.mxu0 0.0
    %1610 = vmatpush1.msra.mxu0 0.0
    %1611 = vmatprep.subr.mxu0 0.0
    %1612 = vmatpush1.msra.mxu0 0.0
    %1613 = vmatprep.subr.mxu0 0.0
    %1614 = vmatpush1.msra.mxu0 0.0
    %1615 = vmatprep.subr.mxu0 0.0
    %1616 = vmatpush1.msra.mxu0 0.0
    %1617 = vmatprep.subr.mxu0 0.0
    %1618 = vmatpush1.msra.mxu0 0.0
    %1619 = vmatprep.subr.mxu0 0.0
    %1620 = vmatpush1.msra.mxu0 0.0
    %1621 = vmatprep.subr.mxu0 0.0
    %1622 = vmatpush1.msra.mxu0 0.0
    %1623 = vmatprep.subr.mxu0 0.0
    %1624 = vmatpush1.msra.mxu0 0.0
    %1625 = vmatprep.subr.mxu0 0.0
    %1626 = vmatpush1.msra.mxu0 0.0
    %1627 = vmatprep.subr.mxu0 0.0
    %1628 = vmatpush1.msra.mxu0 0.0
    %1629 = vmatprep.subr.mxu0 0.0
    %1630 = vmatpush1.msra.mxu0 0.0
    %1631 = vmatprep.subr.mxu0 0.0
    %1632 = vmatpush1.msra.mxu0 0.0
    %1633 = vmatprep.subr.mxu0 0.0
    %1634 = vmatpush1.msra.mxu0 0.0
    %1635 = vmatprep.subr.mxu0 0.0
    %1636 = vmatpush1.msra.mxu0 0.0
    %1637 = vmatprep.subr.mxu0 0.0
    %1638 = vmatpush1.msra.mxu0 0.0
    %1639 = vmatprep.subr.mxu0 0.0
    %1640 = vmatpush1.msra.mxu0 0.0
    %1641 = vmatprep.mubr.f32.mxu0 0.0
    %1642 = vmatmul.mubr.f32.gmra.mrb[0].mxu0 %v1559
    %v1643 = vpop.f32.mrb[0].mxu0
    %v1644 = vadd.f32 %v1576, %v1643
    %v1645 = vpop.f32.mrb[0].mxu0
    %1646 = vdwg.mxu0
    %v1647 = vtanh.pop %v1644
    %v1648 = vld [vmem:[#allocation16] sm:$0xff]
    %v1649 = vld [vmem:[#allocation16 + $0x8] sm:$0xff]
    %v1650 = vld [vmem:[#allocation16 + $0x10] sm:$0xff]
    %v1651 = vld [vmem:[#allocation16 + $0x18] sm:$0xff]
    %v1652 = vld [vmem:[#allocation16 + $0x20] sm:$0xff]
    %v1653 = vld [vmem:[#allocation16 + $0x28] sm:$0xff]
    %v1654 = vld [vmem:[#allocation16 + $0x30] sm:$0xff]
    %v1655 = vld [vmem:[#allocation16 + $0x38] sm:$0xff]
    %v1656 = vld [vmem:[#allocation16 + $0x40] sm:$0xff]
    %v1657 = vld [vmem:[#allocation16 + $0x48] sm:$0xff]
    %v1658 = vld [vmem:[#allocation16 + $0x50] sm:$0xff]
    %v1659 = vld [vmem:[#allocation16 + $0x58] sm:$0xff]
    %v1660 = vld [vmem:[#allocation16 + $0x60] sm:$0xff]
    %v1661 = vld [vmem:[#allocation16 + $0x68] sm:$0xff]
    %v1662 = vld [vmem:[#allocation16 + $0x70] sm:$0xff]
    %v1663 = vld [vmem:[#allocation16 + $0x78] sm:$0xff]
    %v1664 = vld [vmem:[%s13] sm:$0xff]
    %1665 = vmatprep.subr.mxu0 0.0
    %1666 = vmatpush1.msra.mxu0 %v1648
    %1667 = vmatprep.subr.mxu0 0.0
    %1668 = vmatpush1.msra.mxu0 %v1649
    %1669 = vmatprep.subr.mxu0 0.0
    %1670 = vmatpush1.msra.mxu0 %v1650
    %1671 = vmatprep.subr.mxu0 0.0
    %1672 = vmatpush1.msra.mxu0 %v1651
    %1673 = vmatprep.subr.mxu0 0.0
    %1674 = vmatpush1.msra.mxu0 %v1652
    %1675 = vmatprep.subr.mxu0 0.0
    %1676 = vmatpush1.msra.mxu0 %v1653
    %1677 = vmatprep.subr.mxu0 0.0
    %1678 = vmatpush1.msra.mxu0 %v1654
    %1679 = vmatprep.subr.mxu0 0.0
    %1680 = vmatpush1.msra.mxu0 %v1655
    %1681 = vmatprep.subr.mxu0 0.0
    %1682 = vmatpush1.msra.mxu0 %v1656
    %1683 = vmatprep.subr.mxu0 0.0
    %1684 = vmatpush1.msra.mxu0 %v1657
    %1685 = vmatprep.subr.mxu0 0.0
    %1686 = vmatpush1.msra.mxu0 %v1658
    %1687 = vmatprep.subr.mxu0 0.0
    %1688 = vmatpush1.msra.mxu0 %v1659
    %1689 = vmatprep.subr.mxu0 0.0
    %1690 = vmatpush1.msra.mxu0 %v1660
    %1691 = vmatprep.subr.mxu0 0.0
    %1692 = vmatpush1.msra.mxu0 %v1661
    %1693 = vmatprep.subr.mxu0 0.0
    %1694 = vmatpush1.msra.mxu0 %v1662
    %1695 = vmatprep.subr.mxu0 0.0
    %1696 = vmatpush1.msra.mxu0 %v1663
    %1697 = vmatprep.subr.mxu0 0.0
    %1698 = vmatpush1.msra.mxu0 0.0
    %1699 = vmatprep.subr.mxu0 0.0
    %1700 = vmatpush1.msra.mxu0 0.0
    %1701 = vmatprep.subr.mxu0 0.0
    %1702 = vmatpush1.msra.mxu0 0.0
    %1703 = vmatprep.subr.mxu0 0.0
    %1704 = vmatpush1.msra.mxu0 0.0
    %1705 = vmatprep.subr.mxu0 0.0
    %1706 = vmatpush1.msra.mxu0 0.0
    %1707 = vmatprep.subr.mxu0 0.0
    %1708 = vmatpush1.msra.mxu0 0.0
    %1709 = vmatprep.subr.mxu0 0.0
    %1710 = vmatpush1.msra.mxu0 0.0
    %1711 = vmatprep.subr.mxu0 0.0
    %1712 = vmatpush1.msra.mxu0 0.0
    %1713 = vmatprep.subr.mxu0 0.0
    %1714 = vmatpush1.msra.mxu0 0.0
    %1715 = vmatprep.subr.mxu0 0.0
    %1716 = vmatpush1.msra.mxu0 0.0
    %1717 = vmatprep.subr.mxu0 0.0
    %1718 = vmatpush1.msra.mxu0 0.0
    %1719 = vmatprep.subr.mxu0 0.0
    %1720 = vmatpush1.msra.mxu0 0.0
    %1721 = vmatprep.subr.mxu0 0.0
    %1722 = vmatpush1.msra.mxu0 0.0
    %1723 = vmatprep.subr.mxu0 0.0
    %1724 = vmatpush1.msra.mxu0 0.0
    %1725 = vmatprep.subr.mxu0 0.0
    %1726 = vmatpush1.msra.mxu0 0.0
    %1727 = vmatprep.subr.mxu0 0.0
    %1728 = vmatpush1.msra.mxu0 0.0
    %1729 = vmatprep.mubr.f32.mxu0 0.0
    %1730 = vmatmul.mubr.f32.gmra.mrb[0].mxu0 %v1647
    %v1731 = vpop.f32.mrb[0].mxu0
    %v1732 = vadd.f32 %v1664, %v1731
    %v1733 = vpop.f32.mrb[0].mxu0
    %1734 = vdwg.mxu0
    %1735 = vst [vmem:[#allocation17] sm:$0xff] %v1732
    %v1736 = vld [vmem:[#allocation13] sm:$0xff]
    %v1737 = vld [vmem:[#allocation13 + $0x8] sm:$0xff]
    %v1738 = vld [vmem:[#allocation13 + $0x10] sm:$0xff]
    %v1739 = vld [vmem:[#allocation13 + $0x18] sm:$0xff]
    %v1740 = vld [vmem:[#allocation13 + $0x20] sm:$0xff]
    %v1741 = vld [vmem:[#allocation13 + $0x28] sm:$0xff]
    %v1742 = vld [vmem:[#allocation13 + $0x30] sm:$0xff]
    %v1743 = vld [vmem:[#allocation13 + $0x38] sm:$0xff]
    %v1744 = vld [vmem:[#allocation13 + $0x40] sm:$0xff]
    %v1745 = vld [vmem:[#allocation13 + $0x48] sm:$0xff]
    %v1746 = vld [vmem:[#allocation13 + $0x50] sm:$0xff]
    %v1747 = vld [vmem:[#allocation13 + $0x58] sm:$0xff]
    %v1748 = vld [vmem:[#allocation13 + $0x60] sm:$0xff]
    %v1749 = vld [vmem:[#allocation13 + $0x68] sm:$0xff]
    %v1750 = vld [vmem:[#allocation13 + $0x70] sm:$0xff]
    %v1751 = vld [vmem:[#allocation13 + $0x78] sm:$0xff]
    %v1752 = vld [vmem:[%s9] sm:$0xff]
    %1753 = vmatprep.subr.mxu0 0.0
    %1754 = vmatpush1.msra.mxu0 %v1736
    %1755 = vmatprep.subr.mxu0 0.0
    %1756 = vmatpush1.msra.mxu0 %v1737
    %1757 = vmatprep.subr.mxu0 0.0
    %1758 = vmatpush1.msra.mxu0 %v1738
    %1759 = vmatprep.subr.mxu0 0.0
    %1760 = vmatpush1.msra.mxu0 %v1739
    %1761 = vmatprep.subr.mxu0 0.0
    %1762 = vmatpush1.msra.mxu0 %v1740
    %1763 = vmatprep.subr.mxu0 0.0
    %1764 = vmatpush1.msra.mxu0 %v1741
    %1765 = vmatprep.subr.mxu0 0.0
    %1766 = vmatpush1.msra.mxu0 %v1742
    %1767 = vmatprep.subr.mxu0 0.0
    %1768 = vmatpush1.msra.mxu0 %v1743
    %1769 = vmatprep.subr.mxu0 0.0
    %1770 = vmatpush1.msra.mxu0 %v1744
    %1771 = vmatprep.subr.mxu0 0.0
    %1772 = vmatpush1.msra.mxu0 %v1745
    %1773 = vmatprep.subr.mxu0 0.0
    %1774 = vmatpush1.msra.mxu0 %v1746
    %1775 = vmatprep.subr.mxu0 0.0
    %1776 = vmatpush1.msra.mxu0 %v1747
    %1777 = vmatprep.subr.mxu0 0.0
    %1778 = vmatpush1.msra.mxu0 %v1748
    %1779 = vmatprep.subr.mxu0 0.0
    %1780 = vmatpush1.msra.mxu0 %v1749
    %1781 = vmatprep.subr.mxu0 0.0
    %1782 = vmatpush1.msra.mxu0 %v1750
    %1783 = vmatprep.subr.mxu0 0.0
    %1784 = vmatpush1.msra.mxu0 %v1751
    %1785 = vmatprep.subr.mxu0 0.0
    %1786 = vmatpush1.msra.mxu0 0.0
    %1787 = vmatprep.subr.mxu0 0.0
    %1788 = vmatpush1.msra.mxu0 0.0
    %1789 = vmatprep.subr.mxu0 0.0
    %1790 = vmatpush1.msra.mxu0 0.0
    %1791 = vmatprep.subr.mxu0 0.0
    %1792 = vmatpush1.msra.mxu0 0.0
    %1793 = vmatprep.subr.mxu0 0.0
    %1794 = vmatpush1.msra.mxu0 0.0
    %1795 = vmatprep.subr.mxu0 0.0
    %1796 = vmatpush1.msra.mxu0 0.0
    %1797 = vmatprep.subr.mxu0 0.0
    %1798 = vmatpush1.msra.mxu0 0.0
    %1799 = vmatprep.subr.mxu0 0.0
    %1800 = vmatpush1.msra.mxu0 0.0
    %1801 = vmatprep.subr.mxu0 0.0
    %1802 = vmatpush1.msra.mxu0 0.0
    %1803 = vmatprep.subr.mxu0 0.0
    %1804 = vmatpush1.msra.mxu0 0.0
    %1805 = vmatprep.subr.mxu0 0.0
    %1806 = vmatpush1.msra.mxu0 0.0
    %1807 = vmatprep.subr.mxu0 0.0
    %1808 = vmatpush1.msra.mxu0 0.0
    %1809 = vmatprep.subr.mxu0 0.0
    %1810 = vmatpush1.msra.mxu0 0.0
    %1811 = vmatprep.subr.mxu0 0.0
    %1812 = vmatpush1.msra.mxu0 0.0
    %1813 = vmatprep.subr.mxu0 0.0
    %1814 = vmatpush1.msra.mxu0 0.0
    %1815 = vmatprep.subr.mxu0 0.0
    %1816 = vmatpush1.msra.mxu0 0.0
    %1817 = vmatprep.mubr.f32.mxu0 0.0
    %1818 = vmatmul.mubr.f32.gmra.mrb[0].mxu0 %v1647
    %v1819 = vpop.f32.mrb[0].mxu0
    %v1820 = vadd.f32 %v1752, %v1819
    %v1821 = vpop.f32.mrb[0].mxu0
    %1822 = vdwg.mxu0
    %v1823 = vtanh.pop %v1820
    %v1824 = vld [vmem:[#allocation14] sm:$0xff]
    %v1825 = vld [vmem:[#allocation14 + $0x8] sm:$0xff]
    %v1826 = vld [vmem:[#allocation14 + $0x10] sm:$0xff]
    %v1827 = vld [vmem:[#allocation14 + $0x18] sm:$0xff]
    %v1828 = vld [vmem:[#allocation14 + $0x20] sm:$0xff]
    %v1829 = vld [vmem:[#allocation14 + $0x28] sm:$0xff]
    %v1830 = vld [vmem:[#allocation14 + $0x30] sm:$0xff]
    %v1831 = vld [vmem:[#allocation14 + $0x38] sm:$0xff]
    %v1832 = vld [vmem:[#allocation14 + $0x40] sm:$0xff]
    %v1833 = vld [vmem:[#allocation14 + $0x48] sm:$0xff]
    %v1834 = vld [vmem:[#allocation14 + $0x50] sm:$0xff]
    %v1835 = vld [vmem:[#allocation14 + $0x58] sm:$0xff]
    %v1836 = vld [vmem:[#allocation14 + $0x60] sm:$0xff]
    %v1837 = vld [vmem:[#allocation14 + $0x68] sm:$0xff]
    %v1838 = vld [vmem:[#allocation14 + $0x70] sm:$0xff]
    %v1839 = vld [vmem:[#allocation14 + $0x78] sm:$0xff]
    %v1840 = vld [vmem:[%s11] sm:$0xff]
    %1841 = vmatprep.subr.mxu0 0.0
    %1842 = vmatpush1.msra.mxu0 %v1824
    %1843 = vmatprep.subr.mxu0 0.0
    %1844 = vmatpush1.msra.mxu0 %v1825
    %1845 = vmatprep.subr.mxu0 0.0
    %1846 = vmatpush1.msra.mxu0 %v1826
    %1847 = vmatprep.subr.mxu0 0.0
    %1848 = vmatpush1.msra.mxu0 %v1827
    %1849 = vmatprep.subr.mxu0 0.0
    %1850 = vmatpush1.msra.mxu0 %v1828
    %1851 = vmatprep.subr.mxu0 0.0
    %1852 = vmatpush1.msra.mxu0 %v1829
    %1853 = vmatprep.subr.mxu0 0.0
    %1854 = vmatpush1.msra.mxu0 %v1830
    %1855 = vmatprep.subr.mxu0 0.0
    %1856 = vmatpush1.msra.mxu0 %v1831
    %1857 = vmatprep.subr.mxu0 0.0
    %1858 = vmatpush1.msra.mxu0 %v1832
    %1859 = vmatprep.subr.mxu0 0.0
    %1860 = vmatpush1.msra.mxu0 %v1833
    %1861 = vmatprep.subr.mxu0 0.0
    %1862 = vmatpush1.msra.mxu0 %v1834
    %1863 = vmatprep.subr.mxu0 0.0
    %1864 = vmatpush1.msra.mxu0 %v1835
    %1865 = vmatprep.subr.mxu0 0.0
    %1866 = vmatpush1.msra.mxu0 %v1836
    %1867 = vmatprep.subr.mxu0 0.0
    %1868 = vmatpush1.msra.mxu0 %v1837
    %1869 = vmatprep.subr.mxu0 0.0
    %1870 = vmatpush1.msra.mxu0 %v1838
    %1871 = vmatprep.subr.mxu0 0.0
    %1872 = vmatpush1.msra.mxu0 %v1839
    %1873 = vmatprep.subr.mxu0 0.0
    %1874 = vmatpush1.msra.mxu0 0.0
    %1875 = vmatprep.subr.mxu0 0.0
    %1876 = vmatpush1.msra.mxu0 0.0
    %1877 = vmatprep.subr.mxu0 0.0
    %1878 = vmatpush1.msra.mxu0 0.0
    %1879 = vmatprep.subr.mxu0 0.0
    %1880 = vmatpush1.msra.mxu0 0.0
    %1881 = vmatprep.subr.mxu0 0.0
    %1882 = vmatpush1.msra.mxu0 0.0
    %1883 = vmatprep.subr.mxu0 0.0
    %1884 = vmatpush1.msra.mxu0 0.0
    %1885 = vmatprep.subr.mxu0 0.0
    %1886 = vmatpush1.msra.mxu0 0.0
    %1887 = vmatprep.subr.mxu0 0.0
    %1888 = vmatpush1.msra.mxu0 0.0
    %1889 = vmatprep.subr.mxu0 0.0
    %1890 = vmatpush1.msra.mxu0 0.0
    %1891 = vmatprep.subr.mxu0 0.0
    %1892 = vmatpush1.msra.mxu0 0.0
    %1893 = vmatprep.subr.mxu0 0.0
    %1894 = vmatpush1.msra.mxu0 0.0
    %1895 = vmatprep.subr.mxu0 0.0
    %1896 = vmatpush1.msra.mxu0 0.0
    %1897 = vmatprep.subr.mxu0 0.0
    %1898 = vmatpush1.msra.mxu0 0.0
    %1899 = vmatprep.subr.mxu0 0.0
    %1900 = vmatpush1.msra.mxu0 0.0
    %1901 = vmatprep.subr.mxu0 0.0
    %1902 = vmatpush1.msra.mxu0 0.0
    %1903 = vmatprep.subr.mxu0 0.0
    %1904 = vmatpush1.msra.mxu0 0.0
    %1905 = vmatprep.mubr.f32.mxu0 0.0
    %1906 = vmatmul.mubr.f32.gmra.mrb[0].mxu0 %v1823
    %v1907 = vpop.f32.mrb[0].mxu0
    %v1908 = vadd.f32 %v1840, %v1907
    %v1909 = vpop.f32.mrb[0].mxu0
    %1910 = vdwg.mxu0
    %v1911 = vtanh.pop %v1908
    %v1912 = vld [vmem:[#allocation16] sm:$0xff]
    %v1913 = vld [vmem:[#allocation16 + $0x8] sm:$0xff]
    %v1914 = vld [vmem:[#allocation16 + $0x10] sm:$0xff]
    %v1915 = vld [vmem:[#allocation16 + $0x18] sm:$0xff]
    %v1916 = vld [vmem:[#allocation16 + $0x20] sm:$0xff]
    %v1917 = vld [vmem:[#allocation16 + $0x28] sm:$0xff]
    %v1918 = vld [vmem:[#allocation16 + $0x30] sm:$0xff]
    %v1919 = vld [vmem:[#allocation16 + $0x38] sm:$0xff]
    %v1920 = vld [vmem:[#allocation16 + $0x40] sm:$0xff]
    %v1921 = vld [vmem:[#allocation16 + $0x48] sm:$0xff]
    %v1922 = vld [vmem:[#allocation16 + $0x50] sm:$0xff]
    %v1923 = vld [vmem:[#allocation16 + $0x58] sm:$0xff]
    %v1924 = vld [vmem:[#allocation16 + $0x60] sm:$0xff]
    %v1925 = vld [vmem:[#allocation16 + $0x68] sm:$0xff]
    %v1926 = vld [vmem:[#allocation16 + $0x70] sm:$0xff]
    %v1927 = vld [vmem:[#allocation16 + $0x78] sm:$0xff]
    %v1928 = vld [vmem:[%s13] sm:$0xff]
    %1929 = vmatprep.subr.mxu0 0.0
    %1930 = vmatpush1.msra.mxu0 %v1912
    %1931 = vmatprep.subr.mxu0 0.0
    %1932 = vmatpush1.msra.mxu0 %v1913
    %1933 = vmatprep.subr.mxu0 0.0
    %1934 = vmatpush1.msra.mxu0 %v1914
    %1935 = vmatprep.subr.mxu0 0.0
    %1936 = vmatpush1.msra.mxu0 %v1915
    %1937 = vmatprep.subr.mxu0 0.0
    %1938 = vmatpush1.msra.mxu0 %v1916
    %1939 = vmatprep.subr.mxu0 0.0
    %1940 = vmatpush1.msra.mxu0 %v1917
    %1941 = vmatprep.subr.mxu0 0.0
    %1942 = vmatpush1.msra.mxu0 %v1918
    %1943 = vmatprep.subr.mxu0 0.0
    %1944 = vmatpush1.msra.mxu0 %v1919
    %1945 = vmatprep.subr.mxu0 0.0
    %1946 = vmatpush1.msra.mxu0 %v1920
    %1947 = vmatprep.subr.mxu0 0.0
    %1948 = vmatpush1.msra.mxu0 %v1921
    %1949 = vmatprep.subr.mxu0 0.0
    %1950 = vmatpush1.msra.mxu0 %v1922
    %1951 = vmatprep.subr.mxu0 0.0
    %1952 = vmatpush1.msra.mxu0 %v1923
    %1953 = vmatprep.subr.mxu0 0.0
    %1954 = vmatpush1.msra.mxu0 %v1924
    %1955 = vmatprep.subr.mxu0 0.0
    %1956 = vmatpush1.msra.mxu0 %v1925
    %1957 = vmatprep.subr.mxu0 0.0
    %1958 = vmatpush1.msra.mxu0 %v1926
    %1959 = vmatprep.subr.mxu0 0.0
    %1960 = vmatpush1.msra.mxu0 %v1927
    %1961 = vmatprep.subr.mxu0 0.0
    %1962 = vmatpush1.msra.mxu0 0.0
    %1963 = vmatprep.subr.mxu0 0.0
    %1964 = vmatpush1.msra.mxu0 0.0
    %1965 = vmatprep.subr.mxu0 0.0
    %1966 = vmatpush1.msra.mxu0 0.0
    %1967 = vmatprep.subr.mxu0 0.0
    %1968 = vmatpush1.msra.mxu0 0.0
    %1969 = vmatprep.subr.mxu0 0.0
    %1970 = vmatpush1.msra.mxu0 0.0
    %1971 = vmatprep.subr.mxu0 0.0
    %1972 = vmatpush1.msra.mxu0 0.0
    %1973 = vmatprep.subr.mxu0 0.0
    %1974 = vmatpush1.msra.mxu0 0.0
    %1975 = vmatprep.subr.mxu0 0.0
    %1976 = vmatpush1.msra.mxu0 0.0
    %1977 = vmatprep.subr.mxu0 0.0
    %1978 = vmatpush1.msra.mxu0 0.0
    %1979 = vmatprep.subr.mxu0 0.0
    %1980 = vmatpush1.msra.mxu0 0.0
    %1981 = vmatprep.subr.mxu0 0.0
    %1982 = vmatpush1.msra.mxu0 0.0
    %1983 = vmatprep.subr.mxu0 0.0
    %1984 = vmatpush1.msra.mxu0 0.0
    %1985 = vmatprep.subr.mxu0 0.0
    %1986 = vmatpush1.msra.mxu0 0.0
    %1987 = vmatprep.subr.mxu0 0.0
    %1988 = vmatpush1.msra.mxu0 0.0
    %1989 = vmatprep.subr.mxu0 0.0
    %1990 = vmatpush1.msra.mxu0 0.0
    %1991 = vmatprep.subr.mxu0 0.0
    %1992 = vmatpush1.msra.mxu0 0.0
    %1993 = vmatprep.mubr.f32.mxu0 0.0
    %1994 = vmatmul.mubr.f32.gmra.mrb[0].mxu0 %v1911
    %v1995 = vpop.f32.mrb[0].mxu0
    %v1996 = vadd.f32 %v1928, %v1995
    %v1997 = vpop.f32.mrb[0].mxu0
    %1998 = vdwg.mxu0
    %s1999 = scalar_lea.vmem [#allocation17], 8
    %2000 = vst [vmem:[%s1999] sm:$0xff] %v1996
    %v2001 = vld [vmem:[#allocation13] sm:$0xff]
    %v2002 = vld [vmem:[#allocation13 + $0x8] sm:$0xff]
    %v2003 = vld [vmem:[#allocation13 + $0x10] sm:$0xff]
    %v2004 = vld [vmem:[#allocation13 + $0x18] sm:$0xff]
    %v2005 = vld [vmem:[#allocation13 + $0x20] sm:$0xff]
    %v2006 = vld [vmem:[#allocation13 + $0x28] sm:$0xff]
    %v2007 = vld [vmem:[#allocation13 + $0x30] sm:$0xff]
    %v2008 = vld [vmem:[#allocation13 + $0x38] sm:$0xff]
    %v2009 = vld [vmem:[#allocation13 + $0x40] sm:$0xff]
    %v2010 = vld [vmem:[#allocation13 + $0x48] sm:$0xff]
    %v2011 = vld [vmem:[#allocation13 + $0x50] sm:$0xff]
    %v2012 = vld [vmem:[#allocation13 + $0x58] sm:$0xff]
    %v2013 = vld [vmem:[#allocation13 + $0x60] sm:$0xff]
    %v2014 = vld [vmem:[#allocation13 + $0x68] sm:$0xff]
    %v2015 = vld [vmem:[#allocation13 + $0x70] sm:$0xff]
    %v2016 = vld [vmem:[#allocation13 + $0x78] sm:$0xff]
    %v2017 = vld [vmem:[%s9] sm:$0xff]
    %2018 = vmatprep.subr.mxu0 0.0
    %2019 = vmatpush1.msra.mxu0 %v2001
    %2020 = vmatprep.subr.mxu0 0.0
    %2021 = vmatpush1.msra.mxu0 %v2002
    %2022 = vmatprep.subr.mxu0 0.0
    %2023 = vmatpush1.msra.mxu0 %v2003
    %2024 = vmatprep.subr.mxu0 0.0
    %2025 = vmatpush1.msra.mxu0 %v2004
    %2026 = vmatprep.subr.mxu0 0.0
    %2027 = vmatpush1.msra.mxu0 %v2005
    %2028 = vmatprep.subr.mxu0 0.0
    %2029 = vmatpush1.msra.mxu0 %v2006
    %2030 = vmatprep.subr.mxu0 0.0
    %2031 = vmatpush1.msra.mxu0 %v2007
    %2032 = vmatprep.subr.mxu0 0.0
    %2033 = vmatpush1.msra.mxu0 %v2008
    %2034 = vmatprep.subr.mxu0 0.0
    %2035 = vmatpush1.msra.mxu0 %v2009
    %2036 = vmatprep.subr.mxu0 0.0
    %2037 = vmatpush1.msra.mxu0 %v2010
    %2038 = vmatprep.subr.mxu0 0.0
    %2039 = vmatpush1.msra.mxu0 %v2011
    %2040 = vmatprep.subr.mxu0 0.0
    %2041 = vmatpush1.msra.mxu0 %v2012
    %2042 = vmatprep.subr.mxu0 0.0
    %2043 = vmatpush1.msra.mxu0 %v2013
    %2044 = vmatprep.subr.mxu0 0.0
    %2045 = vmatpush1.msra.mxu0 %v2014
    %2046 = vmatprep.subr.mxu0 0.0
    %2047 = vmatpush1.msra.mxu0 %v2015
    %2048 = vmatprep.subr.mxu0 0.0
    %2049 = vmatpush1.msra.mxu0 %v2016
    %2050 = vmatprep.subr.mxu0 0.0
    %2051 = vmatpush1.msra.mxu0 0.0
    %2052 = vmatprep.subr.mxu0 0.0
    %2053 = vmatpush1.msra.mxu0 0.0
    %2054 = vmatprep.subr.mxu0 0.0
    %2055 = vmatpush1.msra.mxu0 0.0
    %2056 = vmatprep.subr.mxu0 0.0
    %2057 = vmatpush1.msra.mxu0 0.0
    %2058 = vmatprep.subr.mxu0 0.0
    %2059 = vmatpush1.msra.mxu0 0.0
    %2060 = vmatprep.subr.mxu0 0.0
    %2061 = vmatpush1.msra.mxu0 0.0
    %2062 = vmatprep.subr.mxu0 0.0
    %2063 = vmatpush1.msra.mxu0 0.0
    %2064 = vmatprep.subr.mxu0 0.0
    %2065 = vmatpush1.msra.mxu0 0.0
    %2066 = vmatprep.subr.mxu0 0.0
    %2067 = vmatpush1.msra.mxu0 0.0
    %2068 = vmatprep.subr.mxu0 0.0
    %2069 = vmatpush1.msra.mxu0 0.0
    %2070 = vmatprep.subr.mxu0 0.0
    %2071 = vmatpush1.msra.mxu0 0.0
    %2072 = vmatprep.subr.mxu0 0.0
    %2073 = vmatpush1.msra.mxu0 0.0
    %2074 = vmatprep.subr.mxu0 0.0
    %2075 = vmatpush1.msra.mxu0 0.0
    %2076 = vmatprep.subr.mxu0 0.0
    %2077 = vmatpush1.msra.mxu0 0.0
    %2078 = vmatprep.subr.mxu0 0.0
    %2079 = vmatpush1.msra.mxu0 0.0
    %2080 = vmatprep.subr.mxu0 0.0
    %2081 = vmatpush1.msra.mxu0 0.0
    %2082 = vmatprep.mubr.f32.mxu0 0.0
    %2083 = vmatmul.mubr.f32.gmra.mrb[0].mxu0 %v1911
    %v2084 = vpop.f32.mrb[0].mxu0
    %v2085 = vadd.f32 %v2017, %v2084
    %v2086 = vpop.f32.mrb[0].mxu0
    %2087 = vdwg.mxu0
    %v2088 = vtanh.pop %v2085
    %v2089 = vld [vmem:[#allocation14] sm:$0xff]
    %v2090 = vld [vmem:[#allocation14 + $0x8] sm:$0xff]
    %v2091 = vld [vmem:[#allocation14 + $0x10] sm:$0xff]
    %v2092 = vld [vmem:[#allocation14 + $0x18] sm:$0xff]
    %v2093 = vld [vmem:[#allocation14 + $0x20] sm:$0xff]
    %v2094 = vld [vmem:[#allocation14 + $0x28] sm:$0xff]
    %v2095 = vld [vmem:[#allocation14 + $0x30] sm:$0xff]
    %v2096 = vld [vmem:[#allocation14 + $0x38] sm:$0xff]
    %v2097 = vld [vmem:[#allocation14 + $0x40] sm:$0xff]
    %v2098 = vld [vmem:[#allocation14 + $0x48] sm:$0xff]
    %v2099 = vld [vmem:[#allocation14 + $0x50] sm:$0xff]
    %v2100 = vld [vmem:[#allocation14 + $0x58] sm:$0xff]
    %v2101 = vld [vmem:[#allocation14 + $0x60] sm:$0xff]
    %v2102 = vld [vmem:[#allocation14 + $0x68] sm:$0xff]
    %v2103 = vld [vmem:[#allocation14 + $0x70] sm:$0xff]
    %v2104 = vld [vmem:[#allocation14 + $0x78] sm:$0xff]
    %v2105 = vld [vmem:[%s11] sm:$0xff]
    %2106 = vmatprep.subr.mxu0 0.0
    %2107 = vmatpush1.msra.mxu0 %v2089
    %2108 = vmatprep.subr.mxu0 0.0
    %2109 = vmatpush1.msra.mxu0 %v2090
    %2110 = vmatprep.subr.mxu0 0.0
    %2111 = vmatpush1.msra.mxu0 %v2091
    %2112 = vmatprep.subr.mxu0 0.0
    %2113 = vmatpush1.msra.mxu0 %v2092
    %2114 = vmatprep.subr.mxu0 0.0
    %2115 = vmatpush1.msra.mxu0 %v2093
    %2116 = vmatprep.subr.mxu0 0.0
    %2117 = vmatpush1.msra.mxu0 %v2094
    %2118 = vmatprep.subr.mxu0 0.0
    %2119 = vmatpush1.msra.mxu0 %v2095
    %2120 = vmatprep.subr.mxu0 0.0
    %2121 = vmatpush1.msra.mxu0 %v2096
    %2122 = vmatprep.subr.mxu0 0.0
    %2123 = vmatpush1.msra.mxu0 %v2097
    %2124 = vmatprep.subr.mxu0 0.0
    %2125 = vmatpush1.msra.mxu0 %v2098
    %2126 = vmatprep.subr.mxu0 0.0
    %2127 = vmatpush1.msra.mxu0 %v2099
    %2128 = vmatprep.subr.mxu0 0.0
    %2129 = vmatpush1.msra.mxu0 %v2100
    %2130 = vmatprep.subr.mxu0 0.0
    %2131 = vmatpush1.msra.mxu0 %v2101
    %2132 = vmatprep.subr.mxu0 0.0
    %2133 = vmatpush1.msra.mxu0 %v2102
    %2134 = vmatprep.subr.mxu0 0.0
    %2135 = vmatpush1.msra.mxu0 %v2103
    %2136 = vmatprep.subr.mxu0 0.0
    %2137 = vmatpush1.msra.mxu0 %v2104
    %2138 = vmatprep.subr.mxu0 0.0
    %2139 = vmatpush1.msra.mxu0 0.0
    %2140 = vmatprep.subr.mxu0 0.0
    %2141 = vmatpush1.msra.mxu0 0.0
    %2142 = vmatprep.subr.mxu0 0.0
    %2143 = vmatpush1.msra.mxu0 0.0
    %2144 = vmatprep.subr.mxu0 0.0
    %2145 = vmatpush1.msra.mxu0 0.0
    %2146 = vmatprep.subr.mxu0 0.0
    %2147 = vmatpush1.msra.mxu0 0.0
    %2148 = vmatprep.subr.mxu0 0.0
    %2149 = vmatpush1.msra.mxu0 0.0
    %2150 = vmatprep.subr.mxu0 0.0
    %2151 = vmatpush1.msra.mxu0 0.0
    %2152 = vmatprep.subr.mxu0 0.0
    %2153 = vmatpush1.msra.mxu0 0.0
    %2154 = vmatprep.subr.mxu0 0.0
    %2155 = vmatpush1.msra.mxu0 0.0
    %2156 = vmatprep.subr.mxu0 0.0
    %2157 = vmatpush1.msra.mxu0 0.0
    %2158 = vmatprep.subr.mxu0 0.0
    %2159 = vmatpush1.msra.mxu0 0.0
    %2160 = vmatprep.subr.mxu0 0.0
    %2161 = vmatpush1.msra.mxu0 0.0
    %2162 = vmatprep.subr.mxu0 0.0
    %2163 = vmatpush1.msra.mxu0 0.0
    %2164 = vmatprep.subr.mxu0 0.0
    %2165 = vmatpush1.msra.mxu0 0.0
    %2166 = vmatprep.subr.mxu0 0.0
    %2167 = vmatpush1.msra.mxu0 0.0
    %2168 = vmatprep.subr.mxu0 0.0
    %2169 = vmatpush1.msra.mxu0 0.0
    %2170 = vmatprep.mubr.f32.mxu0 0.0
    %2171 = vmatmul.mubr.f32.gmra.mrb[0].mxu0 %v2088
    %v2172 = vpop.f32.mrb[0].mxu0
    %v2173 = vadd.f32 %v2105, %v2172
    %v2174 = vpop.f32.mrb[0].mxu0
    %2175 = vdwg.mxu0
    %v2176 = vtanh.pop %v2173
    %v2177 = vld [vmem:[#allocation16] sm:$0xff]
    %v2178 = vld [vmem:[#allocation16 + $0x8] sm:$0xff]
    %v2179 = vld [vmem:[#allocation16 + $0x10] sm:$0xff]
    %v2180 = vld [vmem:[#allocation16 + $0x18] sm:$0xff]
    %v2181 = vld [vmem:[#allocation16 + $0x20] sm:$0xff]
    %v2182 = vld [vmem:[#allocation16 + $0x28] sm:$0xff]
    %v2183 = vld [vmem:[#allocation16 + $0x30] sm:$0xff]
    %v2184 = vld [vmem:[#allocation16 + $0x38] sm:$0xff]
    %v2185 = vld [vmem:[#allocation16 + $0x40] sm:$0xff]
    %v2186 = vld [vmem:[#allocation16 + $0x48] sm:$0xff]
    %v2187 = vld [vmem:[#allocation16 + $0x50] sm:$0xff]
    %v2188 = vld [vmem:[#allocation16 + $0x58] sm:$0xff]
    %v2189 = vld [vmem:[#allocation16 + $0x60] sm:$0xff]
    %v2190 = vld [vmem:[#allocation16 + $0x68] sm:$0xff]
    %v2191 = vld [vmem:[#allocation16 + $0x70] sm:$0xff]
    %v2192 = vld [vmem:[#allocation16 + $0x78] sm:$0xff]
    %v2193 = vld [vmem:[%s13] sm:$0xff]
    %2194 = vmatprep.subr.mxu0 0.0
    %2195 = vmatpush1.msra.mxu0 %v2177
    %2196 = vmatprep.subr.mxu0 0.0
    %2197 = vmatpush1.msra.mxu0 %v2178
    %2198 = vmatprep.subr.mxu0 0.0
    %2199 = vmatpush1.msra.mxu0 %v2179
    %2200 = vmatprep.subr.mxu0 0.0
    %2201 = vmatpush1.msra.mxu0 %v2180
    %2202 = vmatprep.subr.mxu0 0.0
    %2203 = vmatpush1.msra.mxu0 %v2181
    %2204 = vmatprep.subr.mxu0 0.0
    %2205 = vmatpush1.msra.mxu0 %v2182
    %2206 = vmatprep.subr.mxu0 0.0
    %2207 = vmatpush1.msra.mxu0 %v2183
    %2208 = vmatprep.subr.mxu0 0.0
    %2209 = vmatpush1.msra.mxu0 %v2184
    %2210 = vmatprep.subr.mxu0 0.0
    %2211 = vmatpush1.msra.mxu0 %v2185
    %2212 = vmatprep.subr.mxu0 0.0
    %2213 = vmatpush1.msra.mxu0 %v2186
    %2214 = vmatprep.subr.mxu0 0.0
    %2215 = vmatpush1.msra.mxu0 %v2187
    %2216 = vmatprep.subr.mxu0 0.0
    %2217 = vmatpush1.msra.mxu0 %v2188
    %2218 = vmatprep.subr.mxu0 0.0
    %2219 = vmatpush1.msra.mxu0 %v2189
    %2220 = vmatprep.subr.mxu0 0.0
    %2221 = vmatpush1.msra.mxu0 %v2190
    %2222 = vmatprep.subr.mxu0 0.0
    %2223 = vmatpush1.msra.mxu0 %v2191
    %2224 = vmatprep.subr.mxu0 0.0
    %2225 = vmatpush1.msra.mxu0 %v2192
    %2226 = vmatprep.subr.mxu0 0.0
    %2227 = vmatpush1.msra.mxu0 0.0
    %2228 = vmatprep.subr.mxu0 0.0
    %2229 = vmatpush1.msra.mxu0 0.0
    %2230 = vmatprep.subr.mxu0 0.0
    %2231 = vmatpush1.msra.mxu0 0.0
    %2232 = vmatprep.subr.mxu0 0.0
    %2233 = vmatpush1.msra.mxu0 0.0
    %2234 = vmatprep.subr.mxu0 0.0
    %2235 = vmatpush1.msra.mxu0 0.0
    %2236 = vmatprep.subr.mxu0 0.0
    %2237 = vmatpush1.msra.mxu0 0.0
    %2238 = vmatprep.subr.mxu0 0.0
    %2239 = vmatpush1.msra.mxu0 0.0
    %2240 = vmatprep.subr.mxu0 0.0
    %2241 = vmatpush1.msra.mxu0 0.0
    %2242 = vmatprep.subr.mxu0 0.0
    %2243 = vmatpush1.msra.mxu0 0.0
    %2244 = vmatprep.subr.mxu0 0.0
    %2245 = vmatpush1.msra.mxu0 0.0
    %2246 = vmatprep.subr.mxu0 0.0
    %2247 = vmatpush1.msra.mxu0 0.0
    %2248 = vmatprep.subr.mxu0 0.0
    %2249 = vmatpush1.msra.mxu0 0.0
    %2250 = vmatprep.subr.mxu0 0.0
    %2251 = vmatpush1.msra.mxu0 0.0
    %2252 = vmatprep.subr.mxu0 0.0
    %2253 = vmatpush1.msra.mxu0 0.0
    %2254 = vmatprep.subr.mxu0 0.0
    %2255 = vmatpush1.msra.mxu0 0.0
    %2256 = vmatprep.subr.mxu0 0.0
    %2257 = vmatpush1.msra.mxu0 0.0
    %2258 = vmatprep.mubr.f32.mxu0 0.0
    %2259 = vmatmul.mubr.f32.gmra.mrb[0].mxu0 %v2176
    %v2260 = vpop.f32.mrb[0].mxu0
    %v2261 = vadd.f32 %v2193, %v2260
    %v2262 = vpop.f32.mrb[0].mxu0
    %2263 = vdwg.mxu0
    %s2264 = scalar_lea.vmem [#allocation17], 16
    %2265 = vst [vmem:[%s2264] sm:$0xff] %v2261
    %v2266 = vld [vmem:[#allocation13] sm:$0xff]
    %v2267 = vld [vmem:[#allocation13 + $0x8] sm:$0xff]
    %v2268 = vld [vmem:[#allocation13 + $0x10] sm:$0xff]
    %v2269 = vld [vmem:[#allocation13 + $0x18] sm:$0xff]
    %v2270 = vld [vmem:[#allocation13 + $0x20] sm:$0xff]
    %v2271 = vld [vmem:[#allocation13 + $0x28] sm:$0xff]
    %v2272 = vld [vmem:[#allocation13 + $0x30] sm:$0xff]
    %v2273 = vld [vmem:[#allocation13 + $0x38] sm:$0xff]
    %v2274 = vld [vmem:[#allocation13 + $0x40] sm:$0xff]
    %v2275 = vld [vmem:[#allocation13 + $0x48] sm:$0xff]
    %v2276 = vld [vmem:[#allocation13 + $0x50] sm:$0xff]
    %v2277 = vld [vmem:[#allocation13 + $0x58] sm:$0xff]
    %v2278 = vld [vmem:[#allocation13 + $0x60] sm:$0xff]
    %v2279 = vld [vmem:[#allocation13 + $0x68] sm:$0xff]
    %v2280 = vld [vmem:[#allocation13 + $0x70] sm:$0xff]
    %v2281 = vld [vmem:[#allocation13 + $0x78] sm:$0xff]
    %v2282 = vld [vmem:[%s9] sm:$0xff]
    %2283 = vmatprep.subr.mxu0 0.0
    %2284 = vmatpush1.msra.mxu0 %v2266
    %2285 = vmatprep.subr.mxu0 0.0
    %2286 = vmatpush1.msra.mxu0 %v2267
    %2287 = vmatprep.subr.mxu0 0.0
    %2288 = vmatpush1.msra.mxu0 %v2268
    %2289 = vmatprep.subr.mxu0 0.0
    %2290 = vmatpush1.msra.mxu0 %v2269
    %2291 = vmatprep.subr.mxu0 0.0
    %2292 = vmatpush1.msra.mxu0 %v2270
    %2293 = vmatprep.subr.mxu0 0.0
    %2294 = vmatpush1.msra.mxu0 %v2271
    %2295 = vmatprep.subr.mxu0 0.0
    %2296 = vmatpush1.msra.mxu0 %v2272
    %2297 = vmatprep.subr.mxu0 0.0
    %2298 = vmatpush1.msra.mxu0 %v2273
    %2299 = vmatprep.subr.mxu0 0.0
    %2300 = vmatpush1.msra.mxu0 %v2274
    %2301 = vmatprep.subr.mxu0 0.0
    %2302 = vmatpush1.msra.mxu0 %v2275
    %2303 = vmatprep.subr.mxu0 0.0
    %2304 = vmatpush1.msra.mxu0 %v2276
    %2305 = vmatprep.subr.mxu0 0.0
    %2306 = vmatpush1.msra.mxu0 %v2277
    %2307 = vmatprep.subr.mxu0 0.0
    %2308 = vmatpush1.msra.mxu0 %v2278
    %2309 = vmatprep.subr.mxu0 0.0
    %2310 = vmatpush1.msra.mxu0 %v2279
    %2311 = vmatprep.subr.mxu0 0.0
    %2312 = vmatpush1.msra.mxu0 %v2280
    %2313 = vmatprep.subr.mxu0 0.0
    %2314 = vmatpush1.msra.mxu0 %v2281
    %2315 = vmatprep.subr.mxu0 0.0
    %2316 = vmatpush1.msra.mxu0 0.0
    %2317 = vmatprep.subr.mxu0 0.0
    %2318 = vmatpush1.msra.mxu0 0.0
    %2319 = vmatprep.subr.mxu0 0.0
    %2320 = vmatpush1.msra.mxu0 0.0
    %2321 = vmatprep.subr.mxu0 0.0
    %2322 = vmatpush1.msra.mxu0 0.0
    %2323 = vmatprep.subr.mxu0 0.0
    %2324 = vmatpush1.msra.mxu0 0.0
    %2325 = vmatprep.subr.mxu0 0.0
    %2326 = vmatpush1.msra.mxu0 0.0
    %2327 = vmatprep.subr.mxu0 0.0
    %2328 = vmatpush1.msra.mxu0 0.0
    %2329 = vmatprep.subr.mxu0 0.0
    %2330 = vmatpush1.msra.mxu0 0.0
    %2331 = vmatprep.subr.mxu0 0.0
    %2332 = vmatpush1.msra.mxu0 0.0
    %2333 = vmatprep.subr.mxu0 0.0
    %2334 = vmatpush1.msra.mxu0 0.0
    %2335 = vmatprep.subr.mxu0 0.0
    %2336 = vmatpush1.msra.mxu0 0.0
    %2337 = vmatprep.subr.mxu0 0.0
    %2338 = vmatpush1.msra.mxu0 0.0
    %2339 = vmatprep.subr.mxu0 0.0
    %2340 = vmatpush1.msra.mxu0 0.0
    %2341 = vmatprep.subr.mxu0 0.0
    %2342 = vmatpush1.msra.mxu0 0.0
    %2343 = vmatprep.subr.mxu0 0.0
    %2344 = vmatpush1.msra.mxu0 0.0
    %2345 = vmatprep.subr.mxu0 0.0
    %2346 = vmatpush1.msra.mxu0 0.0
    %2347 = vmatprep.mubr.f32.mxu0 0.0
    %2348 = vmatmul.mubr.f32.gmra.mrb[0].mxu0 %v2176
    %v2349 = vpop.f32.mrb[0].mxu0
    %v2350 = vadd.f32 %v2282, %v2349
    %v2351 = vpop.f32.mrb[0].mxu0
    %2352 = vdwg.mxu0
    %v2353 = vtanh.pop %v2350
    %v2354 = vld [vmem:[#allocation14] sm:$0xff]
    %v2355 = vld [vmem:[#allocation14 + $0x8] sm:$0xff]
    %v2356 = vld [vmem:[#allocation14 + $0x10] sm:$0xff]
    %v2357 = vld [vmem:[#allocation14 + $0x18] sm:$0xff]
    %v2358 = vld [vmem:[#allocation14 + $0x20] sm:$0xff]
    %v2359 = vld [vmem:[#allocation14 + $0x28] sm:$0xff]
    %v2360 = vld [vmem:[#allocation14 + $0x30] sm:$0xff]
    %v2361 = vld [vmem:[#allocation14 + $0x38] sm:$0xff]
    %v2362 = vld [vmem:[#allocation14 + $0x40] sm:$0xff]
    %v2363 = vld [vmem:[#allocation14 + $0x48] sm:$0xff]
    %v2364 = vld [vmem:[#allocation14 + $0x50] sm:$0xff]
    %v2365 = vld [vmem:[#allocation14 + $0x58] sm:$0xff]
    %v2366 = vld [vmem:[#allocation14 + $0x60] sm:$0xff]
    %v2367 = vld [vmem:[#allocation14 + $0x68] sm:$0xff]
    %v2368 = vld [vmem:[#allocation14 + $0x70] sm:$0xff]
    %v2369 = vld [vmem:[#allocation14 + $0x78] sm:$0xff]
    %v2370 = vld [vmem:[%s11] sm:$0xff]
    %2371 = vmatprep.subr.mxu0 0.0
    %2372 = vmatpush1.msra.mxu0 %v2354
    %2373 = vmatprep.subr.mxu0 0.0
    %2374 = vmatpush1.msra.mxu0 %v2355
    %2375 = vmatprep.subr.mxu0 0.0
    %2376 = vmatpush1.msra.mxu0 %v2356
    %2377 = vmatprep.subr.mxu0 0.0
    %2378 = vmatpush1.msra.mxu0 %v2357
    %2379 = vmatprep.subr.mxu0 0.0
    %2380 = vmatpush1.msra.mxu0 %v2358
    %2381 = vmatprep.subr.mxu0 0.0
    %2382 = vmatpush1.msra.mxu0 %v2359
    %2383 = vmatprep.subr.mxu0 0.0
    %2384 = vmatpush1.msra.mxu0 %v2360
    %2385 = vmatprep.subr.mxu0 0.0
    %2386 = vmatpush1.msra.mxu0 %v2361
    %2387 = vmatprep.subr.mxu0 0.0
    %2388 = vmatpush1.msra.mxu0 %v2362
    %2389 = vmatprep.subr.mxu0 0.0
    %2390 = vmatpush1.msra.mxu0 %v2363
    %2391 = vmatprep.subr.mxu0 0.0
    %2392 = vmatpush1.msra.mxu0 %v2364
    %2393 = vmatprep.subr.mxu0 0.0
    %2394 = vmatpush1.msra.mxu0 %v2365
    %2395 = vmatprep.subr.mxu0 0.0
    %2396 = vmatpush1.msra.mxu0 %v2366
    %2397 = vmatprep.subr.mxu0 0.0
    %2398 = vmatpush1.msra.mxu0 %v2367
    %2399 = vmatprep.subr.mxu0 0.0
    %2400 = vmatpush1.msra.mxu0 %v2368
    %2401 = vmatprep.subr.mxu0 0.0
    %2402 = vmatpush1.msra.mxu0 %v2369
    %2403 = vmatprep.subr.mxu0 0.0
    %2404 = vmatpush1.msra.mxu0 0.0
    %2405 = vmatprep.subr.mxu0 0.0
    %2406 = vmatpush1.msra.mxu0 0.0
    %2407 = vmatprep.subr.mxu0 0.0
    %2408 = vmatpush1.msra.mxu0 0.0
    %2409 = vmatprep.subr.mxu0 0.0
    %2410 = vmatpush1.msra.mxu0 0.0
    %2411 = vmatprep.subr.mxu0 0.0
    %2412 = vmatpush1.msra.mxu0 0.0
    %2413 = vmatprep.subr.mxu0 0.0
    %2414 = vmatpush1.msra.mxu0 0.0
    %2415 = vmatprep.subr.mxu0 0.0
    %2416 = vmatpush1.msra.mxu0 0.0
    %2417 = vmatprep.subr.mxu0 0.0
    %2418 = vmatpush1.msra.mxu0 0.0
    %2419 = vmatprep.subr.mxu0 0.0
    %2420 = vmatpush1.msra.mxu0 0.0
    %2421 = vmatprep.subr.mxu0 0.0
    %2422 = vmatpush1.msra.mxu0 0.0
    %2423 = vmatprep.subr.mxu0 0.0
    %2424 = vmatpush1.msra.mxu0 0.0
    %2425 = vmatprep.subr.mxu0 0.0
    %2426 = vmatpush1.msra.mxu0 0.0
    %2427 = vmatprep.subr.mxu0 0.0
    %2428 = vmatpush1.msra.mxu0 0.0
    %2429 = vmatprep.subr.mxu0 0.0
    %2430 = vmatpush1.msra.mxu0 0.0
    %2431 = vmatprep.subr.mxu0 0.0
    %2432 = vmatpush1.msra.mxu0 0.0
    %2433 = vmatprep.subr.mxu0 0.0
    %2434 = vmatpush1.msra.mxu0 0.0
    %2435 = vmatprep.mubr.f32.mxu0 0.0
    %2436 = vmatmul.mubr.f32.gmra.mrb[0].mxu0 %v2353
    %v2437 = vpop.f32.mrb[0].mxu0
    %v2438 = vadd.f32 %v2370, %v2437
    %v2439 = vpop.f32.mrb[0].mxu0
    %2440 = vdwg.mxu0
    %v2441 = vtanh.pop %v2438
    %v2442 = vld [vmem:[#allocation16] sm:$0xff]
    %v2443 = vld [vmem:[#allocation16 + $0x8] sm:$0xff]
    %v2444 = vld [vmem:[#allocation16 + $0x10] sm:$0xff]
    %v2445 = vld [vmem:[#allocation16 + $0x18] sm:$0xff]
    %v2446 = vld [vmem:[#allocation16 + $0x20] sm:$0xff]
    %v2447 = vld [vmem:[#allocation16 + $0x28] sm:$0xff]
    %v2448 = vld [vmem:[#allocation16 + $0x30] sm:$0xff]
    %v2449 = vld [vmem:[#allocation16 + $0x38] sm:$0xff]
    %v2450 = vld [vmem:[#allocation16 + $0x40] sm:$0xff]
    %v2451 = vld [vmem:[#allocation16 + $0x48] sm:$0xff]
    %v2452 = vld [vmem:[#allocation16 + $0x50] sm:$0xff]
    %v2453 = vld [vmem:[#allocation16 + $0x58] sm:$0xff]
    %v2454 = vld [vmem:[#allocation16 + $0x60] sm:$0xff]
    %v2455 = vld [vmem:[#allocation16 + $0x68] sm:$0xff]
    %v2456 = vld [vmem:[#allocation16 + $0x70] sm:$0xff]
    %v2457 = vld [vmem:[#allocation16 + $0x78] sm:$0xff]
    %v2458 = vld [vmem:[%s13] sm:$0xff]
    %2459 = vmatprep.subr.mxu0 0.0
    %2460 = vmatpush1.msra.mxu0 %v2442
    %2461 = vmatprep.subr.mxu0 0.0
    %2462 = vmatpush1.msra.mxu0 %v2443
    %2463 = vmatprep.subr.mxu0 0.0
    %2464 = vmatpush1.msra.mxu0 %v2444
    %2465 = vmatprep.subr.mxu0 0.0
    %2466 = vmatpush1.msra.mxu0 %v2445
    %2467 = vmatprep.subr.mxu0 0.0
    %2468 = vmatpush1.msra.mxu0 %v2446
    %2469 = vmatprep.subr.mxu0 0.0
    %2470 = vmatpush1.msra.mxu0 %v2447
    %2471 = vmatprep.subr.mxu0 0.0
    %2472 = vmatpush1.msra.mxu0 %v2448
    %2473 = vmatprep.subr.mxu0 0.0
    %2474 = vmatpush1.msra.mxu0 %v2449
    %2475 = vmatprep.subr.mxu0 0.0
    %2476 = vmatpush1.msra.mxu0 %v2450
    %2477 = vmatprep.subr.mxu0 0.0
    %2478 = vmatpush1.msra.mxu0 %v2451
    %2479 = vmatprep.subr.mxu0 0.0
    %2480 = vmatpush1.msra.mxu0 %v2452
    %2481 = vmatprep.subr.mxu0 0.0
    %2482 = vmatpush1.msra.mxu0 %v2453
    %2483 = vmatprep.subr.mxu0 0.0
    %2484 = vmatpush1.msra.mxu0 %v2454
    %2485 = vmatprep.subr.mxu0 0.0
    %2486 = vmatpush1.msra.mxu0 %v2455
    %2487 = vmatprep.subr.mxu0 0.0
    %2488 = vmatpush1.msra.mxu0 %v2456
    %2489 = vmatprep.subr.mxu0 0.0
    %2490 = vmatpush1.msra.mxu0 %v2457
    %2491 = vmatprep.subr.mxu0 0.0
    %2492 = vmatpush1.msra.mxu0 0.0
    %2493 = vmatprep.subr.mxu0 0.0
    %2494 = vmatpush1.msra.mxu0 0.0
    %2495 = vmatprep.subr.mxu0 0.0
    %2496 = vmatpush1.msra.mxu0 0.0
    %2497 = vmatprep.subr.mxu0 0.0
    %2498 = vmatpush1.msra.mxu0 0.0
    %2499 = vmatprep.subr.mxu0 0.0
    %2500 = vmatpush1.msra.mxu0 0.0
    %2501 = vmatprep.subr.mxu0 0.0
    %2502 = vmatpush1.msra.mxu0 0.0
    %2503 = vmatprep.subr.mxu0 0.0
    %2504 = vmatpush1.msra.mxu0 0.0
    %2505 = vmatprep.subr.mxu0 0.0
    %2506 = vmatpush1.msra.mxu0 0.0
    %2507 = vmatprep.subr.mxu0 0.0
    %2508 = vmatpush1.msra.mxu0 0.0
    %2509 = vmatprep.subr.mxu0 0.0
    %2510 = vmatpush1.msra.mxu0 0.0
    %2511 = vmatprep.subr.mxu0 0.0
    %2512 = vmatpush1.msra.mxu0 0.0
    %2513 = vmatprep.subr.mxu0 0.0
    %2514 = vmatpush1.msra.mxu0 0.0
    %2515 = vmatprep.subr.mxu0 0.0
    %2516 = vmatpush1.msra.mxu0 0.0
    %2517 = vmatprep.subr.mxu0 0.0
    %2518 = vmatpush1.msra.mxu0 0.0
    %2519 = vmatprep.subr.mxu0 0.0
    %2520 = vmatpush1.msra.mxu0 0.0
    %2521 = vmatprep.subr.mxu0 0.0
    %2522 = vmatpush1.msra.mxu0 0.0
    %2523 = vmatprep.mubr.f32.mxu0 0.0
    %2524 = vmatmul.mubr.f32.gmra.mrb[0].mxu0 %v2441
    %v2525 = vpop.f32.mrb[0].mxu0
    %v2526 = vadd.f32 %v2458, %v2525
    %v2527 = vpop.f32.mrb[0].mxu0
    %2528 = vdwg.mxu0
    %s2529 = scalar_lea.vmem [#allocation17], 24
    %2530 = vst [vmem:[%s2529] sm:$0xff] %v2526
    %v2531 = vld [vmem:[#allocation13] sm:$0xff]
    %v2532 = vld [vmem:[#allocation13 + $0x8] sm:$0xff]
    %v2533 = vld [vmem:[#allocation13 + $0x10] sm:$0xff]
    %v2534 = vld [vmem:[#allocation13 + $0x18] sm:$0xff]
    %v2535 = vld [vmem:[#allocation13 + $0x20] sm:$0xff]
    %v2536 = vld [vmem:[#allocation13 + $0x28] sm:$0xff]
    %v2537 = vld [vmem:[#allocation13 + $0x30] sm:$0xff]
    %v2538 = vld [vmem:[#allocation13 + $0x38] sm:$0xff]
    %v2539 = vld [vmem:[#allocation13 + $0x40] sm:$0xff]
    %v2540 = vld [vmem:[#allocation13 + $0x48] sm:$0xff]
    %v2541 = vld [vmem:[#allocation13 + $0x50] sm:$0xff]
    %v2542 = vld [vmem:[#allocation13 + $0x58] sm:$0xff]
    %v2543 = vld [vmem:[#allocation13 + $0x60] sm:$0xff]
    %v2544 = vld [vmem:[#allocation13 + $0x68] sm:$0xff]
    %v2545 = vld [vmem:[#allocation13 + $0x70] sm:$0xff]
    %v2546 = vld [vmem:[#allocation13 + $0x78] sm:$0xff]
    %v2547 = vld [vmem:[%s9] sm:$0xff]
    %2548 = vmatprep.subr.mxu0 0.0
    %2549 = vmatpush1.msra.mxu0 %v2531
    %2550 = vmatprep.subr.mxu0 0.0
    %2551 = vmatpush1.msra.mxu0 %v2532
    %2552 = vmatprep.subr.mxu0 0.0
    %2553 = vmatpush1.msra.mxu0 %v2533
    %2554 = vmatprep.subr.mxu0 0.0
    %2555 = vmatpush1.msra.mxu0 %v2534
    %2556 = vmatprep.subr.mxu0 0.0
    %2557 = vmatpush1.msra.mxu0 %v2535
    %2558 = vmatprep.subr.mxu0 0.0
    %2559 = vmatpush1.msra.mxu0 %v2536
    %2560 = vmatprep.subr.mxu0 0.0
    %2561 = vmatpush1.msra.mxu0 %v2537
    %2562 = vmatprep.subr.mxu0 0.0
    %2563 = vmatpush1.msra.mxu0 %v2538
    %2564 = vmatprep.subr.mxu0 0.0
    %2565 = vmatpush1.msra.mxu0 %v2539
    %2566 = vmatprep.subr.mxu0 0.0
    %2567 = vmatpush1.msra.mxu0 %v2540
    %2568 = vmatprep.subr.mxu0 0.0
    %2569 = vmatpush1.msra.mxu0 %v2541
    %2570 = vmatprep.subr.mxu0 0.0
    %2571 = vmatpush1.msra.mxu0 %v2542
    %2572 = vmatprep.subr.mxu0 0.0
    %2573 = vmatpush1.msra.mxu0 %v2543
    %2574 = vmatprep.subr.mxu0 0.0
    %2575 = vmatpush1.msra.mxu0 %v2544
    %2576 = vmatprep.subr.mxu0 0.0
    %2577 = vmatpush1.msra.mxu0 %v2545
    %2578 = vmatprep.subr.mxu0 0.0
    %2579 = vmatpush1.msra.mxu0 %v2546
    %2580 = vmatprep.subr.mxu0 0.0
    %2581 = vmatpush1.msra.mxu0 0.0
    %2582 = vmatprep.subr.mxu0 0.0
    %2583 = vmatpush1.msra.mxu0 0.0
    %2584 = vmatprep.subr.mxu0 0.0
    %2585 = vmatpush1.msra.mxu0 0.0
    %2586 = vmatprep.subr.mxu0 0.0
    %2587 = vmatpush1.msra.mxu0 0.0
    %2588 = vmatprep.subr.mxu0 0.0
    %2589 = vmatpush1.msra.mxu0 0.0
    %2590 = vmatprep.subr.mxu0 0.0
    %2591 = vmatpush1.msra.mxu0 0.0
    %2592 = vmatprep.subr.mxu0 0.0
    %2593 = vmatpush1.msra.mxu0 0.0
    %2594 = vmatprep.subr.mxu0 0.0
    %2595 = vmatpush1.msra.mxu0 0.0
    %2596 = vmatprep.subr.mxu0 0.0
    %2597 = vmatpush1.msra.mxu0 0.0
    %2598 = vmatprep.subr.mxu0 0.0
    %2599 = vmatpush1.msra.mxu0 0.0
    %2600 = vmatprep.subr.mxu0 0.0
    %2601 = vmatpush1.msra.mxu0 0.0
    %2602 = vmatprep.subr.mxu0 0.0
    %2603 = vmatpush1.msra.mxu0 0.0
    %2604 = vmatprep.subr.mxu0 0.0
    %2605 = vmatpush1.msra.mxu0 0.0
    %2606 = vmatprep.subr.mxu0 0.0
    %2607 = vmatpush1.msra.mxu0 0.0
    %2608 = vmatprep.subr.mxu0 0.0
    %2609 = vmatpush1.msra.mxu0 0.0
    %2610 = vmatprep.subr.mxu0 0.0
    %2611 = vmatpush1.msra.mxu0 0.0
    %2612 = vmatprep.mubr.f32.mxu0 0.0
    %2613 = vmatmul.mubr.f32.gmra.mrb[0].mxu0 %v2441
    %v2614 = vpop.f32.mrb[0].mxu0
    %v2615 = vadd.f32 %v2547, %v2614
    %v2616 = vpop.f32.mrb[0].mxu0
    %2617 = vdwg.mxu0
    %v2618 = vtanh.pop %v2615
    %v2619 = vld [vmem:[#allocation14] sm:$0xff]
    %v2620 = vld [vmem:[#allocation14 + $0x8] sm:$0xff]
    %v2621 = vld [vmem:[#allocation14 + $0x10] sm:$0xff]
    %v2622 = vld [vmem:[#allocation14 + $0x18] sm:$0xff]
    %v2623 = vld [vmem:[#allocation14 + $0x20] sm:$0xff]
    %v2624 = vld [vmem:[#allocation14 + $0x28] sm:$0xff]
    %v2625 = vld [vmem:[#allocation14 + $0x30] sm:$0xff]
    %v2626 = vld [vmem:[#allocation14 + $0x38] sm:$0xff]
    %v2627 = vld [vmem:[#allocation14 + $0x40] sm:$0xff]
    %v2628 = vld [vmem:[#allocation14 + $0x48] sm:$0xff]
    %v2629 = vld [vmem:[#allocation14 + $0x50] sm:$0xff]
    %v2630 = vld [vmem:[#allocation14 + $0x58] sm:$0xff]
    %v2631 = vld [vmem:[#allocation14 + $0x60] sm:$0xff]
    %v2632 = vld [vmem:[#allocation14 + $0x68] sm:$0xff]
    %v2633 = vld [vmem:[#allocation14 + $0x70] sm:$0xff]
    %v2634 = vld [vmem:[#allocation14 + $0x78] sm:$0xff]
    %v2635 = vld [vmem:[%s11] sm:$0xff]
    %2636 = vmatprep.subr.mxu0 0.0
    %2637 = vmatpush1.msra.mxu0 %v2619
    %2638 = vmatprep.subr.mxu0 0.0
    %2639 = vmatpush1.msra.mxu0 %v2620
    %2640 = vmatprep.subr.mxu0 0.0
    %2641 = vmatpush1.msra.mxu0 %v2621
    %2642 = vmatprep.subr.mxu0 0.0
    %2643 = vmatpush1.msra.mxu0 %v2622
    %2644 = vmatprep.subr.mxu0 0.0
    %2645 = vmatpush1.msra.mxu0 %v2623
    %2646 = vmatprep.subr.mxu0 0.0
    %2647 = vmatpush1.msra.mxu0 %v2624
    %2648 = vmatprep.subr.mxu0 0.0
    %2649 = vmatpush1.msra.mxu0 %v2625
    %2650 = vmatprep.subr.mxu0 0.0
    %2651 = vmatpush1.msra.mxu0 %v2626
    %2652 = vmatprep.subr.mxu0 0.0
    %2653 = vmatpush1.msra.mxu0 %v2627
    %2654 = vmatprep.subr.mxu0 0.0
    %2655 = vmatpush1.msra.mxu0 %v2628
    %2656 = vmatprep.subr.mxu0 0.0
    %2657 = vmatpush1.msra.mxu0 %v2629
    %2658 = vmatprep.subr.mxu0 0.0
    %2659 = vmatpush1.msra.mxu0 %v2630
    %2660 = vmatprep.subr.mxu0 0.0
    %2661 = vmatpush1.msra.mxu0 %v2631
    %2662 = vmatprep.subr.mxu0 0.0
    %2663 = vmatpush1.msra.mxu0 %v2632
    %2664 = vmatprep.subr.mxu0 0.0
    %2665 = vmatpush1.msra.mxu0 %v2633
    %2666 = vmatprep.subr.mxu0 0.0
    %2667 = vmatpush1.msra.mxu0 %v2634
    %2668 = vmatprep.subr.mxu0 0.0
    %2669 = vmatpush1.msra.mxu0 0.0
    %2670 = vmatprep.subr.mxu0 0.0
    %2671 = vmatpush1.msra.mxu0 0.0
    %2672 = vmatprep.subr.mxu0 0.0
    %2673 = vmatpush1.msra.mxu0 0.0
    %2674 = vmatprep.subr.mxu0 0.0
    %2675 = vmatpush1.msra.mxu0 0.0
    %2676 = vmatprep.subr.mxu0 0.0
    %2677 = vmatpush1.msra.mxu0 0.0
    %2678 = vmatprep.subr.mxu0 0.0
    %2679 = vmatpush1.msra.mxu0 0.0
    %2680 = vmatprep.subr.mxu0 0.0
    %2681 = vmatpush1.msra.mxu0 0.0
    %2682 = vmatprep.subr.mxu0 0.0
    %2683 = vmatpush1.msra.mxu0 0.0
    %2684 = vmatprep.subr.mxu0 0.0
    %2685 = vmatpush1.msra.mxu0 0.0
    %2686 = vmatprep.subr.mxu0 0.0
    %2687 = vmatpush1.msra.mxu0 0.0
    %2688 = vmatprep.subr.mxu0 0.0
    %2689 = vmatpush1.msra.mxu0 0.0
    %2690 = vmatprep.subr.mxu0 0.0
    %2691 = vmatpush1.msra.mxu0 0.0
    %2692 = vmatprep.subr.mxu0 0.0
    %2693 = vmatpush1.msra.mxu0 0.0
    %2694 = vmatprep.subr.mxu0 0.0
    %2695 = vmatpush1.msra.mxu0 0.0
    %2696 = vmatprep.subr.mxu0 0.0
    %2697 = vmatpush1.msra.mxu0 0.0
    %2698 = vmatprep.subr.mxu0 0.0
    %2699 = vmatpush1.msra.mxu0 0.0
    %2700 = vmatprep.mubr.f32.mxu0 0.0
    %2701 = vmatmul.mubr.f32.gmra.mrb[0].mxu0 %v2618
    %v2702 = vpop.f32.mrb[0].mxu0
    %v2703 = vadd.f32 %v2635, %v2702
    %v2704 = vpop.f32.mrb[0].mxu0
    %2705 = vdwg.mxu0
    %v2706 = vtanh.pop %v2703
    %v2707 = vld [vmem:[#allocation16] sm:$0xff]
    %v2708 = vld [vmem:[#allocation16 + $0x8] sm:$0xff]
    %v2709 = vld [vmem:[#allocation16 + $0x10] sm:$0xff]
    %v2710 = vld [vmem:[#allocation16 + $0x18] sm:$0xff]
    %v2711 = vld [vmem:[#allocation16 + $0x20] sm:$0xff]
    %v2712 = vld [vmem:[#allocation16 + $0x28] sm:$0xff]
    %v2713 = vld [vmem:[#allocation16 + $0x30] sm:$0xff]
    %v2714 = vld [vmem:[#allocation16 + $0x38] sm:$0xff]
    %v2715 = vld [vmem:[#allocation16 + $0x40] sm:$0xff]
    %v2716 = vld [vmem:[#allocation16 + $0x48] sm:$0xff]
    %v2717 = vld [vmem:[#allocation16 + $0x50] sm:$0xff]
    %v2718 = vld [vmem:[#allocation16 + $0x58] sm:$0xff]
    %v2719 = vld [vmem:[#allocation16 + $0x60] sm:$0xff]
    %v2720 = vld [vmem:[#allocation16 + $0x68] sm:$0xff]
    %v2721 = vld [vmem:[#allocation16 + $0x70] sm:$0xff]
    %v2722 = vld [vmem:[#allocation16 + $0x78] sm:$0xff]
    %v2723 = vld [vmem:[%s13] sm:$0xff]
    %2724 = vmatprep.subr.mxu0 0.0
    %2725 = vmatpush1.msra.mxu0 %v2707
    %2726 = vmatprep.subr.mxu0 0.0
    %2727 = vmatpush1.msra.mxu0 %v2708
    %2728 = vmatprep.subr.mxu0 0.0
    %2729 = vmatpush1.msra.mxu0 %v2709
    %2730 = vmatprep.subr.mxu0 0.0
    %2731 = vmatpush1.msra.mxu0 %v2710
    %2732 = vmatprep.subr.mxu0 0.0
    %2733 = vmatpush1.msra.mxu0 %v2711
    %2734 = vmatprep.subr.mxu0 0.0
    %2735 = vmatpush1.msra.mxu0 %v2712
    %2736 = vmatprep.subr.mxu0 0.0
    %2737 = vmatpush1.msra.mxu0 %v2713
    %2738 = vmatprep.subr.mxu0 0.0
    %2739 = vmatpush1.msra.mxu0 %v2714
    %2740 = vmatprep.subr.mxu0 0.0
    %2741 = vmatpush1.msra.mxu0 %v2715
    %2742 = vmatprep.subr.mxu0 0.0
    %2743 = vmatpush1.msra.mxu0 %v2716
    %2744 = vmatprep.subr.mxu0 0.0
    %2745 = vmatpush1.msra.mxu0 %v2717
    %2746 = vmatprep.subr.mxu0 0.0
    %2747 = vmatpush1.msra.mxu0 %v2718
    %2748 = vmatprep.subr.mxu0 0.0
    %2749 = vmatpush1.msra.mxu0 %v2719
    %2750 = vmatprep.subr.mxu0 0.0
    %2751 = vmatpush1.msra.mxu0 %v2720
    %2752 = vmatprep.subr.mxu0 0.0
    %2753 = vmatpush1.msra.mxu0 %v2721
    %2754 = vmatprep.subr.mxu0 0.0
    %2755 = vmatpush1.msra.mxu0 %v2722
    %2756 = vmatprep.subr.mxu0 0.0
    %2757 = vmatpush1.msra.mxu0 0.0
    %2758 = vmatprep.subr.mxu0 0.0
    %2759 = vmatpush1.msra.mxu0 0.0
    %2760 = vmatprep.subr.mxu0 0.0
    %2761 = vmatpush1.msra.mxu0 0.0
    %2762 = vmatprep.subr.mxu0 0.0
    %2763 = vmatpush1.msra.mxu0 0.0
    %2764 = vmatprep.subr.mxu0 0.0
    %2765 = vmatpush1.msra.mxu0 0.0
    %2766 = vmatprep.subr.mxu0 0.0
    %2767 = vmatpush1.msra.mxu0 0.0
    %2768 = vmatprep.subr.mxu0 0.0
    %2769 = vmatpush1.msra.mxu0 0.0
    %2770 = vmatprep.subr.mxu0 0.0
    %2771 = vmatpush1.msra.mxu0 0.0
    %2772 = vmatprep.subr.mxu0 0.0
    %2773 = vmatpush1.msra.mxu0 0.0
    %2774 = vmatprep.subr.mxu0 0.0
    %2775 = vmatpush1.msra.mxu0 0.0
    %2776 = vmatprep.subr.mxu0 0.0
    %2777 = vmatpush1.msra.mxu0 0.0
    %2778 = vmatprep.subr.mxu0 0.0
    %2779 = vmatpush1.msra.mxu0 0.0
    %2780 = vmatprep.subr.mxu0 0.0
    %2781 = vmatpush1.msra.mxu0 0.0
    %2782 = vmatprep.subr.mxu0 0.0
    %2783 = vmatpush1.msra.mxu0 0.0
    %2784 = vmatprep.subr.mxu0 0.0
    %2785 = vmatpush1.msra.mxu0 0.0
    %2786 = vmatprep.subr.mxu0 0.0
    %2787 = vmatpush1.msra.mxu0 0.0
    %2788 = vmatprep.mubr.f32.mxu0 0.0
    %2789 = vmatmul.mubr.f32.gmra.mrb[0].mxu0 %v2706
    %v2790 = vpop.f32.mrb[0].mxu0
    %v2791 = vadd.f32 %v2723, %v2790
    %v2792 = vpop.f32.mrb[0].mxu0
    %2793 = vdwg.mxu0
    %s2794 = scalar_lea.vmem [#allocation17], 32
    %2795 = vst [vmem:[%s2794] sm:$0xff] %v2791
    %v2796 = vld [vmem:[#allocation13] sm:$0xff]
    %v2797 = vld [vmem:[#allocation13 + $0x8] sm:$0xff]
    %v2798 = vld [vmem:[#allocation13 + $0x10] sm:$0xff]
    %v2799 = vld [vmem:[#allocation13 + $0x18] sm:$0xff]
    %v2800 = vld [vmem:[#allocation13 + $0x20] sm:$0xff]
    %v2801 = vld [vmem:[#allocation13 + $0x28] sm:$0xff]
    %v2802 = vld [vmem:[#allocation13 + $0x30] sm:$0xff]
    %v2803 = vld [vmem:[#allocation13 + $0x38] sm:$0xff]
    %v2804 = vld [vmem:[#allocation13 + $0x40] sm:$0xff]
    %v2805 = vld [vmem:[#allocation13 + $0x48] sm:$0xff]
    %v2806 = vld [vmem:[#allocation13 + $0x50] sm:$0xff]
    %v2807 = vld [vmem:[#allocation13 + $0x58] sm:$0xff]
    %v2808 = vld [vmem:[#allocation13 + $0x60] sm:$0xff]
    %v2809 = vld [vmem:[#allocation13 + $0x68] sm:$0xff]
    %v2810 = vld [vmem:[#allocation13 + $0x70] sm:$0xff]
    %v2811 = vld [vmem:[#allocation13 + $0x78] sm:$0xff]
    %v2812 = vld [vmem:[%s9] sm:$0xff]
    %2813 = vmatprep.subr.mxu0 0.0
    %2814 = vmatpush1.msra.mxu0 %v2796
    %2815 = vmatprep.subr.mxu0 0.0
    %2816 = vmatpush1.msra.mxu0 %v2797
    %2817 = vmatprep.subr.mxu0 0.0
    %2818 = vmatpush1.msra.mxu0 %v2798
    %2819 = vmatprep.subr.mxu0 0.0
    %2820 = vmatpush1.msra.mxu0 %v2799
    %2821 = vmatprep.subr.mxu0 0.0
    %2822 = vmatpush1.msra.mxu0 %v2800
    %2823 = vmatprep.subr.mxu0 0.0
    %2824 = vmatpush1.msra.mxu0 %v2801
    %2825 = vmatprep.subr.mxu0 0.0
    %2826 = vmatpush1.msra.mxu0 %v2802
    %2827 = vmatprep.subr.mxu0 0.0
    %2828 = vmatpush1.msra.mxu0 %v2803
    %2829 = vmatprep.subr.mxu0 0.0
    %2830 = vmatpush1.msra.mxu0 %v2804
    %2831 = vmatprep.subr.mxu0 0.0
    %2832 = vmatpush1.msra.mxu0 %v2805
    %2833 = vmatprep.subr.mxu0 0.0
    %2834 = vmatpush1.msra.mxu0 %v2806
    %2835 = vmatprep.subr.mxu0 0.0
    %2836 = vmatpush1.msra.mxu0 %v2807
    %2837 = vmatprep.subr.mxu0 0.0
    %2838 = vmatpush1.msra.mxu0 %v2808
    %2839 = vmatprep.subr.mxu0 0.0
    %2840 = vmatpush1.msra.mxu0 %v2809
    %2841 = vmatprep.subr.mxu0 0.0
    %2842 = vmatpush1.msra.mxu0 %v2810
    %2843 = vmatprep.subr.mxu0 0.0
    %2844 = vmatpush1.msra.mxu0 %v2811
    %2845 = vmatprep.subr.mxu0 0.0
    %2846 = vmatpush1.msra.mxu0 0.0
    %2847 = vmatprep.subr.mxu0 0.0
    %2848 = vmatpush1.msra.mxu0 0.0
    %2849 = vmatprep.subr.mxu0 0.0
    %2850 = vmatpush1.msra.mxu0 0.0
    %2851 = vmatprep.subr.mxu0 0.0
    %2852 = vmatpush1.msra.mxu0 0.0
    %2853 = vmatprep.subr.mxu0 0.0
    %2854 = vmatpush1.msra.mxu0 0.0
    %2855 = vmatprep.subr.mxu0 0.0
    %2856 = vmatpush1.msra.mxu0 0.0
    %2857 = vmatprep.subr.mxu0 0.0
    %2858 = vmatpush1.msra.mxu0 0.0
    %2859 = vmatprep.subr.mxu0 0.0
    %2860 = vmatpush1.msra.mxu0 0.0
    %2861 = vmatprep.subr.mxu0 0.0
    %2862 = vmatpush1.msra.mxu0 0.0
    %2863 = vmatprep.subr.mxu0 0.0
    %2864 = vmatpush1.msra.mxu0 0.0
    %2865 = vmatprep.subr.mxu0 0.0
    %2866 = vmatpush1.msra.mxu0 0.0
    %2867 = vmatprep.subr.mxu0 0.0
    %2868 = vmatpush1.msra.mxu0 0.0
    %2869 = vmatprep.subr.mxu0 0.0
    %2870 = vmatpush1.msra.mxu0 0.0
    %2871 = vmatprep.subr.mxu0 0.0
    %2872 = vmatpush1.msra.mxu0 0.0
    %2873 = vmatprep.subr.mxu0 0.0
    %2874 = vmatpush1.msra.mxu0 0.0
    %2875 = vmatprep.subr.mxu0 0.0
    %2876 = vmatpush1.msra.mxu0 0.0
    %2877 = vmatprep.mubr.f32.mxu0 0.0
    %2878 = vmatmul.mubr.f32.gmra.mrb[0].mxu0 %v2706
    %v2879 = vpop.f32.mrb[0].mxu0
    %v2880 = vadd.f32 %v2812, %v2879
    %v2881 = vpop.f32.mrb[0].mxu0
    %2882 = vdwg.mxu0
    %v2883 = vtanh.pop %v2880
    %v2884 = vld [vmem:[#allocation14] sm:$0xff]
    %v2885 = vld [vmem:[#allocation14 + $0x8] sm:$0xff]
    %v2886 = vld [vmem:[#allocation14 + $0x10] sm:$0xff]
    %v2887 = vld [vmem:[#allocation14 + $0x18] sm:$0xff]
    %v2888 = vld [vmem:[#allocation14 + $0x20] sm:$0xff]
    %v2889 = vld [vmem:[#allocation14 + $0x28] sm:$0xff]
    %v2890 = vld [vmem:[#allocation14 + $0x30] sm:$0xff]
    %v2891 = vld [vmem:[#allocation14 + $0x38] sm:$0xff]
    %v2892 = vld [vmem:[#allocation14 + $0x40] sm:$0xff]
    %v2893 = vld [vmem:[#allocation14 + $0x48] sm:$0xff]
    %v2894 = vld [vmem:[#allocation14 + $0x50] sm:$0xff]
    %v2895 = vld [vmem:[#allocation14 + $0x58] sm:$0xff]
    %v2896 = vld [vmem:[#allocation14 + $0x60] sm:$0xff]
    %v2897 = vld [vmem:[#allocation14 + $0x68] sm:$0xff]
    %v2898 = vld [vmem:[#allocation14 + $0x70] sm:$0xff]
    %v2899 = vld [vmem:[#allocation14 + $0x78] sm:$0xff]
    %v2900 = vld [vmem:[%s11] sm:$0xff]
    %2901 = vmatprep.subr.mxu0 0.0
    %2902 = vmatpush1.msra.mxu0 %v2884
    %2903 = vmatprep.subr.mxu0 0.0
    %2904 = vmatpush1.msra.mxu0 %v2885
    %2905 = vmatprep.subr.mxu0 0.0
    %2906 = vmatpush1.msra.mxu0 %v2886
    %2907 = vmatprep.subr.mxu0 0.0
    %2908 = vmatpush1.msra.mxu0 %v2887
    %2909 = vmatprep.subr.mxu0 0.0
    %2910 = vmatpush1.msra.mxu0 %v2888
    %2911 = vmatprep.subr.mxu0 0.0
    %2912 = vmatpush1.msra.mxu0 %v2889
    %2913 = vmatprep.subr.mxu0 0.0
    %2914 = vmatpush1.msra.mxu0 %v2890
    %2915 = vmatprep.subr.mxu0 0.0
    %2916 = vmatpush1.msra.mxu0 %v2891
    %2917 = vmatprep.subr.mxu0 0.0
    %2918 = vmatpush1.msra.mxu0 %v2892
    %2919 = vmatprep.subr.mxu0 0.0
    %2920 = vmatpush1.msra.mxu0 %v2893
    %2921 = vmatprep.subr.mxu0 0.0
    %2922 = vmatpush1.msra.mxu0 %v2894
    %2923 = vmatprep.subr.mxu0 0.0
    %2924 = vmatpush1.msra.mxu0 %v2895
    %2925 = vmatprep.subr.mxu0 0.0
    %2926 = vmatpush1.msra.mxu0 %v2896
    %2927 = vmatprep.subr.mxu0 0.0
    %2928 = vmatpush1.msra.mxu0 %v2897
    %2929 = vmatprep.subr.mxu0 0.0
    %2930 = vmatpush1.msra.mxu0 %v2898
    %2931 = vmatprep.subr.mxu0 0.0
    %2932 = vmatpush1.msra.mxu0 %v2899
    %2933 = vmatprep.subr.mxu0 0.0
    %2934 = vmatpush1.msra.mxu0 0.0
    %2935 = vmatprep.subr.mxu0 0.0
    %2936 = vmatpush1.msra.mxu0 0.0
    %2937 = vmatprep.subr.mxu0 0.0
    %2938 = vmatpush1.msra.mxu0 0.0
    %2939 = vmatprep.subr.mxu0 0.0
    %2940 = vmatpush1.msra.mxu0 0.0
    %2941 = vmatprep.subr.mxu0 0.0
    %2942 = vmatpush1.msra.mxu0 0.0
    %2943 = vmatprep.subr.mxu0 0.0
    %2944 = vmatpush1.msra.mxu0 0.0
    %2945 = vmatprep.subr.mxu0 0.0
    %2946 = vmatpush1.msra.mxu0 0.0
    %2947 = vmatprep.subr.mxu0 0.0
    %2948 = vmatpush1.msra.mxu0 0.0
    %2949 = vmatprep.subr.mxu0 0.0
    %2950 = vmatpush1.msra.mxu0 0.0
    %2951 = vmatprep.subr.mxu0 0.0
    %2952 = vmatpush1.msra.mxu0 0.0
    %2953 = vmatprep.subr.mxu0 0.0
    %2954 = vmatpush1.msra.mxu0 0.0
    %2955 = vmatprep.subr.mxu0 0.0
    %2956 = vmatpush1.msra.mxu0 0.0
    %2957 = vmatprep.subr.mxu0 0.0
    %2958 = vmatpush1.msra.mxu0 0.0
    %2959 = vmatprep.subr.mxu0 0.0
    %2960 = vmatpush1.msra.mxu0 0.0
    %2961 = vmatprep.subr.mxu0 0.0
    %2962 = vmatpush1.msra.mxu0 0.0
    %2963 = vmatprep.subr.mxu0 0.0
    %2964 = vmatpush1.msra.mxu0 0.0
    %2965 = vmatprep.mubr.f32.mxu0 0.0
    %2966 = vmatmul.mubr.f32.gmra.mrb[0].mxu0 %v2883
    %v2967 = vpop.f32.mrb[0].mxu0
    %v2968 = vadd.f32 %v2900, %v2967
    %v2969 = vpop.f32.mrb[0].mxu0
    %2970 = vdwg.mxu0
    %v2971 = vtanh.pop %v2968
    %v2972 = vld [vmem:[#allocation16] sm:$0xff]
    %v2973 = vld [vmem:[#allocation16 + $0x8] sm:$0xff]
    %v2974 = vld [vmem:[#allocation16 + $0x10] sm:$0xff]
    %v2975 = vld [vmem:[#allocation16 + $0x18] sm:$0xff]
    %v2976 = vld [vmem:[#allocation16 + $0x20] sm:$0xff]
    %v2977 = vld [vmem:[#allocation16 + $0x28] sm:$0xff]
    %v2978 = vld [vmem:[#allocation16 + $0x30] sm:$0xff]
    %v2979 = vld [vmem:[#allocation16 + $0x38] sm:$0xff]
    %v2980 = vld [vmem:[#allocation16 + $0x40] sm:$0xff]
    %v2981 = vld [vmem:[#allocation16 + $0x48] sm:$0xff]
    %v2982 = vld [vmem:[#allocation16 + $0x50] sm:$0xff]
    %v2983 = vld [vmem:[#allocation16 + $0x58] sm:$0xff]
    %v2984 = vld [vmem:[#allocation16 + $0x60] sm:$0xff]
    %v2985 = vld [vmem:[#allocation16 + $0x68] sm:$0xff]
    %v2986 = vld [vmem:[#allocation16 + $0x70] sm:$0xff]
    %v2987 = vld [vmem:[#allocation16 + $0x78] sm:$0xff]
    %v2988 = vld [vmem:[%s13] sm:$0xff]
    %2989 = vmatprep.subr.mxu0 0.0
    %2990 = vmatpush1.msra.mxu0 %v2972
    %2991 = vmatprep.subr.mxu0 0.0
    %2992 = vmatpush1.msra.mxu0 %v2973
    %2993 = vmatprep.subr.mxu0 0.0
    %2994 = vmatpush1.msra.mxu0 %v2974
    %2995 = vmatprep.subr.mxu0 0.0
    %2996 = vmatpush1.msra.mxu0 %v2975
    %2997 = vmatprep.subr.mxu0 0.0
    %2998 = vmatpush1.msra.mxu0 %v2976
    %2999 = vmatprep.subr.mxu0 0.0
    %3000 = vmatpush1.msra.mxu0 %v2977
    %3001 = vmatprep.subr.mxu0 0.0
    %3002 = vmatpush1.msra.mxu0 %v2978
    %3003 = vmatprep.subr.mxu0 0.0
    %3004 = vmatpush1.msra.mxu0 %v2979
    %3005 = vmatprep.subr.mxu0 0.0
    %3006 = vmatpush1.msra.mxu0 %v2980
    %3007 = vmatprep.subr.mxu0 0.0
    %3008 = vmatpush1.msra.mxu0 %v2981
    %3009 = vmatprep.subr.mxu0 0.0
    %3010 = vmatpush1.msra.mxu0 %v2982
    %3011 = vmatprep.subr.mxu0 0.0
    %3012 = vmatpush1.msra.mxu0 %v2983
    %3013 = vmatprep.subr.mxu0 0.0
    %3014 = vmatpush1.msra.mxu0 %v2984
    %3015 = vmatprep.subr.mxu0 0.0
    %3016 = vmatpush1.msra.mxu0 %v2985
    %3017 = vmatprep.subr.mxu0 0.0
    %3018 = vmatpush1.msra.mxu0 %v2986
    %3019 = vmatprep.subr.mxu0 0.0
    %3020 = vmatpush1.msra.mxu0 %v2987
    %3021 = vmatprep.subr.mxu0 0.0
    %3022 = vmatpush1.msra.mxu0 0.0
    %3023 = vmatprep.subr.mxu0 0.0
    %3024 = vmatpush1.msra.mxu0 0.0
    %3025 = vmatprep.subr.mxu0 0.0
    %3026 = vmatpush1.msra.mxu0 0.0
    %3027 = vmatprep.subr.mxu0 0.0
    %3028 = vmatpush1.msra.mxu0 0.0
    %3029 = vmatprep.subr.mxu0 0.0
    %3030 = vmatpush1.msra.mxu0 0.0
    %3031 = vmatprep.subr.mxu0 0.0
    %3032 = vmatpush1.msra.mxu0 0.0
    %3033 = vmatprep.subr.mxu0 0.0
    %3034 = vmatpush1.msra.mxu0 0.0
    %3035 = vmatprep.subr.mxu0 0.0
    %3036 = vmatpush1.msra.mxu0 0.0
    %3037 = vmatprep.subr.mxu0 0.0
    %3038 = vmatpush1.msra.mxu0 0.0
    %3039 = vmatprep.subr.mxu0 0.0
    %3040 = vmatpush1.msra.mxu0 0.0
    %3041 = vmatprep.subr.mxu0 0.0
    %3042 = vmatpush1.msra.mxu0 0.0
    %3043 = vmatprep.subr.mxu0 0.0
    %3044 = vmatpush1.msra.mxu0 0.0
    %3045 = vmatprep.subr.mxu0 0.0
    %3046 = vmatpush1.msra.mxu0 0.0
    %3047 = vmatprep.subr.mxu0 0.0
    %3048 = vmatpush1.msra.mxu0 0.0
    %3049 = vmatprep.subr.mxu0 0.0
    %3050 = vmatpush1.msra.mxu0 0.0
    %3051 = vmatprep.subr.mxu0 0.0
    %3052 = vmatpush1.msra.mxu0 0.0
    %3053 = vmatprep.mubr.f32.mxu0 0.0
    %3054 = vmatmul.mubr.f32.gmra.mrb[0].mxu0 %v2971
    %v3055 = vpop.f32.mrb[0].mxu0
    %v3056 = vadd.f32 %v2988, %v3055
    %v3057 = vpop.f32.mrb[0].mxu0
    %3058 = vdwg.mxu0
    %s3059 = scalar_lea.vmem [#allocation17], 40
    %3060 = vst [vmem:[%s3059] sm:$0xff] %v3056
    // Predicated region
    $region94: #{tpu_custom_call.1} parent=1 // pred_check
      _
    $region95: #{tpu_custom_call.1} parent=1 // pred_check_branch
      %3062 = sbr.rel (0) target = $region97
    $region96: #{tpu_custom_call.1} parent=1 // pred_region
      %s3064 = ssub.s32 768, 768
      %3065 = vsyncadd [#allocation4], %s3064
      %s3066 = sshll.u32 [#allocation17], 4
      %s3067 = int_to_ptr.vmem [resolvable:$true] %s3066
      %3072 = dma.vmem_to_hbm [thread:$0]  %s3067, 768, %s14, [#allocation4], 128, 128, 8
    $region97: #{tpu_custom_call.1} parent=1 // pred_fallthru
      _
    // Predicated region
    $region98: #{tpu_custom_call.1} parent=1 // pred_check
      _
    $region99: #{tpu_custom_call.1} parent=1 // pred_check_branch
      %3074 = sbr.rel (0) target = $region101
    $region100: #{tpu_custom_call.1} parent=1 // pred_region
      %3075 = dma.done [#allocation4], 768
    $region101: #{tpu_custom_call.1} parent=1 // pred_fallthru
      _
    %3076 = vsyncpa [#allocation3], 1
    %3077 = vsyncpa [#allocation6], 1
    %3078 = vsyncpa [#allocation9], 1
    %3079 = vsyncpa [#allocation12], 1
    %3080 = vsyncpa [#allocation15], 1
    %3081 = vsyncpa [#allocation4], 1

</llo_original>
